<compile_context>
chip_gen: v7x
topology: tpu7x:2x2x1
jax: 0.10.0
libtpu: 0.0.40
codegen_flags: <defaults>
</compile_context>

<pallas_src>
import functools

import numpy as np
import jax
import jax.numpy as jnp
from jax import lax
from jax.experimental import pallas as pl
from jax.experimental.pallas import tpu as pltpu


def _round_up(x, m):
    return (x + m - 1) // m * m


def _sigmoid(v):
    return 1.0 / (1.0 + jnp.exp(-v))


def _sca_kernel(C, Wp, Npad, inv_hw,
                x_ref, w1_ref, b1_ref, w2_ref, b2_ref,
                wca1_ref, wca2_ref, wc11_ref, mask_ref, wsa_ref,
                out_ref, col_ref):
    f32 = jnp.float32
    x = x_ref[0]                  # (C, Npad); zero at every halo/pad position
    mask = mask_ref[...]          # (1, Npad) {0,1} valid-pixel mask

    def shift(v, s):
        # value at lane j becomes v[:, j + s]; circular wrap only ever lands on
        # halo positions (which are zero / re-masked), never on valid pixels.
        if s == 0:
            return v
        return pltpu.roll(v, (-s) % Npad, axis=1)

    def conv3x3(inp, w_ref, b_ref):
        # im2col slab -> single (C, 9C) x (9C, Npad) MXU issue.
        for k in range(9):
            dy, dx = k // 3 - 1, k % 3 - 1
            col_ref[k * C:(k + 1) * C, :] = shift(inp, dy * Wp + dx)
        return jnp.dot(w_ref[...], col_ref[...],
                       preferred_element_type=f32) + b_ref[...]

    # ---- body: conv3x3+ReLU -> (PReLU == no-op after ReLU) -> conv3x3+ReLU --
    h = jnp.maximum(conv3x3(x, w1_ref, b1_ref), 0.0) * mask
    res = jnp.maximum(conv3x3(h, w2_ref, b2_ref), 0.0) * mask

    # ---- channel attention (squeeze-excite, bias-free) -----------------------
    y = jnp.sum(res, axis=1, keepdims=True) * inv_hw                        # (C, 1)
    z = jnp.maximum(jnp.sum(wca1_ref[...] * y, axis=0, keepdims=True), 0.0)  # (1, Cr)
    s_ca = _sigmoid(jnp.sum(wca2_ref[...] * z, axis=1, keepdims=True))       # (C, 1)
    ca = res * s_ca

    # ---- spatial attention: ChannelPool -> 5x5 conv -> sigmoid (lane-dense) --
    pmax = jnp.max(res, axis=0, keepdims=True)                               # (1, Npad)
    pmean = jnp.mean(res, axis=0, keepdims=True)                             # (1, Npad)
    sa_logit = jnp.zeros((1, Npad), f32)
    for k in range(25):
        dy, dx = k // 5 - 2, k % 5 - 2
        s = dy * Wp + dx
        sa_logit = (sa_logit
                    + shift(pmax, s) * wsa_ref[0, k]
                    + shift(pmean, s) * wsa_ref[1, k])
    sa = res * _sigmoid(sa_logit)

    # ---- fused 1x1 conv over [sa; ca] + residual -----------------------------
    cat = jnp.concatenate([sa, ca], axis=0)                                  # (2C, Npad)
    out_ref[0] = jnp.dot(wc11_ref[...], cat, preferred_element_type=f32) + x


def sca_forward(x_nchw, params):
    """x_nchw: (B, C, H, W) float32 -> (B, C, H, W) float32."""
    B, C, H, W = x_nchw.shape
    Cr = params["wca1_t"].shape[1]
    Wp = _round_up(W + 4, 8)              # padded row stride (halo 2 each side + align)
    rows = H + 4                          # 2 halo rows top / bottom
    Npad = _round_up(rows * Wp, 128)      # 128-lane aligned flat spatial domain

    def pad_flat(img):                    # (..., H, W) -> (..., Npad), zero halo
        p = jnp.pad(img, [(0, 0)] * (img.ndim - 2)
                    + [(2, rows - H - 2), (2, Wp - W - 2)])
        flat = p.reshape(*img.shape[:-2], rows * Wp)
        if Npad > rows * Wp:
            flat = jnp.pad(flat, [(0, 0)] * (flat.ndim - 1)
                           + [(0, Npad - rows * Wp)])
        return flat

    x_pad = pad_flat(x_nchw)                                   # (B, C, Npad)
    mask = pad_flat(jnp.ones((1, H, W), jnp.float32))          # (1, Npad)

    def resident(arr):                    # weight resident in VMEM across grid
        n = arr.ndim
        return pl.BlockSpec(arr.shape, lambda b, _n=n: (0,) * _n)

    grid_spec = pltpu.PrefetchScalarGridSpec(
        num_scalar_prefetch=0,
        grid=(B,),
        in_specs=[
            pl.BlockSpec((1, C, Npad), lambda b: (b, 0, 0)),     # padded input
            resident(params["w1"]),                              # (C, 9C)
            resident(params["b1"]),                              # (C, 1)
            resident(params["w2"]),                              # (C, 9C)
            resident(params["b2"]),                              # (C, 1)
            resident(params["wca1_t"]),                          # (C, Cr)
            resident(params["wca2"]),                            # (C, Cr)
            resident(params["wc11"]),                            # (C, 2C)
            pl.BlockSpec((1, Npad), lambda b: (0, 0)),           # valid mask
            pl.BlockSpec(memory_space=pltpu.MemorySpace.SMEM),   # SA taps (2, 25)
        ],
        out_specs=pl.BlockSpec((1, C, Npad), lambda b: (b, 0, 0)),
        scratch_shapes=[pltpu.VMEM((9 * C, Npad), jnp.float32)],  # shared im2col slab
    )

    est = 4 * (13 * C * Npad + 2 * 9 * C * C + 2 * C
               + 2 * C * Cr + 2 * C * C + Npad)
    vmem_limit = int(min(max(4 * est, 32 * 1024 * 1024), 96 * 1024 * 1024))

    out_flat = pl.pallas_call(
        functools.partial(_sca_kernel, C, Wp, Npad, 1.0 / (H * W)),
        out_shape=jax.ShapeDtypeStruct((B, C, Npad), jnp.float32),
        grid_spec=grid_spec,
        compiler_params=pltpu.CompilerParams(
            dimension_semantics=("parallel",),
            vmem_limit_bytes=vmem_limit),
    )(x_pad,
      params["w1"], params["b1"], params["w2"], params["b2"],
      params["wca1_t"], params["wca2"], params["wc11"],
      mask, params["wsa"])

    out = out_flat[:, :, :rows * Wp].reshape(B, C, rows, Wp)
    return out[:, :, 2:2 + H, 2:2 + W]


# -----------------------------------------------------------------------------
# Pure-JAX/XLA reference (direct transcription of SCA.forward, NCHW layouts)
# -----------------------------------------------------------------------------
def sca_reference(x, tp):
    def conv2d(inp, w, b=None, pad=0):
        out = lax.conv_general_dilated(
            inp, w, window_strides=(1, 1),
            padding=[(pad, pad), (pad, pad)],
            dimension_numbers=("NCHW", "OIHW", "NCHW"),
            precision=lax.Precision.HIGHEST)
        if b is not None:
            out = out + b.reshape(1, -1, 1, 1)
        return out

    a = tp["prelu_a"]
    r = conv2d(x, tp["w1"], tp["b1"], pad=1)
    r = jnp.maximum(r, 0.0)
    r = jnp.maximum(r, 0.0) + a * jnp.minimum(r, 0.0)       # PReLU (dead after ReLU)
    r = conv2d(r, tp["w2"], tp["b2"], pad=1)
    r = jnp.maximum(r, 0.0)

    pooled = jnp.concatenate([jnp.max(r, axis=1, keepdims=True),
                              jnp.mean(r, axis=1, keepdims=True)], axis=1)
    sa = r * _sigmoid(conv2d(pooled, tp["wsa"], pad=2))

    y = jnp.mean(r, axis=(2, 3), keepdims=True)
    z = jnp.maximum(conv2d(y, tp["wca1"]), 0.0)
    ca = r * _sigmoid(conv2d(z, tp["wca2"]))

    cat = jnp.concatenate([sa, ca], axis=1)
    return conv2d(cat, tp["wc11"]) + x


if __name__ == "__main__":
    B, C, H, W = 2, 16, 16, 16
    reduction = 8
    Cr = C // reduction

    key = jax.random.PRNGKey(0)
    ks = jax.random.split(key, 9)
    x = jax.random.normal(ks[0], (B, C, H, W), jnp.float32)

    # Parameters in PyTorch layouts (Cout, Cin, kh, kw).
    w1 = jax.random.normal(ks[1], (C, C, 3, 3), jnp.float32) * 0.1
    b1 = jax.random.normal(ks[2], (C,), jnp.float32) * 0.1
    w2 = jax.random.normal(ks[3], (C, C, 3, 3), jnp.float32) * 0.1
    b2 = jax.random.normal(ks[4], (C,), jnp.float32) * 0.1
    wsa = jax.random.normal(ks[5], (1, 2, 5, 5), jnp.float32) * 0.1
    wca1 = jax.random.normal(ks[6], (Cr, C, 1, 1), jnp.float32) * 0.1
    wca2 = jax.random.normal(ks[7], (C, Cr, 1, 1), jnp.float32) * 0.1
    wc11 = jax.random.normal(ks[8], (C, 2 * C, 1, 1), jnp.float32) * 0.1
    prelu_a = jnp.float32(0.25)   # dead parameter: PReLU after ReLU is identity

    # Pallas-friendly layouts: taps-major (Cout, 9*Cin) conv weights, CA/1x1
    # convs as small matrices, SA 5x5 taps as a (2, 25) SMEM table.
    params = {
        "w1": jnp.transpose(w1, (0, 2, 3, 1)).reshape(C, 9 * C),
        "b1": b1.reshape(C, 1),
        "w2": jnp.transpose(w2, (0, 2, 3, 1)).reshape(C, 9 * C),
        "b2": b2.reshape(C, 1),
        "wsa": wsa[0].reshape(2, 25),      # row 0: max taps, row 1: mean taps
        "wca1_t": wca1[:, :, 0, 0].T,      # (C, Cr)
        "wca2": wca2[:, :, 0, 0],          # (C, Cr)
        "wc11": wc11[:, :, 0, 0],          # (C, 2C): [:, :C]=sa half, [:, C:]=ca half
    }

    out = jax.block_until_ready(sca_forward(x, params))

    ref = sca_reference(x, {"w1": w1, "b1": b1, "w2": w2, "b2": b2,
                            "wsa": wsa, "wca1": wca1, "wca2": wca2,
                            "wc11": wc11, "prelu_a": prelu_a})
    assert out.shape == x.shape, out.shape
    np.testing.assert_allclose(np.asarray(out), np.asarray(ref),
                               rtol=1e-4, atol=1e-4)
    print("KERNEL_OK")
</pallas_src>

<mosaic_0001>
module attributes {stable_mosaic.version = 11 : i64} {
  func.func @_sca_kernel(%arg0: i32, %arg1: memref<1x16x512xf32, #tpu.memory_space<vmem>>, %arg2: memref<16x144xf32, #tpu.memory_space<vmem>>, %arg3: memref<16x1xf32, #tpu.memory_space<vmem>>, %arg4: memref<16x144xf32, #tpu.memory_space<vmem>>, %arg5: memref<16x1xf32, #tpu.memory_space<vmem>>, %arg6: memref<16x2xf32, #tpu.memory_space<vmem>>, %arg7: memref<16x2xf32, #tpu.memory_space<vmem>>, %arg8: memref<16x32xf32, #tpu.memory_space<vmem>>, %arg9: memref<1x512xf32, #tpu.memory_space<vmem>>, %arg10: memref<2x25xf32, #tpu.memory_space<smem>>, %arg11: memref<1x16x512xf32, #tpu.memory_space<vmem>>, %arg12: memref<144x512xf32, #tpu.memory_space<vmem>>) attributes {dimension_semantics = [#tpu.dimension_semantics<parallel>], iteration_bounds = array<i64: 2>, scalar_prefetch = 0 : i64, scratch_operands = 1 : i64, tpu.core_type = #tpu.core_type<tc>, window_params = [{transform_indices = @transform_0, window_bounds = array<i64: 1, 16, 512>}, {pipeline_mode = #tpu.pipeline_mode<synchronous>, transform_indices = @transform_1, window_bounds = array<i64: 16, 144>}, {pipeline_mode = #tpu.pipeline_mode<synchronous>, transform_indices = @transform_2, window_bounds = array<i64: 16, 1>}, {pipeline_mode = #tpu.pipeline_mode<synchronous>, transform_indices = @transform_3, window_bounds = array<i64: 16, 144>}, {pipeline_mode = #tpu.pipeline_mode<synchronous>, transform_indices = @transform_4, window_bounds = array<i64: 16, 1>}, {pipeline_mode = #tpu.pipeline_mode<synchronous>, transform_indices = @transform_5, window_bounds = array<i64: 16, 2>}, {pipeline_mode = #tpu.pipeline_mode<synchronous>, transform_indices = @transform_6, window_bounds = array<i64: 16, 2>}, {pipeline_mode = #tpu.pipeline_mode<synchronous>, transform_indices = @transform_7, window_bounds = array<i64: 16, 32>}, {pipeline_mode = #tpu.pipeline_mode<synchronous>, transform_indices = @transform_8, window_bounds = array<i64: 1, 512>}, {transform_indices = @transform_9, window_bounds = array<i64: 2, 25>}, {transform_indices = @transform_10, window_bounds = array<i64: 1, 16, 512>}]} {
    %c0 = arith.constant 0 : index
    %c0_0 = arith.constant 0 : index
    %c0_1 = arith.constant 0 : index
    %0 = vector.load %arg1[%c0, %c0_0, %c0_1] : memref<1x16x512xf32, #tpu.memory_space<vmem>>, vector<1x16x512xf32>
    %1 = vector.shape_cast %0 : vector<1x16x512xf32> to vector<16x512xf32>
    %c0_2 = arith.constant 0 : index
    %c0_3 = arith.constant 0 : index
    %2 = vector.load %arg9[%c0_2, %c0_3] : memref<1x512xf32, #tpu.memory_space<vmem>>, vector<1x512xf32>
    %c25_i32 = arith.constant 25 : i32
    %3 = tpu.dynamic_rotate %1 by %c25_i32 dim 1 : vector<16x512xf32>, i32 -> vector<16x512xf32>
    %c0_4 = arith.constant 0 : index
    %c0_5 = arith.constant 0 : index
    %4 = vector.load %arg12[%c0_4, %c0_5] : memref<144x512xf32, #tpu.memory_space<vmem>>, vector<16x512xf32>
    tpu.vector_store %arg12[%c0_4, %c0_5], %3 {strides = array<i32>} : memref<144x512xf32, #tpu.memory_space<vmem>>, vector<16x512xf32>,
    %c24_i32 = arith.constant 24 : i32
    %5 = tpu.dynamic_rotate %1 by %c24_i32 dim 1 : vector<16x512xf32>, i32 -> vector<16x512xf32>
    %c16 = arith.constant 16 : index
    %c0_6 = arith.constant 0 : index
    %6 = vector.load %arg12[%c16, %c0_6] : memref<144x512xf32, #tpu.memory_space<vmem>>, vector<16x512xf32>
    tpu.vector_store %arg12[%c16, %c0_6], %5 {strides = array<i32>} : memref<144x512xf32, #tpu.memory_space<vmem>>, vector<16x512xf32>,
    %c23_i32 = arith.constant 23 : i32
    %7 = tpu.dynamic_rotate %1 by %c23_i32 dim 1 : vector<16x512xf32>, i32 -> vector<16x512xf32>
    %c32 = arith.constant 32 : index
    %c0_7 = arith.constant 0 : index
    %8 = vector.load %arg12[%c32, %c0_7] : memref<144x512xf32, #tpu.memory_space<vmem>>, vector<16x512xf32>
    tpu.vector_store %arg12[%c32, %c0_7], %7 {strides = array<i32>} : memref<144x512xf32, #tpu.memory_space<vmem>>, vector<16x512xf32>,
    %c1_i32 = arith.constant 1 : i32
    %9 = tpu.dynamic_rotate %1 by %c1_i32 dim 1 : vector<16x512xf32>, i32 -> vector<16x512xf32>
    %c48 = arith.constant 48 : index
    %c0_8 = arith.constant 0 : index
    %10 = vector.load %arg12[%c48, %c0_8] : memref<144x512xf32, #tpu.memory_space<vmem>>, vector<16x512xf32>
    tpu.vector_store %arg12[%c48, %c0_8], %9 {strides = array<i32>} : memref<144x512xf32, #tpu.memory_space<vmem>>, vector<16x512xf32>,
    %c64 = arith.constant 64 : index
    %c0_9 = arith.constant 0 : index
    %11 = vector.load %arg12[%c64, %c0_9] : memref<144x512xf32, #tpu.memory_space<vmem>>, vector<16x512xf32>
    tpu.vector_store %arg12[%c64, %c0_9], %1 {strides = array<i32>} : memref<144x512xf32, #tpu.memory_space<vmem>>, vector<16x512xf32>,
    %c511_i32 = arith.constant 511 : i32
    %12 = tpu.dynamic_rotate %1 by %c511_i32 dim 1 : vector<16x512xf32>, i32 -> vector<16x512xf32>
    %c80 = arith.constant 80 : index
    %c0_10 = arith.constant 0 : index
    %13 = vector.load %arg12[%c80, %c0_10] : memref<144x512xf32, #tpu.memory_space<vmem>>, vector<16x512xf32>
    tpu.vector_store %arg12[%c80, %c0_10], %12 {strides = array<i32>} : memref<144x512xf32, #tpu.memory_space<vmem>>, vector<16x512xf32>,
    %c489_i32 = arith.constant 489 : i32
    %14 = tpu.dynamic_rotate %1 by %c489_i32 dim 1 : vector<16x512xf32>, i32 -> vector<16x512xf32>
    %c96 = arith.constant 96 : index
    %c0_11 = arith.constant 0 : index
    %15 = vector.load %arg12[%c96, %c0_11] : memref<144x512xf32, #tpu.memory_space<vmem>>, vector<16x512xf32>
    tpu.vector_store %arg12[%c96, %c0_11], %14 {strides = array<i32>} : memref<144x512xf32, #tpu.memory_space<vmem>>, vector<16x512xf32>,
    %c488_i32 = arith.constant 488 : i32
    %16 = tpu.dynamic_rotate %1 by %c488_i32 dim 1 : vector<16x512xf32>, i32 -> vector<16x512xf32>
    %c112 = arith.constant 112 : index
    %c0_12 = arith.constant 0 : index
    %17 = vector.load %arg12[%c112, %c0_12] : memref<144x512xf32, #tpu.memory_space<vmem>>, vector<16x512xf32>
    tpu.vector_store %arg12[%c112, %c0_12], %16 {strides = array<i32>} : memref<144x512xf32, #tpu.memory_space<vmem>>, vector<16x512xf32>,
    %c487_i32 = arith.constant 487 : i32
    %18 = tpu.dynamic_rotate %1 by %c487_i32 dim 1 : vector<16x512xf32>, i32 -> vector<16x512xf32>
    %c128 = arith.constant 128 : index
    %c0_13 = arith.constant 0 : index
    %19 = vector.load %arg12[%c128, %c0_13] : memref<144x512xf32, #tpu.memory_space<vmem>>, vector<16x512xf32>
    tpu.vector_store %arg12[%c128, %c0_13], %18 {strides = array<i32>} : memref<144x512xf32, #tpu.memory_space<vmem>>, vector<16x512xf32>,
    %c0_14 = arith.constant 0 : index
    %c0_15 = arith.constant 0 : index
    %20 = vector.load %arg2[%c0_14, %c0_15] : memref<16x144xf32, #tpu.memory_space<vmem>>, vector<16x144xf32>
    %c0_16 = arith.constant 0 : index
    %c0_17 = arith.constant 0 : index
    %21 = vector.load %arg12[%c0_16, %c0_17] : memref<144x512xf32, #tpu.memory_space<vmem>>, vector<144x512xf32>
    %cst = arith.constant dense<0.000000e+00> : vector<16x512xf32>
    %22 = tpu.matmul %20, %21, %cst {dimension_numbers = #tpu.dot_dimension_numbers<[1], [0], [0], [1], [0, 0, 1, 1], [], []>} : vector<16x144xf32>, vector<144x512xf32>, vector<16x512xf32> -> vector<16x512xf32>
    %c0_18 = arith.constant 0 : index
    %c0_19 = arith.constant 0 : index
    %23 = vector.load %arg3[%c0_18, %c0_19] : memref<16x1xf32, #tpu.memory_space<vmem>>, vector<16x1xf32>
    %24 = vector.broadcast %23 : vector<16x1xf32> to vector<16x512xf32>
    %25 = arith.addf %22, %24 : vector<16x512xf32>
    %cst_20 = arith.constant 0.000000e+00 : f32
    %26 = vector.broadcast %cst_20 : f32 to vector<16x512xf32>
    %27 = arith.maximumf %25, %26 : vector<16x512xf32>
    %28 = vector.broadcast %2 : vector<1x512xf32> to vector<16x512xf32>
    %29 = arith.mulf %27, %28 : vector<16x512xf32>
    %c25_i32_21 = arith.constant 25 : i32
    %30 = tpu.dynamic_rotate %29 by %c25_i32_21 dim 1 : vector<16x512xf32>, i32 -> vector<16x512xf32>
    %c0_22 = arith.constant 0 : index
    %c0_23 = arith.constant 0 : index
    %31 = vector.load %arg12[%c0_22, %c0_23] : memref<144x512xf32, #tpu.memory_space<vmem>>, vector<16x512xf32>
    tpu.vector_store %arg12[%c0_22, %c0_23], %30 {strides = array<i32>} : memref<144x512xf32, #tpu.memory_space<vmem>>, vector<16x512xf32>,
    %c24_i32_24 = arith.constant 24 : i32
    %32 = tpu.dynamic_rotate %29 by %c24_i32_24 dim 1 : vector<16x512xf32>, i32 -> vector<16x512xf32>
    %c16_25 = arith.constant 16 : index
    %c0_26 = arith.constant 0 : index
    %33 = vector.load %arg12[%c16_25, %c0_26] : memref<144x512xf32, #tpu.memory_space<vmem>>, vector<16x512xf32>
    tpu.vector_store %arg12[%c16_25, %c0_26], %32 {strides = array<i32>} : memref<144x512xf32, #tpu.memory_space<vmem>>, vector<16x512xf32>,
    %c23_i32_27 = arith.constant 23 : i32
    %34 = tpu.dynamic_rotate %29 by %c23_i32_27 dim 1 : vector<16x512xf32>, i32 -> vector<16x512xf32>
    %c32_28 = arith.constant 32 : index
    %c0_29 = arith.constant 0 : index
    %35 = vector.load %arg12[%c32_28, %c0_29] : memref<144x512xf32, #tpu.memory_space<vmem>>, vector<16x512xf32>
    tpu.vector_store %arg12[%c32_28, %c0_29], %34 {strides = array<i32>} : memref<144x512xf32, #tpu.memory_space<vmem>>, vector<16x512xf32>,
    %c1_i32_30 = arith.constant 1 : i32
    %36 = tpu.dynamic_rotate %29 by %c1_i32_30 dim 1 : vector<16x512xf32>, i32 -> vector<16x512xf32>
    %c48_31 = arith.constant 48 : index
    %c0_32 = arith.constant 0 : index
    %37 = vector.load %arg12[%c48_31, %c0_32] : memref<144x512xf32, #tpu.memory_space<vmem>>, vector<16x512xf32>
    tpu.vector_store %arg12[%c48_31, %c0_32], %36 {strides = array<i32>} : memref<144x512xf32, #tpu.memory_space<vmem>>, vector<16x512xf32>,
    %c64_33 = arith.constant 64 : index
    %c0_34 = arith.constant 0 : index
    %38 = vector.load %arg12[%c64_33, %c0_34] : memref<144x512xf32, #tpu.memory_space<vmem>>, vector<16x512xf32>
    tpu.vector_store %arg12[%c64_33, %c0_34], %29 {strides = array<i32>} : memref<144x512xf32, #tpu.memory_space<vmem>>, vector<16x512xf32>,
    %c511_i32_35 = arith.constant 511 : i32
    %39 = tpu.dynamic_rotate %29 by %c511_i32_35 dim 1 : vector<16x512xf32>, i32 -> vector<16x512xf32>
    %c80_36 = arith.constant 80 : index
    %c0_37 = arith.constant 0 : index
    %40 = vector.load %arg12[%c80_36, %c0_37] : memref<144x512xf32, #tpu.memory_space<vmem>>, vector<16x512xf32>
    tpu.vector_store %arg12[%c80_36, %c0_37], %39 {strides = array<i32>} : memref<144x512xf32, #tpu.memory_space<vmem>>, vector<16x512xf32>,
    %c489_i32_38 = arith.constant 489 : i32
    %41 = tpu.dynamic_rotate %29 by %c489_i32_38 dim 1 : vector<16x512xf32>, i32 -> vector<16x512xf32>
    %c96_39 = arith.constant 96 : index
    %c0_40 = arith.constant 0 : index
    %42 = vector.load %arg12[%c96_39, %c0_40] : memref<144x512xf32, #tpu.memory_space<vmem>>, vector<16x512xf32>
    tpu.vector_store %arg12[%c96_39, %c0_40], %41 {strides = array<i32>} : memref<144x512xf32, #tpu.memory_space<vmem>>, vector<16x512xf32>,
    %c488_i32_41 = arith.constant 488 : i32
    %43 = tpu.dynamic_rotate %29 by %c488_i32_41 dim 1 : vector<16x512xf32>, i32 -> vector<16x512xf32>
    %c112_42 = arith.constant 112 : index
    %c0_43 = arith.constant 0 : index
    %44 = vector.load %arg12[%c112_42, %c0_43] : memref<144x512xf32, #tpu.memory_space<vmem>>, vector<16x512xf32>
    tpu.vector_store %arg12[%c112_42, %c0_43], %43 {strides = array<i32>} : memref<144x512xf32, #tpu.memory_space<vmem>>, vector<16x512xf32>,
    %c487_i32_44 = arith.constant 487 : i32
    %45 = tpu.dynamic_rotate %29 by %c487_i32_44 dim 1 : vector<16x512xf32>, i32 -> vector<16x512xf32>
    %c128_45 = arith.constant 128 : index
    %c0_46 = arith.constant 0 : index
    %46 = vector.load %arg12[%c128_45, %c0_46] : memref<144x512xf32, #tpu.memory_space<vmem>>, vector<16x512xf32>
    tpu.vector_store %arg12[%c128_45, %c0_46], %45 {strides = array<i32>} : memref<144x512xf32, #tpu.memory_space<vmem>>, vector<16x512xf32>,
    %c0_47 = arith.constant 0 : index
    %c0_48 = arith.constant 0 : index
    %47 = vector.load %arg4[%c0_47, %c0_48] : memref<16x144xf32, #tpu.memory_space<vmem>>, vector<16x144xf32>
    %c0_49 = arith.constant 0 : index
    %c0_50 = arith.constant 0 : index
    %48 = vector.load %arg12[%c0_49, %c0_50] : memref<144x512xf32, #tpu.memory_space<vmem>>, vector<144x512xf32>
    %cst_51 = arith.constant dense<0.000000e+00> : vector<16x512xf32>
    %49 = tpu.matmul %47, %48, %cst_51 {dimension_numbers = #tpu.dot_dimension_numbers<[1], [0], [0], [1], [0, 0, 1, 1], [], []>} : vector<16x144xf32>, vector<144x512xf32>, vector<16x512xf32> -> vector<16x512xf32>
    %c0_52 = arith.constant 0 : index
    %c0_53 = arith.constant 0 : index
    %50 = vector.load %arg5[%c0_52, %c0_53] : memref<16x1xf32, #tpu.memory_space<vmem>>, vector<16x1xf32>
    %51 = vector.broadcast %50 : vector<16x1xf32> to vector<16x512xf32>
    %52 = arith.addf %49, %51 : vector<16x512xf32>
    %cst_54 = arith.constant 0.000000e+00 : f32
    %53 = vector.broadcast %cst_54 : f32 to vector<16x512xf32>
    %54 = arith.maximumf %52, %53 : vector<16x512xf32>
    %55 = vector.broadcast %2 : vector<1x512xf32> to vector<16x512xf32>
    %56 = arith.mulf %54, %55 : vector<16x512xf32>
    %cst_55 = arith.constant dense<0.000000e+00> : vector<16xf32>
    %57 = vector.multi_reduction <add>, %56, %cst_55 [1] : vector<16x512xf32> to vector<16xf32>
    %58 = vector.shape_cast %57 : vector<16xf32> to vector<16x1xf32>
    %cst_56 = arith.constant 3.906250e-03 : f32
    %59 = vector.broadcast %cst_56 : f32 to vector<16x1xf32>
    %60 = arith.mulf %58, %59 : vector<16x1xf32>
    %c0_57 = arith.constant 0 : index
    %c0_58 = arith.constant 0 : index
    %61 = vector.load %arg6[%c0_57, %c0_58] : memref<16x2xf32, #tpu.memory_space<vmem>>, vector<16x2xf32>
    %62 = vector.broadcast %60 : vector<16x1xf32> to vector<16x2xf32>
    %63 = arith.mulf %61, %62 : vector<16x2xf32>
    %cst_59 = arith.constant dense<0.000000e+00> : vector<2xf32>
    %64 = vector.multi_reduction <add>, %63, %cst_59 [0] : vector<16x2xf32> to vector<2xf32>
    %65 = vector.shape_cast %64 : vector<2xf32> to vector<1x2xf32>
    %cst_60 = arith.constant 0.000000e+00 : f32
    %66 = vector.broadcast %cst_60 : f32 to vector<1x2xf32>
    %67 = arith.maximumf %65, %66 : vector<1x2xf32>
    %c0_61 = arith.constant 0 : index
    %c0_62 = arith.constant 0 : index
    %68 = vector.load %arg7[%c0_61, %c0_62] : memref<16x2xf32, #tpu.memory_space<vmem>>, vector<16x2xf32>
    %69 = vector.broadcast %67 : vector<1x2xf32> to vector<16x2xf32>
    %70 = arith.mulf %68, %69 : vector<16x2xf32>
    %cst_63 = arith.constant dense<0.000000e+00> : vector<16xf32>
    %71 = vector.multi_reduction <add>, %70, %cst_63 [1] : vector<16x2xf32> to vector<16xf32>
    %72 = vector.shape_cast %71 : vector<16xf32> to vector<16x1xf32>
    %cst_64 = arith.constant 0.000000e+00 : f32
    %73 = vector.broadcast %cst_64 : f32 to vector<16x1xf32>
    %74 = arith.subf %73, %72 : vector<16x1xf32>
    %75 = math.exp %74 : vector<16x1xf32>
    %cst_65 = arith.constant 1.000000e+00 : f32
    %76 = vector.broadcast %cst_65 : f32 to vector<16x1xf32>
    %77 = arith.addf %76, %75 : vector<16x1xf32>
    %cst_66 = arith.constant 1.000000e+00 : f32
    %78 = vector.broadcast %cst_66 : f32 to vector<16x1xf32>
    %79 = arith.divf %78, %77 : vector<16x1xf32>
    %80 = vector.broadcast %79 : vector<16x1xf32> to vector<16x512xf32>
    %81 = arith.mulf %56, %80 : vector<16x512xf32>
    %cst_67 = arith.constant dense<0xFF800000> : vector<512xf32>
    %82 = vector.multi_reduction <maximumf>, %56, %cst_67 [0] : vector<16x512xf32> to vector<512xf32>
    %83 = vector.shape_cast %82 : vector<512xf32> to vector<1x512xf32>
    %cst_68 = arith.constant dense<0.000000e+00> : vector<512xf32>
    %84 = vector.multi_reduction <add>, %56, %cst_68 [0] : vector<16x512xf32> to vector<512xf32>
    %85 = vector.shape_cast %84 : vector<512xf32> to vector<1x512xf32>
    %cst_69 = arith.constant 1.600000e+01 : f32
    %86 = vector.broadcast %cst_69 : f32 to vector<1x512xf32>
    %87 = arith.divf %85, %86 : vector<1x512xf32>
    %cst_70 = arith.constant 0.000000e+00 : f32
    %88 = vector.broadcast %cst_70 : f32 to vector<1x512xf32>
    %c50_i32 = arith.constant 50 : i32
    %89 = tpu.dynamic_rotate %83 by %c50_i32 dim 1 : vector<1x512xf32>, i32 -> vector<1x512xf32>
    %c0_71 = arith.constant 0 : index
    %c0_72 = arith.constant 0 : index
    %90 = memref.load %arg10[%c0_71, %c0_72] : memref<2x25xf32, #tpu.memory_space<smem>>
    %91 = vector.broadcast %90 : f32 to vector<1x512xf32>
    %92 = arith.mulf %89, %91 : vector<1x512xf32>
    %93 = arith.addf %88, %92 : vector<1x512xf32>
    %c50_i32_73 = arith.constant 50 : i32
    %94 = tpu.dynamic_rotate %87 by %c50_i32_73 dim 1 : vector<1x512xf32>, i32 -> vector<1x512xf32>
    %c1 = arith.constant 1 : index
    %c0_74 = arith.constant 0 : index
    %95 = memref.load %arg10[%c1, %c0_74] : memref<2x25xf32, #tpu.memory_space<smem>>
    %96 = vector.broadcast %95 : f32 to vector<1x512xf32>
    %97 = arith.mulf %94, %96 : vector<1x512xf32>
    %98 = arith.addf %93, %97 : vector<1x512xf32>
    %c49_i32 = arith.constant 49 : i32
    %99 = tpu.dynamic_rotate %83 by %c49_i32 dim 1 : vector<1x512xf32>, i32 -> vector<1x512xf32>
    %c0_75 = arith.constant 0 : index
    %c1_76 = arith.constant 1 : index
    %100 = memref.load %arg10[%c0_75, %c1_76] : memref<2x25xf32, #tpu.memory_space<smem>>
    %101 = vector.broadcast %100 : f32 to vector<1x512xf32>
    %102 = arith.mulf %99, %101 : vector<1x512xf32>
    %103 = arith.addf %98, %102 : vector<1x512xf32>
    %c49_i32_77 = arith.constant 49 : i32
    %104 = tpu.dynamic_rotate %87 by %c49_i32_77 dim 1 : vector<1x512xf32>, i32 -> vector<1x512xf32>
    %c1_78 = arith.constant 1 : index
    %c1_79 = arith.constant 1 : index
    %105 = memref.load %arg10[%c1_78, %c1_79] : memref<2x25xf32, #tpu.memory_space<smem>>
    %106 = vector.broadcast %105 : f32 to vector<1x512xf32>
    %107 = arith.mulf %104, %106 : vector<1x512xf32>
    %108 = arith.addf %103, %107 : vector<1x512xf32>
    %c48_i32 = arith.constant 48 : i32
    %109 = tpu.dynamic_rotate %83 by %c48_i32 dim 1 : vector<1x512xf32>, i32 -> vector<1x512xf32>
    %c0_80 = arith.constant 0 : index
    %c2 = arith.constant 2 : index
    %110 = memref.load %arg10[%c0_80, %c2] : memref<2x25xf32, #tpu.memory_space<smem>>
    %111 = vector.broadcast %110 : f32 to vector<1x512xf32>
    %112 = arith.mulf %109, %111 : vector<1x512xf32>
    %113 = arith.addf %108, %112 : vector<1x512xf32>
    %c48_i32_81 = arith.constant 48 : i32
    %114 = tpu.dynamic_rotate %87 by %c48_i32_81 dim 1 : vector<1x512xf32>, i32 -> vector<1x512xf32>
    %c1_82 = arith.constant 1 : index
    %c2_83 = arith.constant 2 : index
    %115 = memref.load %arg10[%c1_82, %c2_83] : memref<2x25xf32, #tpu.memory_space<smem>>
    %116 = vector.broadcast %115 : f32 to vector<1x512xf32>
    %117 = arith.mulf %114, %116 : vector<1x512xf32>
    %118 = arith.addf %113, %117 : vector<1x512xf32>
    %c47_i32 = arith.constant 47 : i32
    %119 = tpu.dynamic_rotate %83 by %c47_i32 dim 1 : vector<1x512xf32>, i32 -> vector<1x512xf32>
    %c0_84 = arith.constant 0 : index
    %c3 = arith.constant 3 : index
    %120 = memref.load %arg10[%c0_84, %c3] : memref<2x25xf32, #tpu.memory_space<smem>>
    %121 = vector.broadcast %120 : f32 to vector<1x512xf32>
    %122 = arith.mulf %119, %121 : vector<1x512xf32>
    %123 = arith.addf %118, %122 : vector<1x512xf32>
    %c47_i32_85 = arith.constant 47 : i32
    %124 = tpu.dynamic_rotate %87 by %c47_i32_85 dim 1 : vector<1x512xf32>, i32 -> vector<1x512xf32>
    %c1_86 = arith.constant 1 : index
    %c3_87 = arith.constant 3 : index
    %125 = memref.load %arg10[%c1_86, %c3_87] : memref<2x25xf32, #tpu.memory_space<smem>>
    %126 = vector.broadcast %125 : f32 to vector<1x512xf32>
    %127 = arith.mulf %124, %126 : vector<1x512xf32>
    %128 = arith.addf %123, %127 : vector<1x512xf32>
    %c46_i32 = arith.constant 46 : i32
    %129 = tpu.dynamic_rotate %83 by %c46_i32 dim 1 : vector<1x512xf32>, i32 -> vector<1x512xf32>
    %c0_88 = arith.constant 0 : index
    %c4 = arith.constant 4 : index
    %130 = memref.load %arg10[%c0_88, %c4] : memref<2x25xf32, #tpu.memory_space<smem>>
    %131 = vector.broadcast %130 : f32 to vector<1x512xf32>
    %132 = arith.mulf %129, %131 : vector<1x512xf32>
    %133 = arith.addf %128, %132 : vector<1x512xf32>
    %c46_i32_89 = arith.constant 46 : i32
    %134 = tpu.dynamic_rotate %87 by %c46_i32_89 dim 1 : vector<1x512xf32>, i32 -> vector<1x512xf32>
    %c1_90 = arith.constant 1 : index
    %c4_91 = arith.constant 4 : index
    %135 = memref.load %arg10[%c1_90, %c4_91] : memref<2x25xf32, #tpu.memory_space<smem>>
    %136 = vector.broadcast %135 : f32 to vector<1x512xf32>
    %137 = arith.mulf %134, %136 : vector<1x512xf32>
    %138 = arith.addf %133, %137 : vector<1x512xf32>
    %c26_i32 = arith.constant 26 : i32
    %139 = tpu.dynamic_rotate %83 by %c26_i32 dim 1 : vector<1x512xf32>, i32 -> vector<1x512xf32>
    %c0_92 = arith.constant 0 : index
    %c5 = arith.constant 5 : index
    %140 = memref.load %arg10[%c0_92, %c5] : memref<2x25xf32, #tpu.memory_space<smem>>
    %141 = vector.broadcast %140 : f32 to vector<1x512xf32>
    %142 = arith.mulf %139, %141 : vector<1x512xf32>
    %143 = arith.addf %138, %142 : vector<1x512xf32>
    %c26_i32_93 = arith.constant 26 : i32
    %144 = tpu.dynamic_rotate %87 by %c26_i32_93 dim 1 : vector<1x512xf32>, i32 -> vector<1x512xf32>
    %c1_94 = arith.constant 1 : index
    %c5_95 = arith.constant 5 : index
    %145 = memref.load %arg10[%c1_94, %c5_95] : memref<2x25xf32, #tpu.memory_space<smem>>
    %146 = vector.broadcast %145 : f32 to vector<1x512xf32>
    %147 = arith.mulf %144, %146 : vector<1x512xf32>
    %148 = arith.addf %143, %147 : vector<1x512xf32>
    %c25_i32_96 = arith.constant 25 : i32
    %149 = tpu.dynamic_rotate %83 by %c25_i32_96 dim 1 : vector<1x512xf32>, i32 -> vector<1x512xf32>
    %c0_97 = arith.constant 0 : index
    %c6 = arith.constant 6 : index
    %150 = memref.load %arg10[%c0_97, %c6] : memref<2x25xf32, #tpu.memory_space<smem>>
    %151 = vector.broadcast %150 : f32 to vector<1x512xf32>
    %152 = arith.mulf %149, %151 : vector<1x512xf32>
    %153 = arith.addf %148, %152 : vector<1x512xf32>
    %c25_i32_98 = arith.constant 25 : i32
    %154 = tpu.dynamic_rotate %87 by %c25_i32_98 dim 1 : vector<1x512xf32>, i32 -> vector<1x512xf32>
    %c1_99 = arith.constant 1 : index
    %c6_100 = arith.constant 6 : index
    %155 = memref.load %arg10[%c1_99, %c6_100] : memref<2x25xf32, #tpu.memory_space<smem>>
    %156 = vector.broadcast %155 : f32 to vector<1x512xf32>
    %157 = arith.mulf %154, %156 : vector<1x512xf32>
    %158 = arith.addf %153, %157 : vector<1x512xf32>
    %c24_i32_101 = arith.constant 24 : i32
    %159 = tpu.dynamic_rotate %83 by %c24_i32_101 dim 1 : vector<1x512xf32>, i32 -> vector<1x512xf32>
    %c0_102 = arith.constant 0 : index
    %c7 = arith.constant 7 : index
    %160 = memref.load %arg10[%c0_102, %c7] : memref<2x25xf32, #tpu.memory_space<smem>>
    %161 = vector.broadcast %160 : f32 to vector<1x512xf32>
    %162 = arith.mulf %159, %161 : vector<1x512xf32>
    %163 = arith.addf %158, %162 : vector<1x512xf32>
    %c24_i32_103 = arith.constant 24 : i32
    %164 = tpu.dynamic_rotate %87 by %c24_i32_103 dim 1 : vector<1x512xf32>, i32 -> vector<1x512xf32>
    %c1_104 = arith.constant 1 : index
    %c7_105 = arith.constant 7 : index
    %165 = memref.load %arg10[%c1_104, %c7_105] : memref<2x25xf32, #tpu.memory_space<smem>>
    %166 = vector.broadcast %165 : f32 to vector<1x512xf32>
    %167 = arith.mulf %164, %166 : vector<1x512xf32>
    %168 = arith.addf %163, %167 : vector<1x512xf32>
    %c23_i32_106 = arith.constant 23 : i32
    %169 = tpu.dynamic_rotate %83 by %c23_i32_106 dim 1 : vector<1x512xf32>, i32 -> vector<1x512xf32>
    %c0_107 = arith.constant 0 : index
    %c8 = arith.constant 8 : index
    %170 = memref.load %arg10[%c0_107, %c8] : memref<2x25xf32, #tpu.memory_space<smem>>
    %171 = vector.broadcast %170 : f32 to vector<1x512xf32>
    %172 = arith.mulf %169, %171 : vector<1x512xf32>
    %173 = arith.addf %168, %172 : vector<1x512xf32>
    %c23_i32_108 = arith.constant 23 : i32
    %174 = tpu.dynamic_rotate %87 by %c23_i32_108 dim 1 : vector<1x512xf32>, i32 -> vector<1x512xf32>
    %c1_109 = arith.constant 1 : index
    %c8_110 = arith.constant 8 : index
    %175 = memref.load %arg10[%c1_109, %c8_110] : memref<2x25xf32, #tpu.memory_space<smem>>
    %176 = vector.broadcast %175 : f32 to vector<1x512xf32>
    %177 = arith.mulf %174, %176 : vector<1x512xf32>
    %178 = arith.addf %173, %177 : vector<1x512xf32>
    %c22_i32 = arith.constant 22 : i32
    %179 = tpu.dynamic_rotate %83 by %c22_i32 dim 1 : vector<1x512xf32>, i32 -> vector<1x512xf32>
    %c0_111 = arith.constant 0 : index
    %c9 = arith.constant 9 : index
    %180 = memref.load %arg10[%c0_111, %c9] : memref<2x25xf32, #tpu.memory_space<smem>>
    %181 = vector.broadcast %180 : f32 to vector<1x512xf32>
    %182 = arith.mulf %179, %181 : vector<1x512xf32>
    %183 = arith.addf %178, %182 : vector<1x512xf32>
    %c22_i32_112 = arith.constant 22 : i32
    %184 = tpu.dynamic_rotate %87 by %c22_i32_112 dim 1 : vector<1x512xf32>, i32 -> vector<1x512xf32>
    %c1_113 = arith.constant 1 : index
    %c9_114 = arith.constant 9 : index
    %185 = memref.load %arg10[%c1_113, %c9_114] : memref<2x25xf32, #tpu.memory_space<smem>>
    %186 = vector.broadcast %185 : f32 to vector<1x512xf32>
    %187 = arith.mulf %184, %186 : vector<1x512xf32>
    %188 = arith.addf %183, %187 : vector<1x512xf32>
    %c2_i32 = arith.constant 2 : i32
    %189 = tpu.dynamic_rotate %83 by %c2_i32 dim 1 : vector<1x512xf32>, i32 -> vector<1x512xf32>
    %c0_115 = arith.constant 0 : index
    %c10 = arith.constant 10 : index
    %190 = memref.load %arg10[%c0_115, %c10] : memref<2x25xf32, #tpu.memory_space<smem>>
    %191 = vector.broadcast %190 : f32 to vector<1x512xf32>
    %192 = arith.mulf %189, %191 : vector<1x512xf32>
    %193 = arith.addf %188, %192 : vector<1x512xf32>
    %c2_i32_116 = arith.constant 2 : i32
    %194 = tpu.dynamic_rotate %87 by %c2_i32_116 dim 1 : vector<1x512xf32>, i32 -> vector<1x512xf32>
    %c1_117 = arith.constant 1 : index
    %c10_118 = arith.constant 10 : index
    %195 = memref.load %arg10[%c1_117, %c10_118] : memref<2x25xf32, #tpu.memory_space<smem>>
    %196 = vector.broadcast %195 : f32 to vector<1x512xf32>
    %197 = arith.mulf %194, %196 : vector<1x512xf32>
    %198 = arith.addf %193, %197 : vector<1x512xf32>
    %c1_i32_119 = arith.constant 1 : i32
    %199 = tpu.dynamic_rotate %83 by %c1_i32_119 dim 1 : vector<1x512xf32>, i32 -> vector<1x512xf32>
    %c0_120 = arith.constant 0 : index
    %c11 = arith.constant 11 : index
    %200 = memref.load %arg10[%c0_120, %c11] : memref<2x25xf32, #tpu.memory_space<smem>>
    %201 = vector.broadcast %200 : f32 to vector<1x512xf32>
    %202 = arith.mulf %199, %201 : vector<1x512xf32>
    %203 = arith.addf %198, %202 : vector<1x512xf32>
    %c1_i32_121 = arith.constant 1 : i32
    %204 = tpu.dynamic_rotate %87 by %c1_i32_121 dim 1 : vector<1x512xf32>, i32 -> vector<1x512xf32>
    %c1_122 = arith.constant 1 : index
    %c11_123 = arith.constant 11 : index
    %205 = memref.load %arg10[%c1_122, %c11_123] : memref<2x25xf32, #tpu.memory_space<smem>>
    %206 = vector.broadcast %205 : f32 to vector<1x512xf32>
    %207 = arith.mulf %204, %206 : vector<1x512xf32>
    %208 = arith.addf %203, %207 : vector<1x512xf32>
    %c0_124 = arith.constant 0 : index
    %c12 = arith.constant 12 : index
    %209 = memref.load %arg10[%c0_124, %c12] : memref<2x25xf32, #tpu.memory_space<smem>>
    %210 = vector.broadcast %209 : f32 to vector<1x512xf32>
    %211 = arith.mulf %83, %210 : vector<1x512xf32>
    %212 = arith.addf %208, %211 : vector<1x512xf32>
    %c1_125 = arith.constant 1 : index
    %c12_126 = arith.constant 12 : index
    %213 = memref.load %arg10[%c1_125, %c12_126] : memref<2x25xf32, #tpu.memory_space<smem>>
    %214 = vector.broadcast %213 : f32 to vector<1x512xf32>
    %215 = arith.mulf %87, %214 : vector<1x512xf32>
    %216 = arith.addf %212, %215 : vector<1x512xf32>
    %c511_i32_127 = arith.constant 511 : i32
    %217 = tpu.dynamic_rotate %83 by %c511_i32_127 dim 1 : vector<1x512xf32>, i32 -> vector<1x512xf32>
    %c0_128 = arith.constant 0 : index
    %c13 = arith.constant 13 : index
    %218 = memref.load %arg10[%c0_128, %c13] : memref<2x25xf32, #tpu.memory_space<smem>>
    %219 = vector.broadcast %218 : f32 to vector<1x512xf32>
    %220 = arith.mulf %217, %219 : vector<1x512xf32>
    %221 = arith.addf %216, %220 : vector<1x512xf32>
    %c511_i32_129 = arith.constant 511 : i32
    %222 = tpu.dynamic_rotate %87 by %c511_i32_129 dim 1 : vector<1x512xf32>, i32 -> vector<1x512xf32>
    %c1_130 = arith.constant 1 : index
    %c13_131 = arith.constant 13 : index
    %223 = memref.load %arg10[%c1_130, %c13_131] : memref<2x25xf32, #tpu.memory_space<smem>>
    %224 = vector.broadcast %223 : f32 to vector<1x512xf32>
    %225 = arith.mulf %222, %224 : vector<1x512xf32>
    %226 = arith.addf %221, %225 : vector<1x512xf32>
    %c510_i32 = arith.constant 510 : i32
    %227 = tpu.dynamic_rotate %83 by %c510_i32 dim 1 : vector<1x512xf32>, i32 -> vector<1x512xf32>
    %c0_132 = arith.constant 0 : index
    %c14 = arith.constant 14 : index
    %228 = memref.load %arg10[%c0_132, %c14] : memref<2x25xf32, #tpu.memory_space<smem>>
    %229 = vector.broadcast %228 : f32 to vector<1x512xf32>
    %230 = arith.mulf %227, %229 : vector<1x512xf32>
    %231 = arith.addf %226, %230 : vector<1x512xf32>
    %c510_i32_133 = arith.constant 510 : i32
    %232 = tpu.dynamic_rotate %87 by %c510_i32_133 dim 1 : vector<1x512xf32>, i32 -> vector<1x512xf32>
    %c1_134 = arith.constant 1 : index
    %c14_135 = arith.constant 14 : index
    %233 = memref.load %arg10[%c1_134, %c14_135] : memref<2x25xf32, #tpu.memory_space<smem>>
    %234 = vector.broadcast %233 : f32 to vector<1x512xf32>
    %235 = arith.mulf %232, %234 : vector<1x512xf32>
    %236 = arith.addf %231, %235 : vector<1x512xf32>
    %c490_i32 = arith.constant 490 : i32
    %237 = tpu.dynamic_rotate %83 by %c490_i32 dim 1 : vector<1x512xf32>, i32 -> vector<1x512xf32>
    %c0_136 = arith.constant 0 : index
    %c15 = arith.constant 15 : index
    %238 = memref.load %arg10[%c0_136, %c15] : memref<2x25xf32, #tpu.memory_space<smem>>
    %239 = vector.broadcast %238 : f32 to vector<1x512xf32>
    %240 = arith.mulf %237, %239 : vector<1x512xf32>
    %241 = arith.addf %236, %240 : vector<1x512xf32>
    %c490_i32_137 = arith.constant 490 : i32
    %242 = tpu.dynamic_rotate %87 by %c490_i32_137 dim 1 : vector<1x512xf32>, i32 -> vector<1x512xf32>
    %c1_138 = arith.constant 1 : index
    %c15_139 = arith.constant 15 : index
    %243 = memref.load %arg10[%c1_138, %c15_139] : memref<2x25xf32, #tpu.memory_space<smem>>
    %244 = vector.broadcast %243 : f32 to vector<1x512xf32>
    %245 = arith.mulf %242, %244 : vector<1x512xf32>
    %246 = arith.addf %241, %245 : vector<1x512xf32>
    %c489_i32_140 = arith.constant 489 : i32
    %247 = tpu.dynamic_rotate %83 by %c489_i32_140 dim 1 : vector<1x512xf32>, i32 -> vector<1x512xf32>
    %c0_141 = arith.constant 0 : index
    %c16_142 = arith.constant 16 : index
    %248 = memref.load %arg10[%c0_141, %c16_142] : memref<2x25xf32, #tpu.memory_space<smem>>
    %249 = vector.broadcast %248 : f32 to vector<1x512xf32>
    %250 = arith.mulf %247, %249 : vector<1x512xf32>
    %251 = arith.addf %246, %250 : vector<1x512xf32>
    %c489_i32_143 = arith.constant 489 : i32
    %252 = tpu.dynamic_rotate %87 by %c489_i32_143 dim 1 : vector<1x512xf32>, i32 -> vector<1x512xf32>
    %c1_144 = arith.constant 1 : index
    %c16_145 = arith.constant 16 : index
    %253 = memref.load %arg10[%c1_144, %c16_145] : memref<2x25xf32, #tpu.memory_space<smem>>
    %254 = vector.broadcast %253 : f32 to vector<1x512xf32>
    %255 = arith.mulf %252, %254 : vector<1x512xf32>
    %256 = arith.addf %251, %255 : vector<1x512xf32>
    %c488_i32_146 = arith.constant 488 : i32
    %257 = tpu.dynamic_rotate %83 by %c488_i32_146 dim 1 : vector<1x512xf32>, i32 -> vector<1x512xf32>
    %c0_147 = arith.constant 0 : index
    %c17 = arith.constant 17 : index
    %258 = memref.load %arg10[%c0_147, %c17] : memref<2x25xf32, #tpu.memory_space<smem>>
    %259 = vector.broadcast %258 : f32 to vector<1x512xf32>
    %260 = arith.mulf %257, %259 : vector<1x512xf32>
    %261 = arith.addf %256, %260 : vector<1x512xf32>
    %c488_i32_148 = arith.constant 488 : i32
    %262 = tpu.dynamic_rotate %87 by %c488_i32_148 dim 1 : vector<1x512xf32>, i32 -> vector<1x512xf32>
    %c1_149 = arith.constant 1 : index
    %c17_150 = arith.constant 17 : index
    %263 = memref.load %arg10[%c1_149, %c17_150] : memref<2x25xf32, #tpu.memory_space<smem>>
    %264 = vector.broadcast %263 : f32 to vector<1x512xf32>
    %265 = arith.mulf %262, %264 : vector<1x512xf32>
    %266 = arith.addf %261, %265 : vector<1x512xf32>
    %c487_i32_151 = arith.constant 487 : i32
    %267 = tpu.dynamic_rotate %83 by %c487_i32_151 dim 1 : vector<1x512xf32>, i32 -> vector<1x512xf32>
    %c0_152 = arith.constant 0 : index
    %c18 = arith.constant 18 : index
    %268 = memref.load %arg10[%c0_152, %c18] : memref<2x25xf32, #tpu.memory_space<smem>>
    %269 = vector.broadcast %268 : f32 to vector<1x512xf32>
    %270 = arith.mulf %267, %269 : vector<1x512xf32>
    %271 = arith.addf %266, %270 : vector<1x512xf32>
    %c487_i32_153 = arith.constant 487 : i32
    %272 = tpu.dynamic_rotate %87 by %c487_i32_153 dim 1 : vector<1x512xf32>, i32 -> vector<1x512xf32>
    %c1_154 = arith.constant 1 : index
    %c18_155 = arith.constant 18 : index
    %273 = memref.load %arg10[%c1_154, %c18_155] : memref<2x25xf32, #tpu.memory_space<smem>>
    %274 = vector.broadcast %273 : f32 to vector<1x512xf32>
    %275 = arith.mulf %272, %274 : vector<1x512xf32>
    %276 = arith.addf %271, %275 : vector<1x512xf32>
    %c486_i32 = arith.constant 486 : i32
    %277 = tpu.dynamic_rotate %83 by %c486_i32 dim 1 : vector<1x512xf32>, i32 -> vector<1x512xf32>
    %c0_156 = arith.constant 0 : index
    %c19 = arith.constant 19 : index
    %278 = memref.load %arg10[%c0_156, %c19] : memref<2x25xf32, #tpu.memory_space<smem>>
    %279 = vector.broadcast %278 : f32 to vector<1x512xf32>
    %280 = arith.mulf %277, %279 : vector<1x512xf32>
    %281 = arith.addf %276, %280 : vector<1x512xf32>
    %c486_i32_157 = arith.constant 486 : i32
    %282 = tpu.dynamic_rotate %87 by %c486_i32_157 dim 1 : vector<1x512xf32>, i32 -> vector<1x512xf32>
    %c1_158 = arith.constant 1 : index
    %c19_159 = arith.constant 19 : index
    %283 = memref.load %arg10[%c1_158, %c19_159] : memref<2x25xf32, #tpu.memory_space<smem>>
    %284 = vector.broadcast %283 : f32 to vector<1x512xf32>
    %285 = arith.mulf %282, %284 : vector<1x512xf32>
    %286 = arith.addf %281, %285 : vector<1x512xf32>
    %c466_i32 = arith.constant 466 : i32
    %287 = tpu.dynamic_rotate %83 by %c466_i32 dim 1 : vector<1x512xf32>, i32 -> vector<1x512xf32>
    %c0_160 = arith.constant 0 : index
    %c20 = arith.constant 20 : index
    %288 = memref.load %arg10[%c0_160, %c20] : memref<2x25xf32, #tpu.memory_space<smem>>
    %289 = vector.broadcast %288 : f32 to vector<1x512xf32>
    %290 = arith.mulf %287, %289 : vector<1x512xf32>
    %291 = arith.addf %286, %290 : vector<1x512xf32>
    %c466_i32_161 = arith.constant 466 : i32
    %292 = tpu.dynamic_rotate %87 by %c466_i32_161 dim 1 : vector<1x512xf32>, i32 -> vector<1x512xf32>
    %c1_162 = arith.constant 1 : index
    %c20_163 = arith.constant 20 : index
    %293 = memref.load %arg10[%c1_162, %c20_163] : memref<2x25xf32, #tpu.memory_space<smem>>
    %294 = vector.broadcast %293 : f32 to vector<1x512xf32>
    %295 = arith.mulf %292, %294 : vector<1x512xf32>
    %296 = arith.addf %291, %295 : vector<1x512xf32>
    %c465_i32 = arith.constant 465 : i32
    %297 = tpu.dynamic_rotate %83 by %c465_i32 dim 1 : vector<1x512xf32>, i32 -> vector<1x512xf32>
    %c0_164 = arith.constant 0 : index
    %c21 = arith.constant 21 : index
    %298 = memref.load %arg10[%c0_164, %c21] : memref<2x25xf32, #tpu.memory_space<smem>>
    %299 = vector.broadcast %298 : f32 to vector<1x512xf32>
    %300 = arith.mulf %297, %299 : vector<1x512xf32>
    %301 = arith.addf %296, %300 : vector<1x512xf32>
    %c465_i32_165 = arith.constant 465 : i32
    %302 = tpu.dynamic_rotate %87 by %c465_i32_165 dim 1 : vector<1x512xf32>, i32 -> vector<1x512xf32>
    %c1_166 = arith.constant 1 : index
    %c21_167 = arith.constant 21 : index
    %303 = memref.load %arg10[%c1_166, %c21_167] : memref<2x25xf32, #tpu.memory_space<smem>>
    %304 = vector.broadcast %303 : f32 to vector<1x512xf32>
    %305 = arith.mulf %302, %304 : vector<1x512xf32>
    %306 = arith.addf %301, %305 : vector<1x512xf32>
    %c464_i32 = arith.constant 464 : i32
    %307 = tpu.dynamic_rotate %83 by %c464_i32 dim 1 : vector<1x512xf32>, i32 -> vector<1x512xf32>
    %c0_168 = arith.constant 0 : index
    %c22 = arith.constant 22 : index
    %308 = memref.load %arg10[%c0_168, %c22] : memref<2x25xf32, #tpu.memory_space<smem>>
    %309 = vector.broadcast %308 : f32 to vector<1x512xf32>
    %310 = arith.mulf %307, %309 : vector<1x512xf32>
    %311 = arith.addf %306, %310 : vector<1x512xf32>
    %c464_i32_169 = arith.constant 464 : i32
    %312 = tpu.dynamic_rotate %87 by %c464_i32_169 dim 1 : vector<1x512xf32>, i32 -> vector<1x512xf32>
    %c1_170 = arith.constant 1 : index
    %c22_171 = arith.constant 22 : index
    %313 = memref.load %arg10[%c1_170, %c22_171] : memref<2x25xf32, #tpu.memory_space<smem>>
    %314 = vector.broadcast %313 : f32 to vector<1x512xf32>
    %315 = arith.mulf %312, %314 : vector<1x512xf32>
    %316 = arith.addf %311, %315 : vector<1x512xf32>
    %c463_i32 = arith.constant 463 : i32
    %317 = tpu.dynamic_rotate %83 by %c463_i32 dim 1 : vector<1x512xf32>, i32 -> vector<1x512xf32>
    %c0_172 = arith.constant 0 : index
    %c23 = arith.constant 23 : index
    %318 = memref.load %arg10[%c0_172, %c23] : memref<2x25xf32, #tpu.memory_space<smem>>
    %319 = vector.broadcast %318 : f32 to vector<1x512xf32>
    %320 = arith.mulf %317, %319 : vector<1x512xf32>
    %321 = arith.addf %316, %320 : vector<1x512xf32>
    %c463_i32_173 = arith.constant 463 : i32
    %322 = tpu.dynamic_rotate %87 by %c463_i32_173 dim 1 : vector<1x512xf32>, i32 -> vector<1x512xf32>
    %c1_174 = arith.constant 1 : index
    %c23_175 = arith.constant 23 : index
    %323 = memref.load %arg10[%c1_174, %c23_175] : memref<2x25xf32, #tpu.memory_space<smem>>
    %324 = vector.broadcast %323 : f32 to vector<1x512xf32>
    %325 = arith.mulf %322, %324 : vector<1x512xf32>
    %326 = arith.addf %321, %325 : vector<1x512xf32>
    %c462_i32 = arith.constant 462 : i32
    %327 = tpu.dynamic_rotate %83 by %c462_i32 dim 1 : vector<1x512xf32>, i32 -> vector<1x512xf32>
    %c0_176 = arith.constant 0 : index
    %c24 = arith.constant 24 : index
    %328 = memref.load %arg10[%c0_176, %c24] : memref<2x25xf32, #tpu.memory_space<smem>>
    %329 = vector.broadcast %328 : f32 to vector<1x512xf32>
    %330 = arith.mulf %327, %329 : vector<1x512xf32>
    %331 = arith.addf %326, %330 : vector<1x512xf32>
    %c462_i32_177 = arith.constant 462 : i32
    %332 = tpu.dynamic_rotate %87 by %c462_i32_177 dim 1 : vector<1x512xf32>, i32 -> vector<1x512xf32>
    %c1_178 = arith.constant 1 : index
    %c24_179 = arith.constant 24 : index
    %333 = memref.load %arg10[%c1_178, %c24_179] : memref<2x25xf32, #tpu.memory_space<smem>>
    %334 = vector.broadcast %333 : f32 to vector<1x512xf32>
    %335 = arith.mulf %332, %334 : vector<1x512xf32>
    %336 = arith.addf %331, %335 : vector<1x512xf32>
    %cst_180 = arith.constant 0.000000e+00 : f32
    %337 = vector.broadcast %cst_180 : f32 to vector<1x512xf32>
    %338 = arith.subf %337, %336 : vector<1x512xf32>
    %339 = math.exp %338 : vector<1x512xf32>
    %cst_181 = arith.constant 1.000000e+00 : f32
    %340 = vector.broadcast %cst_181 : f32 to vector<1x512xf32>
    %341 = arith.addf %340, %339 : vector<1x512xf32>
    %cst_182 = arith.constant 1.000000e+00 : f32
    %342 = vector.broadcast %cst_182 : f32 to vector<1x512xf32>
    %343 = arith.divf %342, %341 : vector<1x512xf32>
    %344 = vector.broadcast %343 : vector<1x512xf32> to vector<16x512xf32>
    %345 = arith.mulf %56, %344 : vector<16x512xf32>
    %346 = tpu.concatenate %345, %81 in 0 : vector<16x512xf32>, vector<16x512xf32> -> vector<32x512xf32>
    %c0_183 = arith.constant 0 : index
    %c0_184 = arith.constant 0 : index
    %347 = vector.load %arg8[%c0_183, %c0_184] : memref<16x32xf32, #tpu.memory_space<vmem>>, vector<16x32xf32>
    %cst_185 = arith.constant dense<0.000000e+00> : vector<16x512xf32>
    %348 = tpu.matmul %347, %346, %cst_185 {dimension_numbers = #tpu.dot_dimension_numbers<[1], [0], [0], [1], [0, 0, 1, 1], [], []>} : vector<16x32xf32>, vector<32x512xf32>, vector<16x512xf32> -> vector<16x512xf32>
    %349 = arith.addf %348, %1 : vector<16x512xf32>
    %c0_186 = arith.constant 0 : index
    %c0_187 = arith.constant 0 : index
    %c0_188 = arith.constant 0 : index
    %350 = vector.load %arg11[%c0_186, %c0_187, %c0_188] : memref<1x16x512xf32, #tpu.memory_space<vmem>>, vector<1x16x512xf32>
    %351 = vector.shape_cast %350 : vector<1x16x512xf32> to vector<16x512xf32>
    %352 = vector.shape_cast %349 : vector<16x512xf32> to vector<1x16x512xf32>
    tpu.vector_store %arg11[%c0_186, %c0_187, %c0_188], %352 {strides = array<i32>} : memref<1x16x512xf32, #tpu.memory_space<vmem>>, vector<1x16x512xf32>,
    return
  }
  func.func @transform_0(%arg0: i32) -> (i32, i32, i32) {
    %c0_i32 = arith.constant 0 : i32
    %c0_i32_0 = arith.constant 0 : i32
    %c0_i32_1 = arith.constant 0 : i32
    return %arg0, %c0_i32, %c0_i32_0 : i32, i32, i32
  }
  func.func @transform_1(%arg0: i32) -> (i32, i32) {
    %c0_i32 = arith.constant 0 : i32
    %c0_i32_0 = arith.constant 0 : i32
    %c0_i32_1 = arith.constant 0 : i32
    return %c0_i32, %c0_i32_0 : i32, i32
  }
  func.func @transform_2(%arg0: i32) -> (i32, i32) {
    %c0_i32 = arith.constant 0 : i32
    %c0_i32_0 = arith.constant 0 : i32
    %c0_i32_1 = arith.constant 0 : i32
    return %c0_i32, %c0_i32_0 : i32, i32
  }
  func.func @transform_3(%arg0: i32) -> (i32, i32) {
    %c0_i32 = arith.constant 0 : i32
    %c0_i32_0 = arith.constant 0 : i32
    %c0_i32_1 = arith.constant 0 : i32
    return %c0_i32, %c0_i32_0 : i32, i32
  }
  func.func @transform_4(%arg0: i32) -> (i32, i32) {
    %c0_i32 = arith.constant 0 : i32
    %c0_i32_0 = arith.constant 0 : i32
    %c0_i32_1 = arith.constant 0 : i32
    return %c0_i32, %c0_i32_0 : i32, i32
  }
  func.func @transform_5(%arg0: i32) -> (i32, i32) {
    %c0_i32 = arith.constant 0 : i32
    %c0_i32_0 = arith.constant 0 : i32
    %c0_i32_1 = arith.constant 0 : i32
    return %c0_i32, %c0_i32_0 : i32, i32
  }
  func.func @transform_6(%arg0: i32) -> (i32, i32) {
    %c0_i32 = arith.constant 0 : i32
    %c0_i32_0 = arith.constant 0 : i32
    %c0_i32_1 = arith.constant 0 : i32
    return %c0_i32, %c0_i32_0 : i32, i32
  }
  func.func @transform_7(%arg0: i32) -> (i32, i32) {
    %c0_i32 = arith.constant 0 : i32
    %c0_i32_0 = arith.constant 0 : i32
    %c0_i32_1 = arith.constant 0 : i32
    return %c0_i32, %c0_i32_0 : i32, i32
  }
  func.func @transform_8(%arg0: i32) -> (i32, i32) {
    %c0_i32 = arith.constant 0 : i32
    %c0_i32_0 = arith.constant 0 : i32
    %c0_i32_1 = arith.constant 0 : i32
    return %c0_i32, %c0_i32_0 : i32, i32
  }
  func.func @transform_9(%arg0: i32) -> (i32, i32) {
    %c0_i32 = arith.constant 0 : i32
    %c0_i32_0 = arith.constant 0 : i32
    %c0_i32_1 = arith.constant 0 : i32
    return %c0_i32, %c0_i32_0 : i32, i32
  }
  func.func @transform_10(%arg0: i32) -> (i32, i32, i32) {
    %c0_i32 = arith.constant 0 : i32
    %c0_i32_0 = arith.constant 0 : i32
    %c0_i32_1 = arith.constant 0 : i32
    return %arg0, %c0_i32, %c0_i32_0 : i32, i32, i32
  }
}

</mosaic_0001>

<llo_original>
// kernel: tpu_custom_call.1
$region0: #{tpu_custom_call.1}
  #allocation0 [shape = 'u32[]', space=smem, size = 0x4, offset = 0x4, fixed_abs, tag = 'smem constant byte address 0x4 - core index']
  #allocation1 [shape = 'u32[144,128]{1,0:T(1,128)}', space=vmem, size = 0x12000, scoped, tag = 'internal scratch']
  #allocation2 [shape = 'f32[144,512]{1,0:T(8,128)}', space=vmem, size = 0x48000, scoped, tag = 'scratch operand']
  %s0 = inlined_call_operand.hbm [shape: f32[2,16,512], index: 0, kind: input, shape index: {}]
  %s1 = inlined_call_operand.vmem [shape: f32[16,144], index: 1, kind: input, shape index: {}]
  %s2 = inlined_call_operand.vmem [shape: f32[16,1], index: 2, kind: input, shape index: {}]
  %s3 = inlined_call_operand.vmem [shape: f32[16,144], index: 3, kind: input, shape index: {}]
  %s4 = inlined_call_operand.vmem [shape: f32[16,1], index: 4, kind: input, shape index: {}]
  %s5 = inlined_call_operand.vmem [shape: f32[16,2], index: 5, kind: input, shape index: {}]
  %s6 = inlined_call_operand.vmem [shape: f32[16,2], index: 6, kind: input, shape index: {}]
  %s7 = inlined_call_operand.vmem [shape: f32[16,32], index: 7, kind: input, shape index: {}]
  %s8 = inlined_call_operand.vmem [shape: f32[1,512], index: 8, kind: input, shape index: {}]
  %s9 = inlined_call_operand.vmem [shape: f32[2,25], index: 9, kind: input, shape index: {}]
  %s10 = inlined_call_operand.hbm [shape: f32[2,16,512], index: 10, kind: output, shape index: {}]
  %s11 = sld [smem:[#allocation0]]
  $region81: #{tpu_custom_call.1} parent=0
    _
  %s13 = ssub.s32 1, %s11
  %s14 = scalar_select 0, %s13, %s11
  $region1: #{tpu_custom_call.1} parent=0
    #allocation3 [shape = 'u8[65536]{0}', space=vmem, size = 0x10000, scoped, tag = 'input window, operand 0']
    #allocation4 [shape = 's32[2]{0}', space=sflag, size = 0x8, scoped, tag = 'scoped memory for tpu_custom_call.1']
    #allocation5 [shape = 's32[2]{0}', space=sflag, size = 0x8, scoped, tag = 'scoped memory for tpu_custom_call.1']
    #allocation6 [shape = 's32[2]{0}', space=sflag, size = 0x8, scoped, tag = 'scoped memory for tpu_custom_call.1']
    #allocation7 [shape = 'u8[1024]{0}', space=smem, size = 0x400, scoped, tag = 'input window, operand 9, single buffered']
    #allocation8 [shape = 'u8[65536]{0}', space=vmem, size = 0x10000, scoped, tag = 'output window, operand 0']
    %15 = vsyncpa [#allocation4], 0
    %s16 = scalar_lea.sflag [#allocation4], 1
    %17 = vsyncpa %s16, 0
    %18 = vsyncpa [#allocation6], 0
    %19 = vsyncpa [#allocation5], 0
    %s20 = scalar_lea.sflag [#allocation5], 1
    %21 = vsyncpa %s20, 0
    loop: start=0, step=1, limit=4
    $region2: #{tpu_custom_call.1} parent=1 // loop_pre_header
      _
    $region3: #{tpu_custom_call.1} parent=1 // loop_header
      %s23 = sphi 0, %s27
      %p24 = scmp.ge.s32.totalorder %s23, 4
      %s33 = sphi 0, %s35
      %s36 = sphi 0, %s33
      %s37 = sphi 0, %s36
      %s53 = sphi 0, %s37
      %s57 = sphi 0, %s57
      %s59 = sphi 0, %s57
      %s60 = sphi 0, %s59
      %s74 = sphi 0, %s60
      %s78 = sphi 0, %s78
      %s80 = sphi 0, %s78
      %s81 = sphi 0, %s80
      %s95 = sphi 0, %s81
      %s99 = sphi 0, %s99
      %s101 = sphi 0, %s99
      %s102 = sphi 0, %s101
      %s116 = sphi 0, %s102
      %s120 = sphi 0, %s120
      %s122 = sphi 0, %s120
      %s123 = sphi 0, %s122
      %s137 = sphi 0, %s123
      %s141 = sphi 0, %s141
      %s143 = sphi 0, %s141
      %s144 = sphi 0, %s143
      %s158 = sphi 0, %s144
      %s162 = sphi 0, %s162
      %s164 = sphi 0, %s162
      %s165 = sphi 0, %s164
      %s179 = sphi 0, %s165
      %s183 = sphi 0, %s183
      %s185 = sphi 0, %s183
      %s186 = sphi 0, %s185
      %s200 = sphi 0, %s186
      %s204 = sphi 0, %s204
      %s206 = sphi 0, %s204
      %s207 = sphi 0, %s206
      %s221 = sphi 0, %s207
      %s225 = sphi 0, %s225
      %s227 = sphi 0, %s225
      %s228 = sphi 0, %s227
      %s242 = sphi 0, %s228
      %s248 = sphi 0, %s250
      %s251 = sphi 0, %s248
      %s252 = sphi 0, %s251
      %s268 = sphi 0, %s252
    $region4: #{tpu_custom_call.1} parent=1 // loop_header_branch
      %26 = sbr.rel (%p24) target = $region8
    $region5: #{tpu_custom_call.1} parent=1 // loop_body
      %s28 = ssub.s32 %s23, 1
      %s29 = ssub.s32 %s23, 2
      %s30 = sadd.s32 %s23, 1
      %s31 = ssub.s32 %s23, %s30
      %p32 = scmp.eq.s32.totalorder %s31, 0
      %s34 = sadd.s32 %s33, 1
      %s35 = scalar_select %p32, %s33, %s34
      %p38 = pneg %p32
      %p39 = scmp.eq.s32.totalorder %s23, 1
      %p40 = por %p38, %p39
      %p41 = scmp.ne.s32.totalorder %s33, %s36
      %p42 = scmp.eq.s32.totalorder %s23, 0
      %p43 = por %p41, %p42
      %p44 = scmp.ne.s32.totalorder %s33, %s36
      %p45 = scmp.eq.s32.totalorder %s28, 1
      %p46 = por %p44, %p45
      %p47 = scmp.ne.s32.totalorder %s36, %s37
      %p48 = scmp.eq.s32.totalorder %s28, 0
      %p49 = por %p47, %p48
      %p50 = scmp.ne.s32.totalorder %s36, %s37
      %p51 = scmp.eq.s32.totalorder %s29, 1
      %p52 = por %p50, %p51
      %p54 = scmp.ne.s32.totalorder %s37, %s53
      %p55 = scmp.eq.s32.totalorder %s29, 0
      %p56 = por %p54, %p55
      %s58 = sadd.s32 %s57, 1
      %p61 = scmp.eq.s32.totalorder %s23, 1
      %p62 = scmp.ne.s32.totalorder %s57, %s59
      %p63 = scmp.eq.s32.totalorder %s23, 0
      %p64 = por %p62, %p63
      %p65 = scmp.ne.s32.totalorder %s57, %s59
      %p66 = scmp.eq.s32.totalorder %s28, 1
      %p67 = por %p65, %p66
      %p68 = scmp.ne.s32.totalorder %s59, %s60
      %p69 = scmp.eq.s32.totalorder %s28, 0
      %p70 = por %p68, %p69
      %p71 = scmp.ne.s32.totalorder %s59, %s60
      %p72 = scmp.eq.s32.totalorder %s29, 1
      %p73 = por %p71, %p72
      %p75 = scmp.ne.s32.totalorder %s60, %s74
      %p76 = scmp.eq.s32.totalorder %s29, 0
      %p77 = por %p75, %p76
      %s79 = sadd.s32 %s78, 1
      %p82 = scmp.eq.s32.totalorder %s23, 1
      %p83 = scmp.ne.s32.totalorder %s78, %s80
      %p84 = scmp.eq.s32.totalorder %s23, 0
      %p85 = por %p83, %p84
      %p86 = scmp.ne.s32.totalorder %s78, %s80
      %p87 = scmp.eq.s32.totalorder %s28, 1
      %p88 = por %p86, %p87
      %p89 = scmp.ne.s32.totalorder %s80, %s81
      %p90 = scmp.eq.s32.totalorder %s28, 0
      %p91 = por %p89, %p90
      %p92 = scmp.ne.s32.totalorder %s80, %s81
      %p93 = scmp.eq.s32.totalorder %s29, 1
      %p94 = por %p92, %p93
      %p96 = scmp.ne.s32.totalorder %s81, %s95
      %p97 = scmp.eq.s32.totalorder %s29, 0
      %p98 = por %p96, %p97
      %s100 = sadd.s32 %s99, 1
      %p103 = scmp.eq.s32.totalorder %s23, 1
      %p104 = scmp.ne.s32.totalorder %s99, %s101
      %p105 = scmp.eq.s32.totalorder %s23, 0
      %p106 = por %p104, %p105
      %p107 = scmp.ne.s32.totalorder %s99, %s101
      %p108 = scmp.eq.s32.totalorder %s28, 1
      %p109 = por %p107, %p108
      %p110 = scmp.ne.s32.totalorder %s101, %s102
      %p111 = scmp.eq.s32.totalorder %s28, 0
      %p112 = por %p110, %p111
      %p113 = scmp.ne.s32.totalorder %s101, %s102
      %p114 = scmp.eq.s32.totalorder %s29, 1
      %p115 = por %p113, %p114
      %p117 = scmp.ne.s32.totalorder %s102, %s116
      %p118 = scmp.eq.s32.totalorder %s29, 0
      %p119 = por %p117, %p118
      %s121 = sadd.s32 %s120, 1
      %p124 = scmp.eq.s32.totalorder %s23, 1
      %p125 = scmp.ne.s32.totalorder %s120, %s122
      %p126 = scmp.eq.s32.totalorder %s23, 0
      %p127 = por %p125, %p126
      %p128 = scmp.ne.s32.totalorder %s120, %s122
      %p129 = scmp.eq.s32.totalorder %s28, 1
      %p130 = por %p128, %p129
      %p131 = scmp.ne.s32.totalorder %s122, %s123
      %p132 = scmp.eq.s32.totalorder %s28, 0
      %p133 = por %p131, %p132
      %p134 = scmp.ne.s32.totalorder %s122, %s123
      %p135 = scmp.eq.s32.totalorder %s29, 1
      %p136 = por %p134, %p135
      %p138 = scmp.ne.s32.totalorder %s123, %s137
      %p139 = scmp.eq.s32.totalorder %s29, 0
      %p140 = por %p138, %p139
      %s142 = sadd.s32 %s141, 1
      %p145 = scmp.eq.s32.totalorder %s23, 1
      %p146 = scmp.ne.s32.totalorder %s141, %s143
      %p147 = scmp.eq.s32.totalorder %s23, 0
      %p148 = por %p146, %p147
      %p149 = scmp.ne.s32.totalorder %s141, %s143
      %p150 = scmp.eq.s32.totalorder %s28, 1
      %p151 = por %p149, %p150
      %p152 = scmp.ne.s32.totalorder %s143, %s144
      %p153 = scmp.eq.s32.totalorder %s28, 0
      %p154 = por %p152, %p153
      %p155 = scmp.ne.s32.totalorder %s143, %s144
      %p156 = scmp.eq.s32.totalorder %s29, 1
      %p157 = por %p155, %p156
      %p159 = scmp.ne.s32.totalorder %s144, %s158
      %p160 = scmp.eq.s32.totalorder %s29, 0
      %p161 = por %p159, %p160
      %s163 = sadd.s32 %s162, 1
      %p166 = scmp.eq.s32.totalorder %s23, 1
      %p167 = scmp.ne.s32.totalorder %s162, %s164
      %p168 = scmp.eq.s32.totalorder %s23, 0
      %p169 = por %p167, %p168
      %p170 = scmp.ne.s32.totalorder %s162, %s164
      %p171 = scmp.eq.s32.totalorder %s28, 1
      %p172 = por %p170, %p171
      %p173 = scmp.ne.s32.totalorder %s164, %s165
      %p174 = scmp.eq.s32.totalorder %s28, 0
      %p175 = por %p173, %p174
      %p176 = scmp.ne.s32.totalorder %s164, %s165
      %p177 = scmp.eq.s32.totalorder %s29, 1
      %p178 = por %p176, %p177
      %p180 = scmp.ne.s32.totalorder %s165, %s179
      %p181 = scmp.eq.s32.totalorder %s29, 0
      %p182 = por %p180, %p181
      %s184 = sadd.s32 %s183, 1
      %p187 = scmp.eq.s32.totalorder %s23, 1
      %p188 = scmp.ne.s32.totalorder %s183, %s185
      %p189 = scmp.eq.s32.totalorder %s23, 0
      %p190 = por %p188, %p189
      %p191 = scmp.ne.s32.totalorder %s183, %s185
      %p192 = scmp.eq.s32.totalorder %s28, 1
      %p193 = por %p191, %p192
      %p194 = scmp.ne.s32.totalorder %s185, %s186
      %p195 = scmp.eq.s32.totalorder %s28, 0
      %p196 = por %p194, %p195
      %p197 = scmp.ne.s32.totalorder %s185, %s186
      %p198 = scmp.eq.s32.totalorder %s29, 1
      %p199 = por %p197, %p198
      %p201 = scmp.ne.s32.totalorder %s186, %s200
      %p202 = scmp.eq.s32.totalorder %s29, 0
      %p203 = por %p201, %p202
      %s205 = sadd.s32 %s204, 1
      %p208 = scmp.eq.s32.totalorder %s23, 1
      %p209 = scmp.ne.s32.totalorder %s204, %s206
      %p210 = scmp.eq.s32.totalorder %s23, 0
      %p211 = por %p209, %p210
      %p212 = scmp.ne.s32.totalorder %s204, %s206
      %p213 = scmp.eq.s32.totalorder %s28, 1
      %p214 = por %p212, %p213
      %p215 = scmp.ne.s32.totalorder %s206, %s207
      %p216 = scmp.eq.s32.totalorder %s28, 0
      %p217 = por %p215, %p216
      %p218 = scmp.ne.s32.totalorder %s206, %s207
      %p219 = scmp.eq.s32.totalorder %s29, 1
      %p220 = por %p218, %p219
      %p222 = scmp.ne.s32.totalorder %s207, %s221
      %p223 = scmp.eq.s32.totalorder %s29, 0
      %p224 = por %p222, %p223
      %s226 = sadd.s32 %s225, 1
      %p229 = scmp.eq.s32.totalorder %s23, 1
      %p230 = scmp.ne.s32.totalorder %s225, %s227
      %p231 = scmp.eq.s32.totalorder %s23, 0
      %p232 = por %p230, %p231
      %p233 = scmp.ne.s32.totalorder %s225, %s227
      %p234 = scmp.eq.s32.totalorder %s28, 1
      %p235 = por %p233, %p234
      %p236 = scmp.ne.s32.totalorder %s227, %s228
      %p237 = scmp.eq.s32.totalorder %s28, 0
      %p238 = por %p236, %p237
      %p239 = scmp.ne.s32.totalorder %s227, %s228
      %p240 = scmp.eq.s32.totalorder %s29, 1
      %p241 = por %p239, %p240
      %p243 = scmp.ne.s32.totalorder %s228, %s242
      %p244 = scmp.eq.s32.totalorder %s29, 0
      %p245 = por %p243, %p244
      %s246 = ssub.s32 %s23, %s30
      %p247 = scmp.eq.s32.totalorder %s246, 0
      %s249 = sadd.s32 %s248, 1
      %s250 = scalar_select %p247, %s248, %s249
      %p253 = pneg %p247
      %p254 = scmp.eq.s32.totalorder %s23, 1
      %p255 = por %p253, %p254
      %p256 = scmp.ne.s32.totalorder %s248, %s251
      %p257 = scmp.eq.s32.totalorder %s23, 0
      %p258 = por %p256, %p257
      %p259 = scmp.ne.s32.totalorder %s248, %s251
      %p260 = scmp.eq.s32.totalorder %s28, 1
      %p261 = por %p259, %p260
      %p262 = scmp.ne.s32.totalorder %s251, %s252
      %p263 = scmp.eq.s32.totalorder %s28, 0
      %p264 = por %p262, %p263
      %p265 = scmp.ne.s32.totalorder %s251, %s252
      %p266 = scmp.eq.s32.totalorder %s29, 1
      %p267 = por %p265, %p266
      %p269 = scmp.ne.s32.totalorder %s252, %s268
      %p270 = scmp.eq.s32.totalorder %s29, 0
      %p271 = por %p269, %p270
      %p272 = scmp.le.s32.totalorder 1, %s23
      %p273 = scmp.lt.s32.totalorder %s23, 3
      %p274 = pnand %p272, %p273
      %p275 = pneg %p274
      // Predicated region
      $region9: #{tpu_custom_call.1} parent=5 // pred_check
        _
      $region10: #{tpu_custom_call.1} parent=5 // pred_check_branch
        %277 = sbr.rel (%p274) target = $region12
      $region11: #{tpu_custom_call.1} parent=5 // pred_region
        %s278 = ssub.s32 %s23, 1
        // Predicated region
        $region13: #{tpu_custom_call.1} parent=11 // pred_check
          %p279 = pneg %p70
        $region14: #{tpu_custom_call.1} parent=11 // pred_check_branch
          %281 = sbr.rel (%p279) target = $region16
        $region15: #{tpu_custom_call.1} parent=11 // pred_region
          _
        $region16: #{tpu_custom_call.1} parent=11 // pred_fallthru
          _
        // Predicated region
        $region17: #{tpu_custom_call.1} parent=11 // pred_check
          %p282 = pneg %p91
        $region18: #{tpu_custom_call.1} parent=11 // pred_check_branch
          %284 = sbr.rel (%p282) target = $region20
        $region19: #{tpu_custom_call.1} parent=11 // pred_region
          _
        $region20: #{tpu_custom_call.1} parent=11 // pred_fallthru
          _
        // Predicated region
        $region21: #{tpu_custom_call.1} parent=11 // pred_check
          %p285 = pneg %p112
        $region22: #{tpu_custom_call.1} parent=11 // pred_check_branch
          %287 = sbr.rel (%p285) target = $region24
        $region23: #{tpu_custom_call.1} parent=11 // pred_region
          _
        $region24: #{tpu_custom_call.1} parent=11 // pred_fallthru
          _
        // Predicated region
        $region25: #{tpu_custom_call.1} parent=11 // pred_check
          %p288 = pneg %p133
        $region26: #{tpu_custom_call.1} parent=11 // pred_check_branch
          %290 = sbr.rel (%p288) target = $region28
        $region27: #{tpu_custom_call.1} parent=11 // pred_region
          _
        $region28: #{tpu_custom_call.1} parent=11 // pred_fallthru
          _
        // Predicated region
        $region29: #{tpu_custom_call.1} parent=11 // pred_check
          %p291 = pneg %p154
        $region30: #{tpu_custom_call.1} parent=11 // pred_check_branch
          %293 = sbr.rel (%p291) target = $region32
        $region31: #{tpu_custom_call.1} parent=11 // pred_region
          _
        $region32: #{tpu_custom_call.1} parent=11 // pred_fallthru
          _
        // Predicated region
        $region33: #{tpu_custom_call.1} parent=11 // pred_check
          %p294 = pneg %p175
        $region34: #{tpu_custom_call.1} parent=11 // pred_check_branch
          %296 = sbr.rel (%p294) target = $region36
        $region35: #{tpu_custom_call.1} parent=11 // pred_region
          _
        $region36: #{tpu_custom_call.1} parent=11 // pred_fallthru
          _
        // Predicated region
        $region37: #{tpu_custom_call.1} parent=11 // pred_check
          %p297 = pneg %p196
        $region38: #{tpu_custom_call.1} parent=11 // pred_check_branch
          %299 = sbr.rel (%p297) target = $region40
        $region39: #{tpu_custom_call.1} parent=11 // pred_region
          _
        $region40: #{tpu_custom_call.1} parent=11 // pred_fallthru
          _
        // Predicated region
        $region41: #{tpu_custom_call.1} parent=11 // pred_check
          %p300 = pneg %p217
        $region42: #{tpu_custom_call.1} parent=11 // pred_check_branch
          %302 = sbr.rel (%p300) target = $region44
        $region43: #{tpu_custom_call.1} parent=11 // pred_region
          _
        $region44: #{tpu_custom_call.1} parent=11 // pred_fallthru
          _
        // Predicated region
        $region45: #{tpu_custom_call.1} parent=11 // pred_check
          %p303 = pneg %p238
        $region46: #{tpu_custom_call.1} parent=11 // pred_check_branch
          %305 = sbr.rel (%p303) target = $region48
        $region47: #{tpu_custom_call.1} parent=11 // pred_region
          %s307 = ssub.s32 32, 32
          %308 = vsyncadd [#allocation6], %s307
          %s310 = sshll.u32 %s9, 4
          %s311 = int_to_ptr.vmem [resolvable:$true] %s310
          %313 = dma.vmem_to_smem %s311, 32, [#allocation7], [#allocation6]
        $region48: #{tpu_custom_call.1} parent=11 // pred_fallthru
          _
      $region12: #{tpu_custom_call.1} parent=5 // pred_fallthru
        _
      %p314 = scmp.lt.s32.totalorder %s23, 2
      // Predicated region
      $region49: #{tpu_custom_call.1} parent=5 // pred_check
        %p315 = pneg %p314
      $region50: #{tpu_custom_call.1} parent=5 // pred_check_branch
        %317 = sbr.rel (%p315) target = $region52
      $region51: #{tpu_custom_call.1} parent=5 // pred_region
        // Predicated region
        $region53: #{tpu_custom_call.1} parent=51 // pred_check
          %p318 = pneg %p43
        $region54: #{tpu_custom_call.1} parent=51 // pred_check_branch
          %320 = sbr.rel (%p318) target = $region56
        $region55: #{tpu_custom_call.1} parent=51 // pred_region
          %s321 = sand.u32 %s33, 1
          %s322 = scalar_lea.sflag [#allocation4], %s321
          %s323 = sand.u32 %s33, 1
          %s324 = smul.addr %s323, 64
          %s325 = scalar_lea.vmem [#allocation3], %s324
          %s327 = ssub.s32 1024, 1024
          %328 = vsyncadd %s322, %s327
          %s329 = smul.addr %s23, 8
          %s330 = smul.addr %s329, 128
          %s331 = scalar_lea.hbm %s0, %s330
          %s332 = sshll.u32 %s325, 4
          %s333 = int_to_ptr.vmem [resolvable:$true] %s332
          %338 = dma.hbm_to_vmem [thread:$0]  %s331, 1024, %s333, %s322, 512, 512, 32
        $region56: #{tpu_custom_call.1} parent=51 // pred_fallthru
          _
      $region52: #{tpu_custom_call.1} parent=5 // pred_fallthru
        _
      %p339 = scmp.le.s32.totalorder 1, %s23
      %p340 = scmp.lt.s32.totalorder %s23, 3
      %p341 = pnand %p339, %p340
      %p342 = pneg %p341
      // Predicated region
      $region57: #{tpu_custom_call.1} parent=5 // pred_check
        _
      $region58: #{tpu_custom_call.1} parent=5 // pred_check_branch
        %344 = sbr.rel (%p341) target = $region60
      $region59: #{tpu_custom_call.1} parent=5 // pred_region
        %s345 = ssub.s32 %s23, 1
        %s346 = sand.u32 %s36, 1
        %s347 = scalar_lea.sflag [#allocation4], %s346
        %s348 = sand.u32 %s36, 1
        %s349 = smul.addr %s348, 64
        %s350 = scalar_lea.vmem [#allocation3], %s349
        // Predicated region
        $region61: #{tpu_custom_call.1} parent=59 // pred_check
          %p351 = pneg %p49
        $region62: #{tpu_custom_call.1} parent=59 // pred_check_branch
          %353 = sbr.rel (%p351) target = $region64
        $region63: #{tpu_custom_call.1} parent=59 // pred_region
          %354 = dma.done %s347, 1024
        $region64: #{tpu_custom_call.1} parent=59 // pred_fallthru
          _
        // Predicated region
        $region65: #{tpu_custom_call.1} parent=59 // pred_check
          %p355 = pneg %p238
        $region66: #{tpu_custom_call.1} parent=59 // pred_check_branch
          %357 = sbr.rel (%p355) target = $region68
        $region67: #{tpu_custom_call.1} parent=59 // pred_region
          %358 = dma.done [#allocation6], 32
        $region68: #{tpu_custom_call.1} parent=59 // pred_fallthru
          _
        %359 = sfence
        %s360 = sand.u32 %s36, 1
        %s361 = scalar_lea.sflag [#allocation4], %s360
        %s362 = sand.u32 %s36, 1
        %s363 = smul.addr %s362, 64
        %s364 = scalar_lea.vmem [#allocation3], %s363
        %p365 = pneg %p49
        %p366 = pneg %p46
        %p367 = pneg %p70
        %p368 = pneg %p67
        %p369 = pneg %p91
        %p370 = pneg %p88
        %p371 = pneg %p112
        %p372 = pneg %p109
        %p373 = pneg %p133
        %p374 = pneg %p130
        %p375 = pneg %p154
        %p376 = pneg %p151
        %p377 = pneg %p175
        %p378 = pneg %p172
        %p379 = pneg %p196
        %p380 = pneg %p193
        %p381 = pneg %p217
        %p382 = pneg %p214
        %p383 = pneg %p238
        %p384 = pneg %p235
        %p385 = pneg %p264
        %p386 = pneg %p261
        %s387 = sand.u32 %s251, 1
        %s388 = scalar_lea.sflag [#allocation5], %s387
        %s389 = sand.u32 %s251, 1
        %s390 = smul.addr %s389, 64
        %s391 = scalar_lea.vmem [#allocation8], %s390
        %v392 = vld [vmem:[%s350] sm:$0xff]
        %v393 = vld [vmem:[%s350 + $0x8] sm:$0xff]
        %v394 = vld [vmem:[%s350 + $0x10] sm:$0xff]
        %v395 = vld [vmem:[%s350 + $0x18] sm:$0xff]
        %v396 = vld [vmem:[%s350 + $0x20] sm:$0xff]
        %v397 = vld [vmem:[%s350 + $0x28] sm:$0xff]
        %v398 = vld [vmem:[%s350 + $0x30] sm:$0xff]
        %v399 = vld [vmem:[%s350 + $0x38] sm:$0xff]
        %v400 = vld [vmem:[%s8] sm:$0xf]
        %401 = vrot.lane.b32.xlu0 %v392, 25
        %v402 = vpop.permute.xlu0 %401
        %403 = vrot.lane.b32.xlu0 %v396, 25
        %v404 = vpop.permute.xlu0 %403
        %405 = vrot.lane.b32.xlu0 %v393, 25
        %v406 = vpop.permute.xlu0 %405
        %407 = vrot.lane.b32.xlu0 %v397, 25
        %v408 = vpop.permute.xlu0 %407
        %409 = vrot.lane.b32.xlu0 %v394, 25
        %v410 = vpop.permute.xlu0 %409
        %411 = vrot.lane.b32.xlu0 %v398, 25
        %v412 = vpop.permute.xlu0 %411
        %413 = vrot.lane.b32.xlu0 %v395, 25
        %v414 = vpop.permute.xlu0 %413
        %415 = vrot.lane.b32.xlu0 %v399, 25
        %v416 = vpop.permute.xlu0 %415
        %v417 = vlaneseq
        %v418 = vand.u32 %v417, 127
        %vm419 = vcmp.lt.s32.totalorder %v418, 25
        %v420 = vsel %vm419, %v410, %v414
        %v421 = vsel %vm419, %v412, %v416
        %v422 = vsel %vm419, %v406, %v410
        %v423 = vsel %vm419, %v408, %v412
        %v424 = vsel %vm419, %v402, %v406
        %v425 = vsel %vm419, %v404, %v408
        %v426 = vsel %vm419, %v414, %v402
        %v427 = vsel %vm419, %v416, %v404
        %428 = vst [vmem:[#allocation2] sm:$0xff] %v426
        %429 = vst [vmem:[#allocation2 + $0x8] sm:$0xff] %v424
        %430 = vst [vmem:[#allocation2 + $0x10] sm:$0xff] %v422
        %431 = vst [vmem:[#allocation2 + $0x18] sm:$0xff] %v420
        %432 = vst [vmem:[#allocation2 + $0x20] sm:$0xff] %v427
        %433 = vst [vmem:[#allocation2 + $0x28] sm:$0xff] %v425
        %434 = vst [vmem:[#allocation2 + $0x30] sm:$0xff] %v423
        %435 = vst [vmem:[#allocation2 + $0x38] sm:$0xff] %v421
        %436 = vrot.lane.b32.xlu0 %v392, 24
        %v437 = vpop.permute.xlu0 %436
        %438 = vrot.lane.b32.xlu0 %v396, 24
        %v439 = vpop.permute.xlu0 %438
        %440 = vrot.lane.b32.xlu0 %v393, 24
        %v441 = vpop.permute.xlu0 %440
        %442 = vrot.lane.b32.xlu0 %v397, 24
        %v443 = vpop.permute.xlu0 %442
        %444 = vrot.lane.b32.xlu0 %v394, 24
        %v445 = vpop.permute.xlu0 %444
        %446 = vrot.lane.b32.xlu0 %v398, 24
        %v447 = vpop.permute.xlu0 %446
        %448 = vrot.lane.b32.xlu0 %v395, 24
        %v449 = vpop.permute.xlu0 %448
        %450 = vrot.lane.b32.xlu0 %v399, 24
        %v451 = vpop.permute.xlu0 %450
        %vm452 = vcmp.lt.s32.totalorder %v418, 24
        %v453 = vsel %vm452, %v445, %v449
        %v454 = vsel %vm452, %v447, %v451
        %v455 = vsel %vm452, %v441, %v445
        %v456 = vsel %vm452, %v443, %v447
        %v457 = vsel %vm452, %v437, %v441
        %v458 = vsel %vm452, %v439, %v443
        %v459 = vsel %vm452, %v449, %v437
        %v460 = vsel %vm452, %v451, %v439
        %461 = vst [vmem:[#allocation2 + $0x40] sm:$0xff] %v459
        %462 = vst [vmem:[#allocation2 + $0x48] sm:$0xff] %v457
        %463 = vst [vmem:[#allocation2 + $0x50] sm:$0xff] %v455
        %464 = vst [vmem:[#allocation2 + $0x58] sm:$0xff] %v453
        %465 = vst [vmem:[#allocation2 + $0x60] sm:$0xff] %v460
        %466 = vst [vmem:[#allocation2 + $0x68] sm:$0xff] %v458
        %467 = vst [vmem:[#allocation2 + $0x70] sm:$0xff] %v456
        %468 = vst [vmem:[#allocation2 + $0x78] sm:$0xff] %v454
        %469 = vrot.lane.b32.xlu0 %v392, 23
        %v470 = vpop.permute.xlu0 %469
        %471 = vrot.lane.b32.xlu0 %v396, 23
        %v472 = vpop.permute.xlu0 %471
        %473 = vrot.lane.b32.xlu0 %v393, 23
        %v474 = vpop.permute.xlu0 %473
        %475 = vrot.lane.b32.xlu0 %v397, 23
        %v476 = vpop.permute.xlu0 %475
        %477 = vrot.lane.b32.xlu0 %v394, 23
        %v478 = vpop.permute.xlu0 %477
        %479 = vrot.lane.b32.xlu0 %v398, 23
        %v480 = vpop.permute.xlu0 %479
        %481 = vrot.lane.b32.xlu0 %v395, 23
        %v482 = vpop.permute.xlu0 %481
        %483 = vrot.lane.b32.xlu0 %v399, 23
        %v484 = vpop.permute.xlu0 %483
        %vm485 = vcmp.lt.s32.totalorder %v418, 23
        %v486 = vsel %vm485, %v478, %v482
        %v487 = vsel %vm485, %v480, %v484
        %v488 = vsel %vm485, %v474, %v478
        %v489 = vsel %vm485, %v476, %v480
        %v490 = vsel %vm485, %v470, %v474
        %v491 = vsel %vm485, %v472, %v476
        %v492 = vsel %vm485, %v482, %v470
        %v493 = vsel %vm485, %v484, %v472
        %494 = vst [vmem:[#allocation2 + $0x80] sm:$0xff] %v492
        %495 = vst [vmem:[#allocation2 + $0x88] sm:$0xff] %v490
        %496 = vst [vmem:[#allocation2 + $0x90] sm:$0xff] %v488
        %497 = vst [vmem:[#allocation2 + $0x98] sm:$0xff] %v486
        %498 = vst [vmem:[#allocation2 + $0xa0] sm:$0xff] %v493
        %499 = vst [vmem:[#allocation2 + $0xa8] sm:$0xff] %v491
        %500 = vst [vmem:[#allocation2 + $0xb0] sm:$0xff] %v489
        %501 = vst [vmem:[#allocation2 + $0xb8] sm:$0xff] %v487
        %502 = vrot.lane.b32.xlu0 %v392, 1
        %v503 = vpop.permute.xlu0 %502
        %504 = vrot.lane.b32.xlu0 %v396, 1
        %v505 = vpop.permute.xlu0 %504
        %506 = vrot.lane.b32.xlu0 %v393, 1
        %v507 = vpop.permute.xlu0 %506
        %508 = vrot.lane.b32.xlu0 %v397, 1
        %v509 = vpop.permute.xlu0 %508
        %510 = vrot.lane.b32.xlu0 %v394, 1
        %v511 = vpop.permute.xlu0 %510
        %512 = vrot.lane.b32.xlu0 %v398, 1
        %v513 = vpop.permute.xlu0 %512
        %514 = vrot.lane.b32.xlu0 %v395, 1
        %v515 = vpop.permute.xlu0 %514
        %516 = vrot.lane.b32.xlu0 %v399, 1
        %v517 = vpop.permute.xlu0 %516
        %vm518 = vcmp.lt.s32.totalorder %v418, 1
        %v519 = vsel %vm518, %v511, %v515
        %v520 = vsel %vm518, %v513, %v517
        %v521 = vsel %vm518, %v507, %v511
        %v522 = vsel %vm518, %v509, %v513
        %v523 = vsel %vm518, %v503, %v507
        %v524 = vsel %vm518, %v505, %v509
        %v525 = vsel %vm518, %v515, %v503
        %v526 = vsel %vm518, %v517, %v505
        %527 = vst [vmem:[#allocation2 + $0xc0] sm:$0xff] %v525
        %528 = vst [vmem:[#allocation2 + $0xc8] sm:$0xff] %v523
        %529 = vst [vmem:[#allocation2 + $0xd0] sm:$0xff] %v521
        %530 = vst [vmem:[#allocation2 + $0xd8] sm:$0xff] %v519
        %531 = vst [vmem:[#allocation2 + $0xe0] sm:$0xff] %v526
        %532 = vst [vmem:[#allocation2 + $0xe8] sm:$0xff] %v524
        %533 = vst [vmem:[#allocation2 + $0xf0] sm:$0xff] %v522
        %534 = vst [vmem:[#allocation2 + $0xf8] sm:$0xff] %v520
        %535 = vst [vmem:[#allocation2 + $0x100] sm:$0xff] %v392
        %536 = vst [vmem:[#allocation2 + $0x108] sm:$0xff] %v393
        %537 = vst [vmem:[#allocation2 + $0x110] sm:$0xff] %v394
        %538 = vst [vmem:[#allocation2 + $0x118] sm:$0xff] %v395
        %539 = vst [vmem:[#allocation2 + $0x120] sm:$0xff] %v396
        %540 = vst [vmem:[#allocation2 + $0x128] sm:$0xff] %v397
        %541 = vst [vmem:[#allocation2 + $0x130] sm:$0xff] %v398
        %542 = vst [vmem:[#allocation2 + $0x138] sm:$0xff] %v399
        %543 = vrot.lane.b32.xlu0 %v392, 127
        %v544 = vpop.permute.xlu0 %543
        %545 = vrot.lane.b32.xlu0 %v396, 127
        %v546 = vpop.permute.xlu0 %545
        %547 = vrot.lane.b32.xlu0 %v393, 127
        %v548 = vpop.permute.xlu0 %547
        %549 = vrot.lane.b32.xlu0 %v397, 127
        %v550 = vpop.permute.xlu0 %549
        %551 = vrot.lane.b32.xlu0 %v394, 127
        %v552 = vpop.permute.xlu0 %551
        %553 = vrot.lane.b32.xlu0 %v398, 127
        %v554 = vpop.permute.xlu0 %553
        %555 = vrot.lane.b32.xlu0 %v395, 127
        %v556 = vpop.permute.xlu0 %555
        %557 = vrot.lane.b32.xlu0 %v399, 127
        %v558 = vpop.permute.xlu0 %557
        %vm559 = vcmp.lt.s32.totalorder %v418, 127
        %v560 = vsel %vm559, %v552, %v556
        %v561 = vsel %vm559, %v554, %v558
        %v562 = vsel %vm559, %v548, %v552
        %v563 = vsel %vm559, %v550, %v554
        %v564 = vsel %vm559, %v544, %v548
        %v565 = vsel %vm559, %v546, %v550
        %v566 = vsel %vm559, %v556, %v544
        %v567 = vsel %vm559, %v558, %v546
        %568 = vst [vmem:[#allocation2 + $0x140] sm:$0xff] %v564
        %569 = vst [vmem:[#allocation2 + $0x148] sm:$0xff] %v562
        %570 = vst [vmem:[#allocation2 + $0x150] sm:$0xff] %v560
        %571 = vst [vmem:[#allocation2 + $0x158] sm:$0xff] %v566
        %572 = vst [vmem:[#allocation2 + $0x160] sm:$0xff] %v565
        %573 = vst [vmem:[#allocation2 + $0x168] sm:$0xff] %v563
        %574 = vst [vmem:[#allocation2 + $0x170] sm:$0xff] %v561
        %575 = vst [vmem:[#allocation2 + $0x178] sm:$0xff] %v567
        %576 = vrot.lane.b32.xlu0 %v392, 105
        %v577 = vpop.permute.xlu0 %576
        %578 = vrot.lane.b32.xlu0 %v396, 105
        %v579 = vpop.permute.xlu0 %578
        %580 = vrot.lane.b32.xlu0 %v393, 105
        %v581 = vpop.permute.xlu0 %580
        %582 = vrot.lane.b32.xlu0 %v397, 105
        %v583 = vpop.permute.xlu0 %582
        %584 = vrot.lane.b32.xlu0 %v394, 105
        %v585 = vpop.permute.xlu0 %584
        %586 = vrot.lane.b32.xlu0 %v398, 105
        %v587 = vpop.permute.xlu0 %586
        %588 = vrot.lane.b32.xlu0 %v395, 105
        %v589 = vpop.permute.xlu0 %588
        %590 = vrot.lane.b32.xlu0 %v399, 105
        %v591 = vpop.permute.xlu0 %590
        %vm592 = vcmp.lt.s32.totalorder %v418, 105
        %v593 = vsel %vm592, %v585, %v589
        %v594 = vsel %vm592, %v587, %v591
        %v595 = vsel %vm592, %v581, %v585
        %v596 = vsel %vm592, %v583, %v587
        %v597 = vsel %vm592, %v577, %v581
        %v598 = vsel %vm592, %v579, %v583
        %v599 = vsel %vm592, %v589, %v577
        %v600 = vsel %vm592, %v591, %v579
        %601 = vst [vmem:[#allocation2 + $0x180] sm:$0xff] %v597
        %602 = vst [vmem:[#allocation2 + $0x188] sm:$0xff] %v595
        %603 = vst [vmem:[#allocation2 + $0x190] sm:$0xff] %v593
        %604 = vst [vmem:[#allocation2 + $0x198] sm:$0xff] %v599
        %605 = vst [vmem:[#allocation2 + $0x1a0] sm:$0xff] %v598
        %606 = vst [vmem:[#allocation2 + $0x1a8] sm:$0xff] %v596
        %607 = vst [vmem:[#allocation2 + $0x1b0] sm:$0xff] %v594
        %608 = vst [vmem:[#allocation2 + $0x1b8] sm:$0xff] %v600
        %609 = vrot.lane.b32.xlu0 %v392, 104
        %v610 = vpop.permute.xlu0 %609
        %611 = vrot.lane.b32.xlu0 %v396, 104
        %v612 = vpop.permute.xlu0 %611
        %613 = vrot.lane.b32.xlu0 %v393, 104
        %v614 = vpop.permute.xlu0 %613
        %615 = vrot.lane.b32.xlu0 %v397, 104
        %v616 = vpop.permute.xlu0 %615
        %617 = vrot.lane.b32.xlu0 %v394, 104
        %v618 = vpop.permute.xlu0 %617
        %619 = vrot.lane.b32.xlu0 %v398, 104
        %v620 = vpop.permute.xlu0 %619
        %621 = vrot.lane.b32.xlu0 %v395, 104
        %v622 = vpop.permute.xlu0 %621
        %623 = vrot.lane.b32.xlu0 %v399, 104
        %v624 = vpop.permute.xlu0 %623
        %vm625 = vcmp.lt.s32.totalorder %v418, 104
        %v626 = vsel %vm625, %v618, %v622
        %v627 = vsel %vm625, %v620, %v624
        %v628 = vsel %vm625, %v614, %v618
        %v629 = vsel %vm625, %v616, %v620
        %v630 = vsel %vm625, %v610, %v614
        %v631 = vsel %vm625, %v612, %v616
        %v632 = vsel %vm625, %v622, %v610
        %v633 = vsel %vm625, %v624, %v612
        %634 = vst [vmem:[#allocation2 + $0x1c0] sm:$0xff] %v630
        %635 = vst [vmem:[#allocation2 + $0x1c8] sm:$0xff] %v628
        %636 = vst [vmem:[#allocation2 + $0x1d0] sm:$0xff] %v626
        %637 = vst [vmem:[#allocation2 + $0x1d8] sm:$0xff] %v632
        %638 = vst [vmem:[#allocation2 + $0x1e0] sm:$0xff] %v631
        %639 = vst [vmem:[#allocation2 + $0x1e8] sm:$0xff] %v629
        %640 = vst [vmem:[#allocation2 + $0x1f0] sm:$0xff] %v627
        %641 = vst [vmem:[#allocation2 + $0x1f8] sm:$0xff] %v633
        %642 = vrot.lane.b32.xlu0 %v392, 103
        %v643 = vpop.permute.xlu0 %642
        %644 = vrot.lane.b32.xlu0 %v396, 103
        %v645 = vpop.permute.xlu0 %644
        %646 = vrot.lane.b32.xlu0 %v393, 103
        %v647 = vpop.permute.xlu0 %646
        %648 = vrot.lane.b32.xlu0 %v397, 103
        %v649 = vpop.permute.xlu0 %648
        %650 = vrot.lane.b32.xlu0 %v394, 103
        %v651 = vpop.permute.xlu0 %650
        %652 = vrot.lane.b32.xlu0 %v398, 103
        %v653 = vpop.permute.xlu0 %652
        %654 = vrot.lane.b32.xlu0 %v395, 103
        %v655 = vpop.permute.xlu0 %654
        %656 = vrot.lane.b32.xlu0 %v399, 103
        %v657 = vpop.permute.xlu0 %656
        %vm658 = vcmp.lt.s32.totalorder %v418, 103
        %v659 = vsel %vm658, %v651, %v655
        %v660 = vsel %vm658, %v653, %v657
        %v661 = vsel %vm658, %v647, %v651
        %v662 = vsel %vm658, %v649, %v653
        %v663 = vsel %vm658, %v643, %v647
        %v664 = vsel %vm658, %v645, %v649
        %v665 = vsel %vm658, %v655, %v643
        %v666 = vsel %vm658, %v657, %v645
        %667 = vst [vmem:[#allocation2 + $0x200] sm:$0xff] %v663
        %668 = vst [vmem:[#allocation2 + $0x208] sm:$0xff] %v661
        %669 = vst [vmem:[#allocation2 + $0x210] sm:$0xff] %v659
        %670 = vst [vmem:[#allocation2 + $0x218] sm:$0xff] %v665
        %671 = vst [vmem:[#allocation2 + $0x220] sm:$0xff] %v664
        %672 = vst [vmem:[#allocation2 + $0x228] sm:$0xff] %v662
        %673 = vst [vmem:[#allocation2 + $0x230] sm:$0xff] %v660
        %674 = vst [vmem:[#allocation2 + $0x238] sm:$0xff] %v666
        %v675 = vld [vmem:[%s1] sm:$0xff]
        %v676 = vld [vmem:[%s1 + $0x8] sm:$0xff]
        %v677 = vld [vmem:[%s1 + $0x10] sm:$0xff]
        %v678 = vld [vmem:[%s1 + $0x18] sm:$0xff]
        %v679 = vld [vmem:[#allocation2] sm:$0xff]
        %v680 = vld [vmem:[#allocation2 + $0x8] sm:$0xff]
        %v681 = vld [vmem:[#allocation2 + $0x10] sm:$0xff]
        %v682 = vld [vmem:[#allocation2 + $0x18] sm:$0xff]
        %v683 = vld [vmem:[#allocation2 + $0x20] sm:$0xff]
        %v684 = vld [vmem:[#allocation2 + $0x28] sm:$0xff]
        %v685 = vld [vmem:[#allocation2 + $0x30] sm:$0xff]
        %v686 = vld [vmem:[#allocation2 + $0x38] sm:$0xff]
        %v687 = vld [vmem:[#allocation2 + $0x40] sm:$0xff]
        %v688 = vld [vmem:[#allocation2 + $0x48] sm:$0xff]
        %v689 = vld [vmem:[#allocation2 + $0x50] sm:$0xff]
        %v690 = vld [vmem:[#allocation2 + $0x58] sm:$0xff]
        %v691 = vld [vmem:[#allocation2 + $0x60] sm:$0xff]
        %v692 = vld [vmem:[#allocation2 + $0x68] sm:$0xff]
        %v693 = vld [vmem:[#allocation2 + $0x70] sm:$0xff]
        %v694 = vld [vmem:[#allocation2 + $0x78] sm:$0xff]
        %v695 = vld [vmem:[#allocation2 + $0x80] sm:$0xff]
        %v696 = vld [vmem:[#allocation2 + $0x88] sm:$0xff]
        %v697 = vld [vmem:[#allocation2 + $0x90] sm:$0xff]
        %v698 = vld [vmem:[#allocation2 + $0x98] sm:$0xff]
        %v699 = vld [vmem:[#allocation2 + $0xa0] sm:$0xff]
        %v700 = vld [vmem:[#allocation2 + $0xa8] sm:$0xff]
        %v701 = vld [vmem:[#allocation2 + $0xb0] sm:$0xff]
        %v702 = vld [vmem:[#allocation2 + $0xb8] sm:$0xff]
        %v703 = vld [vmem:[#allocation2 + $0xc0] sm:$0xff]
        %v704 = vld [vmem:[#allocation2 + $0xc8] sm:$0xff]
        %v705 = vld [vmem:[#allocation2 + $0xd0] sm:$0xff]
        %v706 = vld [vmem:[#allocation2 + $0xd8] sm:$0xff]
        %v707 = vld [vmem:[#allocation2 + $0xe0] sm:$0xff]
        %v708 = vld [vmem:[#allocation2 + $0xe8] sm:$0xff]
        %v709 = vld [vmem:[#allocation2 + $0xf0] sm:$0xff]
        %v710 = vld [vmem:[#allocation2 + $0xf8] sm:$0xff]
        %v711 = vld [vmem:[#allocation2 + $0x100] sm:$0xff]
        %v712 = vld [vmem:[#allocation2 + $0x108] sm:$0xff]
        %v713 = vld [vmem:[#allocation2 + $0x110] sm:$0xff]
        %v714 = vld [vmem:[#allocation2 + $0x118] sm:$0xff]
        %v715 = vld [vmem:[#allocation2 + $0x120] sm:$0xff]
        %v716 = vld [vmem:[#allocation2 + $0x128] sm:$0xff]
        %v717 = vld [vmem:[#allocation2 + $0x130] sm:$0xff]
        %v718 = vld [vmem:[#allocation2 + $0x138] sm:$0xff]
        %v719 = vld [vmem:[#allocation2 + $0x140] sm:$0xff]
        %v720 = vld [vmem:[#allocation2 + $0x148] sm:$0xff]
        %v721 = vld [vmem:[#allocation2 + $0x150] sm:$0xff]
        %v722 = vld [vmem:[#allocation2 + $0x158] sm:$0xff]
        %v723 = vld [vmem:[#allocation2 + $0x160] sm:$0xff]
        %v724 = vld [vmem:[#allocation2 + $0x168] sm:$0xff]
        %v725 = vld [vmem:[#allocation2 + $0x170] sm:$0xff]
        %v726 = vld [vmem:[#allocation2 + $0x178] sm:$0xff]
        %v727 = vld [vmem:[#allocation2 + $0x180] sm:$0xff]
        %v728 = vld [vmem:[#allocation2 + $0x188] sm:$0xff]
        %v729 = vld [vmem:[#allocation2 + $0x190] sm:$0xff]
        %v730 = vld [vmem:[#allocation2 + $0x198] sm:$0xff]
        %v731 = vld [vmem:[#allocation2 + $0x1a0] sm:$0xff]
        %v732 = vld [vmem:[#allocation2 + $0x1a8] sm:$0xff]
        %v733 = vld [vmem:[#allocation2 + $0x1b0] sm:$0xff]
        %v734 = vld [vmem:[#allocation2 + $0x1b8] sm:$0xff]
        %v735 = vld [vmem:[#allocation2 + $0x1c0] sm:$0xff]
        %v736 = vld [vmem:[#allocation2 + $0x1c8] sm:$0xff]
        %v737 = vld [vmem:[#allocation2 + $0x1d0] sm:$0xff]
        %v738 = vld [vmem:[#allocation2 + $0x1d8] sm:$0xff]
        %v739 = vld [vmem:[#allocation2 + $0x1e0] sm:$0xff]
        %v740 = vld [vmem:[#allocation2 + $0x1e8] sm:$0xff]
        %v741 = vld [vmem:[#allocation2 + $0x1f0] sm:$0xff]
        %v742 = vld [vmem:[#allocation2 + $0x1f8] sm:$0xff]
        %v743 = vld [vmem:[#allocation2 + $0x200] sm:$0xff]
        %v744 = vld [vmem:[#allocation2 + $0x208] sm:$0xff]
        %v745 = vld [vmem:[#allocation2 + $0x210] sm:$0xff]
        %v746 = vld [vmem:[#allocation2 + $0x218] sm:$0xff]
        %v747 = vld [vmem:[#allocation2 + $0x220] sm:$0xff]
        %v748 = vld [vmem:[#allocation2 + $0x228] sm:$0xff]
        %v749 = vld [vmem:[#allocation2 + $0x230] sm:$0xff]
        %v750 = vld [vmem:[#allocation2 + $0x238] sm:$0xff]
        %v751 = vld [vmem:[%s2] sm:$0xff]
        %v752 = vld [vmem:[%s2 + $0x8] sm:$0xff]
        %754 = vset.pattern.permute.xlu0 0
        %755 = vperm.xlu0 %754, %v751
        %v756 = vpop.permute.xlu0 %755
        %759 = vset.pattern.permute.xlu0 0
        %760 = vperm.xlu0 %759, %v752
        %v761 = vpop.permute.xlu0 %760
        %vm763 = vcmask 130048
        %v765 = vsel %vm763, %v676, 0
        %v768 = vsel %vm763, %v678, 0
        %770 = vmatprep.subr.mxu0 %v680
        %771 = vmatpush1.msra.mxu0 %v679
        %772 = vmatprep.subr.mxu0 %v684
        %773 = vmatpush1.msra.mxu0 %v683
        %774 = vmatprep.subr.mxu0 %v688
        %775 = vmatpush1.msra.mxu0 %v687
        %776 = vmatprep.subr.mxu0 %v692
        %777 = vmatpush1.msra.mxu0 %v691
        %778 = vmatprep.subr.mxu0 %v696
        %779 = vmatpush1.msra.mxu0 %v695
        %780 = vmatprep.subr.mxu0 %v700
        %781 = vmatpush1.msra.mxu0 %v699
        %782 = vmatprep.subr.mxu0 %v704
        %783 = vmatpush1.msra.mxu0 %v703
        %784 = vmatprep.subr.mxu0 %v708
        %785 = vmatpush1.msra.mxu0 %v707
        %786 = vmatprep.subr.mxu0 %v712
        %787 = vmatpush1.msra.mxu0 %v711
        %788 = vmatprep.subr.mxu0 %v716
        %789 = vmatpush1.msra.mxu0 %v715
        %790 = vmatprep.subr.mxu0 %v720
        %791 = vmatpush1.msra.mxu0 %v719
        %792 = vmatprep.subr.mxu0 %v724
        %793 = vmatpush1.msra.mxu0 %v723
        %794 = vmatprep.subr.mxu0 %v728
        %795 = vmatpush1.msra.mxu0 %v727
        %796 = vmatprep.subr.mxu0 %v732
        %797 = vmatpush1.msra.mxu0 %v731
        %798 = vmatprep.subr.mxu0 %v736
        %799 = vmatpush1.msra.mxu0 %v735
        %800 = vmatprep.subr.mxu0 %v740
        %801 = vmatpush1.msra.mxu0 %v739
        %802 = vmatprep.subr.mxu0 %v744
        %803 = vmatpush1.msra.mxu0 %v743
        %804 = vmatprep.subr.mxu0 %v748
        %805 = vmatpush1.msra.mxu0 %v747
        %806 = vmatprep.subr.mxu0 0.0
        %807 = vmatpush1.msra.mxu0 0.0
        %808 = vmatprep.subr.mxu0 0.0
        %809 = vmatpush1.msra.mxu0 0.0
        %810 = vmatprep.subr.mxu0 0.0
        %811 = vmatpush1.msra.mxu0 0.0
        %812 = vmatprep.subr.mxu0 0.0
        %813 = vmatpush1.msra.mxu0 0.0
        %814 = vmatprep.subr.mxu0 0.0
        %815 = vmatpush1.msra.mxu0 0.0
        %816 = vmatprep.subr.mxu0 0.0
        %817 = vmatpush1.msra.mxu0 0.0
        %818 = vmatprep.subr.mxu0 0.0
        %819 = vmatpush1.msra.mxu0 0.0
        %820 = vmatprep.subr.mxu0 0.0
        %821 = vmatpush1.msra.mxu0 0.0
        %822 = vmatprep.subr.mxu0 0.0
        %823 = vmatpush1.msra.mxu0 0.0
        %824 = vmatprep.subr.mxu0 0.0
        %825 = vmatpush1.msra.mxu0 0.0
        %826 = vmatprep.subr.mxu0 0.0
        %827 = vmatpush1.msra.mxu0 0.0
        %828 = vmatprep.subr.mxu0 0.0
        %829 = vmatpush1.msra.mxu0 0.0
        %830 = vmatprep.subr.mxu0 0.0
        %831 = vmatpush1.msra.mxu0 0.0
        %832 = vmatprep.subr.mxu0 0.0
        %833 = vmatpush1.msra.mxu0 0.0
        %834 = vmatprep.mubr.f32.mxu0 %v765
        %835 = vmatmul.mubr.f32.gmra.mrb[0].mxu0 %v675
        %v836 = vpop.f32.mrb[0].mxu0
        %v837 = vadd.f32 %v756, %v836
        %v838 = vpop.f32.mrb[0].mxu0
        %v839 = vadd.f32 %v756, %v838
        %840 = vmatprep.mubr.f32.mxu0 %v768
        %841 = vmatmul.mubr.f32.gmra.mrb[0].mxu0 %v677
        %v842 = vpop.f32.mrb[0].mxu0
        %v843 = vadd.f32 %v761, %v842
        %v844 = vpop.f32.mrb[0].mxu0
        %v845 = vadd.f32 %v761, %v844
        %846 = vdwg.mxu0
        %847 = vmatprep.subr.mxu0 %v682
        %848 = vmatpush1.msra.mxu0 %v681
        %849 = vmatprep.subr.mxu0 %v686
        %850 = vmatpush1.msra.mxu0 %v685
        %851 = vmatprep.subr.mxu0 %v690
        %852 = vmatpush1.msra.mxu0 %v689
        %853 = vmatprep.subr.mxu0 %v694
        %854 = vmatpush1.msra.mxu0 %v693
        %855 = vmatprep.subr.mxu0 %v698
        %856 = vmatpush1.msra.mxu0 %v697
        %857 = vmatprep.subr.mxu0 %v702
        %858 = vmatpush1.msra.mxu0 %v701
        %859 = vmatprep.subr.mxu0 %v706
        %860 = vmatpush1.msra.mxu0 %v705
        %861 = vmatprep.subr.mxu0 %v710
        %862 = vmatpush1.msra.mxu0 %v709
        %863 = vmatprep.subr.mxu0 %v714
        %864 = vmatpush1.msra.mxu0 %v713
        %865 = vmatprep.subr.mxu0 %v718
        %866 = vmatpush1.msra.mxu0 %v717
        %867 = vmatprep.subr.mxu0 %v722
        %868 = vmatpush1.msra.mxu0 %v721
        %869 = vmatprep.subr.mxu0 %v726
        %870 = vmatpush1.msra.mxu0 %v725
        %871 = vmatprep.subr.mxu0 %v730
        %872 = vmatpush1.msra.mxu0 %v729
        %873 = vmatprep.subr.mxu0 %v734
        %874 = vmatpush1.msra.mxu0 %v733
        %875 = vmatprep.subr.mxu0 %v738
        %876 = vmatpush1.msra.mxu0 %v737
        %877 = vmatprep.subr.mxu0 %v742
        %878 = vmatpush1.msra.mxu0 %v741
        %879 = vmatprep.subr.mxu0 %v746
        %880 = vmatpush1.msra.mxu0 %v745
        %881 = vmatprep.subr.mxu0 %v750
        %882 = vmatpush1.msra.mxu0 %v749
        %883 = vmatprep.subr.mxu0 0.0
        %884 = vmatpush1.msra.mxu0 0.0
        %885 = vmatprep.subr.mxu0 0.0
        %886 = vmatpush1.msra.mxu0 0.0
        %887 = vmatprep.subr.mxu0 0.0
        %888 = vmatpush1.msra.mxu0 0.0
        %889 = vmatprep.subr.mxu0 0.0
        %890 = vmatpush1.msra.mxu0 0.0
        %891 = vmatprep.subr.mxu0 0.0
        %892 = vmatpush1.msra.mxu0 0.0
        %893 = vmatprep.subr.mxu0 0.0
        %894 = vmatpush1.msra.mxu0 0.0
        %895 = vmatprep.subr.mxu0 0.0
        %896 = vmatpush1.msra.mxu0 0.0
        %897 = vmatprep.subr.mxu0 0.0
        %898 = vmatpush1.msra.mxu0 0.0
        %899 = vmatprep.subr.mxu0 0.0
        %900 = vmatpush1.msra.mxu0 0.0
        %901 = vmatprep.subr.mxu0 0.0
        %902 = vmatpush1.msra.mxu0 0.0
        %903 = vmatprep.subr.mxu0 0.0
        %904 = vmatpush1.msra.mxu0 0.0
        %905 = vmatprep.subr.mxu0 0.0
        %906 = vmatpush1.msra.mxu0 0.0
        %907 = vmatprep.subr.mxu0 0.0
        %908 = vmatpush1.msra.mxu0 0.0
        %909 = vmatprep.subr.mxu0 0.0
        %910 = vmatpush1.msra.mxu0 0.0
        %911 = vmatprep.mubr.f32.mxu0 %v765
        %912 = vmatmul.mubr.f32.gmra.mrb[0].mxu0 %v675
        %v913 = vpop.f32.mrb[0].mxu0
        %v914 = vadd.f32 %v756, %v913
        %v915 = vpop.f32.mrb[0].mxu0
        %v916 = vadd.f32 %v756, %v915
        %917 = vmatprep.mubr.f32.mxu0 %v768
        %918 = vmatmul.mubr.f32.gmra.mrb[0].mxu0 %v677
        %v919 = vpop.f32.mrb[0].mxu0
        %v920 = vadd.f32 %v761, %v919
        %v921 = vpop.f32.mrb[0].mxu0
        %v922 = vadd.f32 %v761, %v921
        %923 = vdwg.mxu0
        %v924 = vmax.f32 %v837, 0.0
        %v925 = vmax.f32 %v839, 0.0
        %v926 = vmax.f32 %v914, 0.0
        %v927 = vmax.f32 %v916, 0.0
        %v928 = vmax.f32 %v843, 0.0
        %v929 = vmax.f32 %v845, 0.0
        %v930 = vmax.f32 %v920, 0.0
        %v931 = vmax.f32 %v922, 0.0
        %v933 = vlaneseq
        %v934 = vshrl.u32 %v933, 7
        %v935 = vsub.s32 0, %v934
        %v936 = vrot.slane %v400, %v935
        %v937 = vlaneseq
        %v938 = vshrl.u32 %v937, 7
        %v939 = vsub.s32 1, %v938
        %v940 = vrot.slane %v400, %v939
        %v941 = vlaneseq
        %v942 = vshrl.u32 %v941, 7
        %v943 = vsub.s32 2, %v942
        %v944 = vrot.slane %v400, %v943
        %v945 = vlaneseq
        %v946 = vshrl.u32 %v945, 7
        %v947 = vsub.s32 3, %v946
        %v948 = vrot.slane %v400, %v947
        %v953 = vmul.f32 %v924, %v936
        %v954 = vmul.f32 %v925, %v940
        %v955 = vmul.f32 %v926, %v944
        %v956 = vmul.f32 %v927, %v948
        %v957 = vmul.f32 %v928, %v936
        %v958 = vmul.f32 %v929, %v940
        %v959 = vmul.f32 %v930, %v944
        %v960 = vmul.f32 %v931, %v948
        %961 = vrot.lane.b32.xlu0 %v953, 25
        %v962 = vpop.permute.xlu0 %961
        %963 = vrot.lane.b32.xlu0 %v957, 25
        %v964 = vpop.permute.xlu0 %963
        %965 = vrot.lane.b32.xlu0 %v954, 25
        %v966 = vpop.permute.xlu0 %965
        %967 = vrot.lane.b32.xlu0 %v958, 25
        %v968 = vpop.permute.xlu0 %967
        %969 = vrot.lane.b32.xlu0 %v955, 25
        %v970 = vpop.permute.xlu0 %969
        %971 = vrot.lane.b32.xlu0 %v959, 25
        %v972 = vpop.permute.xlu0 %971
        %973 = vrot.lane.b32.xlu0 %v956, 25
        %v974 = vpop.permute.xlu0 %973
        %975 = vrot.lane.b32.xlu0 %v960, 25
        %v976 = vpop.permute.xlu0 %975
        %v977 = vsel %vm419, %v970, %v974
        %v978 = vsel %vm419, %v972, %v976
        %v979 = vsel %vm419, %v966, %v970
        %v980 = vsel %vm419, %v968, %v972
        %v981 = vsel %vm419, %v962, %v966
        %v982 = vsel %vm419, %v964, %v968
        %v983 = vsel %vm419, %v974, %v962
        %v984 = vsel %vm419, %v976, %v964
        %985 = vst [vmem:[#allocation2] sm:$0xff] %v983
        %986 = vst [vmem:[#allocation2 + $0x8] sm:$0xff] %v981
        %987 = vst [vmem:[#allocation2 + $0x10] sm:$0xff] %v979
        %988 = vst [vmem:[#allocation2 + $0x18] sm:$0xff] %v977
        %989 = vst [vmem:[#allocation2 + $0x20] sm:$0xff] %v984
        %990 = vst [vmem:[#allocation2 + $0x28] sm:$0xff] %v982
        %991 = vst [vmem:[#allocation2 + $0x30] sm:$0xff] %v980
        %992 = vst [vmem:[#allocation2 + $0x38] sm:$0xff] %v978
        %993 = vrot.lane.b32.xlu0 %v953, 24
        %v994 = vpop.permute.xlu0 %993
        %995 = vrot.lane.b32.xlu0 %v957, 24
        %v996 = vpop.permute.xlu0 %995
        %997 = vrot.lane.b32.xlu0 %v954, 24
        %v998 = vpop.permute.xlu0 %997
        %999 = vrot.lane.b32.xlu0 %v958, 24
        %v1000 = vpop.permute.xlu0 %999
        %1001 = vrot.lane.b32.xlu0 %v955, 24
        %v1002 = vpop.permute.xlu0 %1001
        %1003 = vrot.lane.b32.xlu0 %v959, 24
        %v1004 = vpop.permute.xlu0 %1003
        %1005 = vrot.lane.b32.xlu0 %v956, 24
        %v1006 = vpop.permute.xlu0 %1005
        %1007 = vrot.lane.b32.xlu0 %v960, 24
        %v1008 = vpop.permute.xlu0 %1007
        %v1009 = vsel %vm452, %v1002, %v1006
        %v1010 = vsel %vm452, %v1004, %v1008
        %v1011 = vsel %vm452, %v998, %v1002
        %v1012 = vsel %vm452, %v1000, %v1004
        %v1013 = vsel %vm452, %v994, %v998
        %v1014 = vsel %vm452, %v996, %v1000
        %v1015 = vsel %vm452, %v1006, %v994
        %v1016 = vsel %vm452, %v1008, %v996
        %1017 = vst [vmem:[#allocation2 + $0x40] sm:$0xff] %v1015
        %1018 = vst [vmem:[#allocation2 + $0x48] sm:$0xff] %v1013
        %1019 = vst [vmem:[#allocation2 + $0x50] sm:$0xff] %v1011
        %1020 = vst [vmem:[#allocation2 + $0x58] sm:$0xff] %v1009
        %1021 = vst [vmem:[#allocation2 + $0x60] sm:$0xff] %v1016
        %1022 = vst [vmem:[#allocation2 + $0x68] sm:$0xff] %v1014
        %1023 = vst [vmem:[#allocation2 + $0x70] sm:$0xff] %v1012
        %1024 = vst [vmem:[#allocation2 + $0x78] sm:$0xff] %v1010
        %1025 = vrot.lane.b32.xlu0 %v953, 23
        %v1026 = vpop.permute.xlu0 %1025
        %1027 = vrot.lane.b32.xlu0 %v957, 23
        %v1028 = vpop.permute.xlu0 %1027
        %1029 = vrot.lane.b32.xlu0 %v954, 23
        %v1030 = vpop.permute.xlu0 %1029
        %1031 = vrot.lane.b32.xlu0 %v958, 23
        %v1032 = vpop.permute.xlu0 %1031
        %1033 = vrot.lane.b32.xlu0 %v955, 23
        %v1034 = vpop.permute.xlu0 %1033
        %1035 = vrot.lane.b32.xlu0 %v959, 23
        %v1036 = vpop.permute.xlu0 %1035
        %1037 = vrot.lane.b32.xlu0 %v956, 23
        %v1038 = vpop.permute.xlu0 %1037
        %1039 = vrot.lane.b32.xlu0 %v960, 23
        %v1040 = vpop.permute.xlu0 %1039
        %v1041 = vsel %vm485, %v1034, %v1038
        %v1042 = vsel %vm485, %v1036, %v1040
        %v1043 = vsel %vm485, %v1030, %v1034
        %v1044 = vsel %vm485, %v1032, %v1036
        %v1045 = vsel %vm485, %v1026, %v1030
        %v1046 = vsel %vm485, %v1028, %v1032
        %v1047 = vsel %vm485, %v1038, %v1026
        %v1048 = vsel %vm485, %v1040, %v1028
        %1049 = vst [vmem:[#allocation2 + $0x80] sm:$0xff] %v1047
        %1050 = vst [vmem:[#allocation2 + $0x88] sm:$0xff] %v1045
        %1051 = vst [vmem:[#allocation2 + $0x90] sm:$0xff] %v1043
        %1052 = vst [vmem:[#allocation2 + $0x98] sm:$0xff] %v1041
        %1053 = vst [vmem:[#allocation2 + $0xa0] sm:$0xff] %v1048
        %1054 = vst [vmem:[#allocation2 + $0xa8] sm:$0xff] %v1046
        %1055 = vst [vmem:[#allocation2 + $0xb0] sm:$0xff] %v1044
        %1056 = vst [vmem:[#allocation2 + $0xb8] sm:$0xff] %v1042
        %1057 = vrot.lane.b32.xlu0 %v953, 1
        %v1058 = vpop.permute.xlu0 %1057
        %1059 = vrot.lane.b32.xlu0 %v957, 1
        %v1060 = vpop.permute.xlu0 %1059
        %1061 = vrot.lane.b32.xlu0 %v954, 1
        %v1062 = vpop.permute.xlu0 %1061
        %1063 = vrot.lane.b32.xlu0 %v958, 1
        %v1064 = vpop.permute.xlu0 %1063
        %1065 = vrot.lane.b32.xlu0 %v955, 1
        %v1066 = vpop.permute.xlu0 %1065
        %1067 = vrot.lane.b32.xlu0 %v959, 1
        %v1068 = vpop.permute.xlu0 %1067
        %1069 = vrot.lane.b32.xlu0 %v956, 1
        %v1070 = vpop.permute.xlu0 %1069
        %1071 = vrot.lane.b32.xlu0 %v960, 1
        %v1072 = vpop.permute.xlu0 %1071
        %v1073 = vsel %vm518, %v1066, %v1070
        %v1074 = vsel %vm518, %v1068, %v1072
        %v1075 = vsel %vm518, %v1062, %v1066
        %v1076 = vsel %vm518, %v1064, %v1068
        %v1077 = vsel %vm518, %v1058, %v1062
        %v1078 = vsel %vm518, %v1060, %v1064
        %v1079 = vsel %vm518, %v1070, %v1058
        %v1080 = vsel %vm518, %v1072, %v1060
        %1081 = vst [vmem:[#allocation2 + $0xc0] sm:$0xff] %v1079
        %1082 = vst [vmem:[#allocation2 + $0xc8] sm:$0xff] %v1077
        %1083 = vst [vmem:[#allocation2 + $0xd0] sm:$0xff] %v1075
        %1084 = vst [vmem:[#allocation2 + $0xd8] sm:$0xff] %v1073
        %1085 = vst [vmem:[#allocation2 + $0xe0] sm:$0xff] %v1080
        %1086 = vst [vmem:[#allocation2 + $0xe8] sm:$0xff] %v1078
        %1087 = vst [vmem:[#allocation2 + $0xf0] sm:$0xff] %v1076
        %1088 = vst [vmem:[#allocation2 + $0xf8] sm:$0xff] %v1074
        %1089 = vst [vmem:[#allocation2 + $0x100] sm:$0xff] %v953
        %1090 = vst [vmem:[#allocation2 + $0x108] sm:$0xff] %v954
        %1091 = vst [vmem:[#allocation2 + $0x110] sm:$0xff] %v955
        %1092 = vst [vmem:[#allocation2 + $0x118] sm:$0xff] %v956
        %1093 = vst [vmem:[#allocation2 + $0x120] sm:$0xff] %v957
        %1094 = vst [vmem:[#allocation2 + $0x128] sm:$0xff] %v958
        %1095 = vst [vmem:[#allocation2 + $0x130] sm:$0xff] %v959
        %1096 = vst [vmem:[#allocation2 + $0x138] sm:$0xff] %v960
        %1097 = vrot.lane.b32.xlu0 %v953, 127
        %v1098 = vpop.permute.xlu0 %1097
        %1099 = vrot.lane.b32.xlu0 %v957, 127
        %v1100 = vpop.permute.xlu0 %1099
        %1101 = vrot.lane.b32.xlu0 %v954, 127
        %v1102 = vpop.permute.xlu0 %1101
        %1103 = vrot.lane.b32.xlu0 %v958, 127
        %v1104 = vpop.permute.xlu0 %1103
        %1105 = vrot.lane.b32.xlu0 %v955, 127
        %v1106 = vpop.permute.xlu0 %1105
        %1107 = vrot.lane.b32.xlu0 %v959, 127
        %v1108 = vpop.permute.xlu0 %1107
        %1109 = vrot.lane.b32.xlu0 %v956, 127
        %v1110 = vpop.permute.xlu0 %1109
        %1111 = vrot.lane.b32.xlu0 %v960, 127
        %v1112 = vpop.permute.xlu0 %1111
        %v1113 = vsel %vm559, %v1106, %v1110
        %v1114 = vsel %vm559, %v1108, %v1112
        %v1115 = vsel %vm559, %v1102, %v1106
        %v1116 = vsel %vm559, %v1104, %v1108
        %v1117 = vsel %vm559, %v1098, %v1102
        %v1118 = vsel %vm559, %v1100, %v1104
        %v1119 = vsel %vm559, %v1110, %v1098
        %v1120 = vsel %vm559, %v1112, %v1100
        %1121 = vst [vmem:[#allocation2 + $0x140] sm:$0xff] %v1117
        %1122 = vst [vmem:[#allocation2 + $0x148] sm:$0xff] %v1115
        %1123 = vst [vmem:[#allocation2 + $0x150] sm:$0xff] %v1113
        %1124 = vst [vmem:[#allocation2 + $0x158] sm:$0xff] %v1119
        %1125 = vst [vmem:[#allocation2 + $0x160] sm:$0xff] %v1118
        %1126 = vst [vmem:[#allocation2 + $0x168] sm:$0xff] %v1116
        %1127 = vst [vmem:[#allocation2 + $0x170] sm:$0xff] %v1114
        %1128 = vst [vmem:[#allocation2 + $0x178] sm:$0xff] %v1120
        %1129 = vrot.lane.b32.xlu0 %v953, 105
        %v1130 = vpop.permute.xlu0 %1129
        %1131 = vrot.lane.b32.xlu0 %v957, 105
        %v1132 = vpop.permute.xlu0 %1131
        %1133 = vrot.lane.b32.xlu0 %v954, 105
        %v1134 = vpop.permute.xlu0 %1133
        %1135 = vrot.lane.b32.xlu0 %v958, 105
        %v1136 = vpop.permute.xlu0 %1135
        %1137 = vrot.lane.b32.xlu0 %v955, 105
        %v1138 = vpop.permute.xlu0 %1137
        %1139 = vrot.lane.b32.xlu0 %v959, 105
        %v1140 = vpop.permute.xlu0 %1139
        %1141 = vrot.lane.b32.xlu0 %v956, 105
        %v1142 = vpop.permute.xlu0 %1141
        %1143 = vrot.lane.b32.xlu0 %v960, 105
        %v1144 = vpop.permute.xlu0 %1143
        %v1145 = vsel %vm592, %v1138, %v1142
        %v1146 = vsel %vm592, %v1140, %v1144
        %v1147 = vsel %vm592, %v1134, %v1138
        %v1148 = vsel %vm592, %v1136, %v1140
        %v1149 = vsel %vm592, %v1130, %v1134
        %v1150 = vsel %vm592, %v1132, %v1136
        %v1151 = vsel %vm592, %v1142, %v1130
        %v1152 = vsel %vm592, %v1144, %v1132
        %1153 = vst [vmem:[#allocation2 + $0x180] sm:$0xff] %v1149
        %1154 = vst [vmem:[#allocation2 + $0x188] sm:$0xff] %v1147
        %1155 = vst [vmem:[#allocation2 + $0x190] sm:$0xff] %v1145
        %1156 = vst [vmem:[#allocation2 + $0x198] sm:$0xff] %v1151
        %1157 = vst [vmem:[#allocation2 + $0x1a0] sm:$0xff] %v1150
        %1158 = vst [vmem:[#allocation2 + $0x1a8] sm:$0xff] %v1148
        %1159 = vst [vmem:[#allocation2 + $0x1b0] sm:$0xff] %v1146
        %1160 = vst [vmem:[#allocation2 + $0x1b8] sm:$0xff] %v1152
        %1161 = vrot.lane.b32.xlu0 %v953, 104
        %v1162 = vpop.permute.xlu0 %1161
        %1163 = vrot.lane.b32.xlu0 %v957, 104
        %v1164 = vpop.permute.xlu0 %1163
        %1165 = vrot.lane.b32.xlu0 %v954, 104
        %v1166 = vpop.permute.xlu0 %1165
        %1167 = vrot.lane.b32.xlu0 %v958, 104
        %v1168 = vpop.permute.xlu0 %1167
        %1169 = vrot.lane.b32.xlu0 %v955, 104
        %v1170 = vpop.permute.xlu0 %1169
        %1171 = vrot.lane.b32.xlu0 %v959, 104
        %v1172 = vpop.permute.xlu0 %1171
        %1173 = vrot.lane.b32.xlu0 %v956, 104
        %v1174 = vpop.permute.xlu0 %1173
        %1175 = vrot.lane.b32.xlu0 %v960, 104
        %v1176 = vpop.permute.xlu0 %1175
        %v1177 = vsel %vm625, %v1170, %v1174
        %v1178 = vsel %vm625, %v1172, %v1176
        %v1179 = vsel %vm625, %v1166, %v1170
        %v1180 = vsel %vm625, %v1168, %v1172
        %v1181 = vsel %vm625, %v1162, %v1166
        %v1182 = vsel %vm625, %v1164, %v1168
        %v1183 = vsel %vm625, %v1174, %v1162
        %v1184 = vsel %vm625, %v1176, %v1164
        %1185 = vst [vmem:[#allocation2 + $0x1c0] sm:$0xff] %v1181
        %1186 = vst [vmem:[#allocation2 + $0x1c8] sm:$0xff] %v1179
        %1187 = vst [vmem:[#allocation2 + $0x1d0] sm:$0xff] %v1177
        %1188 = vst [vmem:[#allocation2 + $0x1d8] sm:$0xff] %v1183
        %1189 = vst [vmem:[#allocation2 + $0x1e0] sm:$0xff] %v1182
        %1190 = vst [vmem:[#allocation2 + $0x1e8] sm:$0xff] %v1180
        %1191 = vst [vmem:[#allocation2 + $0x1f0] sm:$0xff] %v1178
        %1192 = vst [vmem:[#allocation2 + $0x1f8] sm:$0xff] %v1184
        %1193 = vrot.lane.b32.xlu0 %v953, 103
        %v1194 = vpop.permute.xlu0 %1193
        %1195 = vrot.lane.b32.xlu0 %v957, 103
        %v1196 = vpop.permute.xlu0 %1195
        %1197 = vrot.lane.b32.xlu0 %v954, 103
        %v1198 = vpop.permute.xlu0 %1197
        %1199 = vrot.lane.b32.xlu0 %v958, 103
        %v1200 = vpop.permute.xlu0 %1199
        %1201 = vrot.lane.b32.xlu0 %v955, 103
        %v1202 = vpop.permute.xlu0 %1201
        %1203 = vrot.lane.b32.xlu0 %v959, 103
        %v1204 = vpop.permute.xlu0 %1203
        %1205 = vrot.lane.b32.xlu0 %v956, 103
        %v1206 = vpop.permute.xlu0 %1205
        %1207 = vrot.lane.b32.xlu0 %v960, 103
        %v1208 = vpop.permute.xlu0 %1207
        %v1209 = vsel %vm658, %v1202, %v1206
        %v1210 = vsel %vm658, %v1204, %v1208
        %v1211 = vsel %vm658, %v1198, %v1202
        %v1212 = vsel %vm658, %v1200, %v1204
        %v1213 = vsel %vm658, %v1194, %v1198
        %v1214 = vsel %vm658, %v1196, %v1200
        %v1215 = vsel %vm658, %v1206, %v1194
        %v1216 = vsel %vm658, %v1208, %v1196
        %1217 = vst [vmem:[#allocation2 + $0x200] sm:$0xff] %v1213
        %1218 = vst [vmem:[#allocation2 + $0x208] sm:$0xff] %v1211
        %1219 = vst [vmem:[#allocation2 + $0x210] sm:$0xff] %v1209
        %1220 = vst [vmem:[#allocation2 + $0x218] sm:$0xff] %v1215
        %1221 = vst [vmem:[#allocation2 + $0x220] sm:$0xff] %v1214
        %1222 = vst [vmem:[#allocation2 + $0x228] sm:$0xff] %v1212
        %1223 = vst [vmem:[#allocation2 + $0x230] sm:$0xff] %v1210
        %1224 = vst [vmem:[#allocation2 + $0x238] sm:$0xff] %v1216
        %v1225 = vld [vmem:[%s3] sm:$0xff]
        %v1226 = vld [vmem:[%s3 + $0x8] sm:$0xff]
        %v1227 = vld [vmem:[%s3 + $0x10] sm:$0xff]
        %v1228 = vld [vmem:[%s3 + $0x18] sm:$0xff]
        %v1229 = vld [vmem:[#allocation2] sm:$0xff]
        %v1230 = vld [vmem:[#allocation2 + $0x8] sm:$0xff]
        %v1231 = vld [vmem:[#allocation2 + $0x10] sm:$0xff]
        %v1232 = vld [vmem:[#allocation2 + $0x18] sm:$0xff]
        %v1233 = vld [vmem:[#allocation2 + $0x20] sm:$0xff]
        %v1234 = vld [vmem:[#allocation2 + $0x28] sm:$0xff]
        %v1235 = vld [vmem:[#allocation2 + $0x30] sm:$0xff]
        %v1236 = vld [vmem:[#allocation2 + $0x38] sm:$0xff]
        %v1237 = vld [vmem:[#allocation2 + $0x40] sm:$0xff]
        %v1238 = vld [vmem:[#allocation2 + $0x48] sm:$0xff]
        %v1239 = vld [vmem:[#allocation2 + $0x50] sm:$0xff]
        %v1240 = vld [vmem:[#allocation2 + $0x58] sm:$0xff]
        %v1241 = vld [vmem:[#allocation2 + $0x60] sm:$0xff]
        %v1242 = vld [vmem:[#allocation2 + $0x68] sm:$0xff]
        %v1243 = vld [vmem:[#allocation2 + $0x70] sm:$0xff]
        %v1244 = vld [vmem:[#allocation2 + $0x78] sm:$0xff]
        %v1245 = vld [vmem:[#allocation2 + $0x80] sm:$0xff]
        %v1246 = vld [vmem:[#allocation2 + $0x88] sm:$0xff]
        %v1247 = vld [vmem:[#allocation2 + $0x90] sm:$0xff]
        %v1248 = vld [vmem:[#allocation2 + $0x98] sm:$0xff]
        %v1249 = vld [vmem:[#allocation2 + $0xa0] sm:$0xff]
        %v1250 = vld [vmem:[#allocation2 + $0xa8] sm:$0xff]
        %v1251 = vld [vmem:[#allocation2 + $0xb0] sm:$0xff]
        %v1252 = vld [vmem:[#allocation2 + $0xb8] sm:$0xff]
        %v1253 = vld [vmem:[#allocation2 + $0xc0] sm:$0xff]
        %v1254 = vld [vmem:[#allocation2 + $0xc8] sm:$0xff]
        %v1255 = vld [vmem:[#allocation2 + $0xd0] sm:$0xff]
        %v1256 = vld [vmem:[#allocation2 + $0xd8] sm:$0xff]
        %v1257 = vld [vmem:[#allocation2 + $0xe0] sm:$0xff]
        %v1258 = vld [vmem:[#allocation2 + $0xe8] sm:$0xff]
        %v1259 = vld [vmem:[#allocation2 + $0xf0] sm:$0xff]
        %v1260 = vld [vmem:[#allocation2 + $0xf8] sm:$0xff]
        %v1261 = vld [vmem:[#allocation2 + $0x100] sm:$0xff]
        %v1262 = vld [vmem:[#allocation2 + $0x108] sm:$0xff]
        %v1263 = vld [vmem:[#allocation2 + $0x110] sm:$0xff]
        %v1264 = vld [vmem:[#allocation2 + $0x118] sm:$0xff]
        %v1265 = vld [vmem:[#allocation2 + $0x120] sm:$0xff]
        %v1266 = vld [vmem:[#allocation2 + $0x128] sm:$0xff]
        %v1267 = vld [vmem:[#allocation2 + $0x130] sm:$0xff]
        %v1268 = vld [vmem:[#allocation2 + $0x138] sm:$0xff]
        %v1269 = vld [vmem:[#allocation2 + $0x140] sm:$0xff]
        %v1270 = vld [vmem:[#allocation2 + $0x148] sm:$0xff]
        %v1271 = vld [vmem:[#allocation2 + $0x150] sm:$0xff]
        %v1272 = vld [vmem:[#allocation2 + $0x158] sm:$0xff]
        %v1273 = vld [vmem:[#allocation2 + $0x160] sm:$0xff]
        %v1274 = vld [vmem:[#allocation2 + $0x168] sm:$0xff]
        %v1275 = vld [vmem:[#allocation2 + $0x170] sm:$0xff]
        %v1276 = vld [vmem:[#allocation2 + $0x178] sm:$0xff]
        %v1277 = vld [vmem:[#allocation2 + $0x180] sm:$0xff]
        %v1278 = vld [vmem:[#allocation2 + $0x188] sm:$0xff]
        %v1279 = vld [vmem:[#allocation2 + $0x190] sm:$0xff]
        %v1280 = vld [vmem:[#allocation2 + $0x198] sm:$0xff]
        %v1281 = vld [vmem:[#allocation2 + $0x1a0] sm:$0xff]
        %v1282 = vld [vmem:[#allocation2 + $0x1a8] sm:$0xff]
        %v1283 = vld [vmem:[#allocation2 + $0x1b0] sm:$0xff]
        %v1284 = vld [vmem:[#allocation2 + $0x1b8] sm:$0xff]
        %v1285 = vld [vmem:[#allocation2 + $0x1c0] sm:$0xff]
        %v1286 = vld [vmem:[#allocation2 + $0x1c8] sm:$0xff]
        %v1287 = vld [vmem:[#allocation2 + $0x1d0] sm:$0xff]
        %v1288 = vld [vmem:[#allocation2 + $0x1d8] sm:$0xff]
        %v1289 = vld [vmem:[#allocation2 + $0x1e0] sm:$0xff]
        %v1290 = vld [vmem:[#allocation2 + $0x1e8] sm:$0xff]
        %v1291 = vld [vmem:[#allocation2 + $0x1f0] sm:$0xff]
        %v1292 = vld [vmem:[#allocation2 + $0x1f8] sm:$0xff]
        %v1293 = vld [vmem:[#allocation2 + $0x200] sm:$0xff]
        %v1294 = vld [vmem:[#allocation2 + $0x208] sm:$0xff]
        %v1295 = vld [vmem:[#allocation2 + $0x210] sm:$0xff]
        %v1296 = vld [vmem:[#allocation2 + $0x218] sm:$0xff]
        %v1297 = vld [vmem:[#allocation2 + $0x220] sm:$0xff]
        %v1298 = vld [vmem:[#allocation2 + $0x228] sm:$0xff]
        %v1299 = vld [vmem:[#allocation2 + $0x230] sm:$0xff]
        %v1300 = vld [vmem:[#allocation2 + $0x238] sm:$0xff]
        %v1301 = vld [vmem:[%s4] sm:$0xff]
        %v1302 = vld [vmem:[%s4 + $0x8] sm:$0xff]
        %1304 = vset.pattern.permute.xlu0 0
        %1305 = vperm.xlu0 %1304, %v1301
        %v1306 = vpop.permute.xlu0 %1305
        %1309 = vset.pattern.permute.xlu0 0
        %1310 = vperm.xlu0 %1309, %v1302
        %v1311 = vpop.permute.xlu0 %1310
        %v1314 = vsel %vm763, %v1226, 0
        %v1317 = vsel %vm763, %v1228, 0
        %1319 = vmatprep.subr.mxu0 %v1230
        %1320 = vmatpush1.msra.mxu0 %v1229
        %1321 = vmatprep.subr.mxu0 %v1234
        %1322 = vmatpush1.msra.mxu0 %v1233
        %1323 = vmatprep.subr.mxu0 %v1238
        %1324 = vmatpush1.msra.mxu0 %v1237
        %1325 = vmatprep.subr.mxu0 %v1242
        %1326 = vmatpush1.msra.mxu0 %v1241
        %1327 = vmatprep.subr.mxu0 %v1246
        %1328 = vmatpush1.msra.mxu0 %v1245
        %1329 = vmatprep.subr.mxu0 %v1250
        %1330 = vmatpush1.msra.mxu0 %v1249
        %1331 = vmatprep.subr.mxu0 %v1254
        %1332 = vmatpush1.msra.mxu0 %v1253
        %1333 = vmatprep.subr.mxu0 %v1258
        %1334 = vmatpush1.msra.mxu0 %v1257
        %1335 = vmatprep.subr.mxu0 %v1262
        %1336 = vmatpush1.msra.mxu0 %v1261
        %1337 = vmatprep.subr.mxu0 %v1266
        %1338 = vmatpush1.msra.mxu0 %v1265
        %1339 = vmatprep.subr.mxu0 %v1270
        %1340 = vmatpush1.msra.mxu0 %v1269
        %1341 = vmatprep.subr.mxu0 %v1274
        %1342 = vmatpush1.msra.mxu0 %v1273
        %1343 = vmatprep.subr.mxu0 %v1278
        %1344 = vmatpush1.msra.mxu0 %v1277
        %1345 = vmatprep.subr.mxu0 %v1282
        %1346 = vmatpush1.msra.mxu0 %v1281
        %1347 = vmatprep.subr.mxu0 %v1286
        %1348 = vmatpush1.msra.mxu0 %v1285
        %1349 = vmatprep.subr.mxu0 %v1290
        %1350 = vmatpush1.msra.mxu0 %v1289
        %1351 = vmatprep.subr.mxu0 %v1294
        %1352 = vmatpush1.msra.mxu0 %v1293
        %1353 = vmatprep.subr.mxu0 %v1298
        %1354 = vmatpush1.msra.mxu0 %v1297
        %1355 = vmatprep.subr.mxu0 0.0
        %1356 = vmatpush1.msra.mxu0 0.0
        %1357 = vmatprep.subr.mxu0 0.0
        %1358 = vmatpush1.msra.mxu0 0.0
        %1359 = vmatprep.subr.mxu0 0.0
        %1360 = vmatpush1.msra.mxu0 0.0
        %1361 = vmatprep.subr.mxu0 0.0
        %1362 = vmatpush1.msra.mxu0 0.0
        %1363 = vmatprep.subr.mxu0 0.0
        %1364 = vmatpush1.msra.mxu0 0.0
        %1365 = vmatprep.subr.mxu0 0.0
        %1366 = vmatpush1.msra.mxu0 0.0
        %1367 = vmatprep.subr.mxu0 0.0
        %1368 = vmatpush1.msra.mxu0 0.0
        %1369 = vmatprep.subr.mxu0 0.0
        %1370 = vmatpush1.msra.mxu0 0.0
        %1371 = vmatprep.subr.mxu0 0.0
        %1372 = vmatpush1.msra.mxu0 0.0
        %1373 = vmatprep.subr.mxu0 0.0
        %1374 = vmatpush1.msra.mxu0 0.0
        %1375 = vmatprep.subr.mxu0 0.0
        %1376 = vmatpush1.msra.mxu0 0.0
        %1377 = vmatprep.subr.mxu0 0.0
        %1378 = vmatpush1.msra.mxu0 0.0
        %1379 = vmatprep.subr.mxu0 0.0
        %1380 = vmatpush1.msra.mxu0 0.0
        %1381 = vmatprep.subr.mxu0 0.0
        %1382 = vmatpush1.msra.mxu0 0.0
        %1383 = vmatprep.mubr.f32.mxu0 %v1314
        %1384 = vmatmul.mubr.f32.gmra.mrb[0].mxu0 %v1225
        %v1385 = vpop.f32.mrb[0].mxu0
        %v1386 = vadd.f32 %v1306, %v1385
        %v1387 = vpop.f32.mrb[0].mxu0
        %v1388 = vadd.f32 %v1306, %v1387
        %1389 = vmatprep.mubr.f32.mxu0 %v1317
        %1390 = vmatmul.mubr.f32.gmra.mrb[0].mxu0 %v1227
        %v1391 = vpop.f32.mrb[0].mxu0
        %v1392 = vadd.f32 %v1311, %v1391
        %v1393 = vpop.f32.mrb[0].mxu0
        %v1394 = vadd.f32 %v1311, %v1393
        %1395 = vdwg.mxu0
        %1396 = vmatprep.subr.mxu0 %v1232
        %1397 = vmatpush1.msra.mxu0 %v1231
        %1398 = vmatprep.subr.mxu0 %v1236
        %1399 = vmatpush1.msra.mxu0 %v1235
        %1400 = vmatprep.subr.mxu0 %v1240
        %1401 = vmatpush1.msra.mxu0 %v1239
        %1402 = vmatprep.subr.mxu0 %v1244
        %1403 = vmatpush1.msra.mxu0 %v1243
        %1404 = vmatprep.subr.mxu0 %v1248
        %1405 = vmatpush1.msra.mxu0 %v1247
        %1406 = vmatprep.subr.mxu0 %v1252
        %1407 = vmatpush1.msra.mxu0 %v1251
        %1408 = vmatprep.subr.mxu0 %v1256
        %1409 = vmatpush1.msra.mxu0 %v1255
        %1410 = vmatprep.subr.mxu0 %v1260
        %1411 = vmatpush1.msra.mxu0 %v1259
        %1412 = vmatprep.subr.mxu0 %v1264
        %1413 = vmatpush1.msra.mxu0 %v1263
        %1414 = vmatprep.subr.mxu0 %v1268
        %1415 = vmatpush1.msra.mxu0 %v1267
        %1416 = vmatprep.subr.mxu0 %v1272
        %1417 = vmatpush1.msra.mxu0 %v1271
        %1418 = vmatprep.subr.mxu0 %v1276
        %1419 = vmatpush1.msra.mxu0 %v1275
        %1420 = vmatprep.subr.mxu0 %v1280
        %1421 = vmatpush1.msra.mxu0 %v1279
        %1422 = vmatprep.subr.mxu0 %v1284
        %1423 = vmatpush1.msra.mxu0 %v1283
        %1424 = vmatprep.subr.mxu0 %v1288
        %1425 = vmatpush1.msra.mxu0 %v1287
        %1426 = vmatprep.subr.mxu0 %v1292
        %1427 = vmatpush1.msra.mxu0 %v1291
        %1428 = vmatprep.subr.mxu0 %v1296
        %1429 = vmatpush1.msra.mxu0 %v1295
        %1430 = vmatprep.subr.mxu0 %v1300
        %1431 = vmatpush1.msra.mxu0 %v1299
        %1432 = vmatprep.subr.mxu0 0.0
        %1433 = vmatpush1.msra.mxu0 0.0
        %1434 = vmatprep.subr.mxu0 0.0
        %1435 = vmatpush1.msra.mxu0 0.0
        %1436 = vmatprep.subr.mxu0 0.0
        %1437 = vmatpush1.msra.mxu0 0.0
        %1438 = vmatprep.subr.mxu0 0.0
        %1439 = vmatpush1.msra.mxu0 0.0
        %1440 = vmatprep.subr.mxu0 0.0
        %1441 = vmatpush1.msra.mxu0 0.0
        %1442 = vmatprep.subr.mxu0 0.0
        %1443 = vmatpush1.msra.mxu0 0.0
        %1444 = vmatprep.subr.mxu0 0.0
        %1445 = vmatpush1.msra.mxu0 0.0
        %1446 = vmatprep.subr.mxu0 0.0
        %1447 = vmatpush1.msra.mxu0 0.0
        %1448 = vmatprep.subr.mxu0 0.0
        %1449 = vmatpush1.msra.mxu0 0.0
        %1450 = vmatprep.subr.mxu0 0.0
        %1451 = vmatpush1.msra.mxu0 0.0
        %1452 = vmatprep.subr.mxu0 0.0
        %1453 = vmatpush1.msra.mxu0 0.0
        %1454 = vmatprep.subr.mxu0 0.0
        %1455 = vmatpush1.msra.mxu0 0.0
        %1456 = vmatprep.subr.mxu0 0.0
        %1457 = vmatpush1.msra.mxu0 0.0
        %1458 = vmatprep.subr.mxu0 0.0
        %1459 = vmatpush1.msra.mxu0 0.0
        %1460 = vmatprep.mubr.f32.mxu0 %v1314
        %1461 = vmatmul.mubr.f32.gmra.mrb[0].mxu0 %v1225
        %v1462 = vpop.f32.mrb[0].mxu0
        %v1463 = vadd.f32 %v1306, %v1462
        %v1464 = vpop.f32.mrb[0].mxu0
        %v1465 = vadd.f32 %v1306, %v1464
        %1466 = vmatprep.mubr.f32.mxu0 %v1317
        %1467 = vmatmul.mubr.f32.gmra.mrb[0].mxu0 %v1227
        %v1468 = vpop.f32.mrb[0].mxu0
        %v1469 = vadd.f32 %v1311, %v1468
        %v1470 = vpop.f32.mrb[0].mxu0
        %v1471 = vadd.f32 %v1311, %v1470
        %1472 = vdwg.mxu0
        %v1473 = vmax.f32 %v1386, 0.0
        %v1474 = vmax.f32 %v1388, 0.0
        %v1475 = vmax.f32 %v1463, 0.0
        %v1476 = vmax.f32 %v1465, 0.0
        %v1477 = vmax.f32 %v1392, 0.0
        %v1478 = vmax.f32 %v1394, 0.0
        %v1479 = vmax.f32 %v1469, 0.0
        %v1480 = vmax.f32 %v1471, 0.0
        %v1481 = vmul.f32 %v1473, %v936
        %v1482 = vmul.f32 %v1474, %v940
        %v1483 = vmul.f32 %v1475, %v944
        %v1484 = vmul.f32 %v1476, %v948
        %v1485 = vmul.f32 %v1477, %v936
        %v1486 = vmul.f32 %v1478, %v940
        %v1487 = vmul.f32 %v1479, %v944
        %v1488 = vmul.f32 %v1480, %v948
        %v1489 = vadd.f32 %v1481, %v1482
        %v1490 = vadd.f32 %v1489, %v1483
        %v1491 = vadd.f32 %v1490, %v1484
        %1492 = vadd.xlane.f32.xlu0 %v1491
        %v1493 = vpop.xlane.xlu0 %1492
        %v1494 = vadd.f32 %v1485, %v1486
        %v1495 = vadd.f32 %v1494, %v1487
        %v1496 = vadd.f32 %v1495, %v1488
        %1497 = vadd.xlane.f32.xlu0 %v1496
        %v1498 = vpop.xlane.xlu0 %1497
        %v1499 = vmul.f32 %v1493, 0.00390625
        %v1500 = vmul.f32 %v1498, 0.00390625
        %v1501 = vld [vmem:[%s5] sm:$0xff]
        %v1502 = vld [vmem:[%s5 + $0x8] sm:$0xff]
        %v1503 = vmul.f32 %v1501, %v1499
        %v1504 = vmul.f32 %v1502, %v1500
        %vm1505 = vcmask 15360
        %v1506 = vsel %vm1505, %v1503, 0.0
        %v1507 = vsel %vm1505, %v1504, 0.0
        %v1508 = vadd.f32 %v1506, %v1507
        %v1509 = vrot.slane %v1508, 4
        %v1510 = vadd.f32 %v1508, %v1509
        %v1511 = vrot.slane %v1510, 2
        %v1512 = vadd.f32 %v1510, %v1511
        %v1513 = vrot.slane %v1512, 1
        %v1514 = vadd.f32 %v1512, %v1513
        %v1515 = vmax.f32 %v1514, 0.0
        %v1516 = vld [vmem:[%s6] sm:$0xff]
        %v1517 = vld [vmem:[%s6 + $0x8] sm:$0xff]
        %v1518 = vmul.f32 %v1516, %v1515
        %v1519 = vmul.f32 %v1517, %v1515
        %v1520 = vsel %vm1505, %v1518, 0.0
        %1521 = vadd.xlane.f32.xlu0 %v1520
        %v1522 = vpop.xlane.xlu0 %1521
        %v1523 = vsel %vm1505, %v1519, 0.0
        %1524 = vadd.xlane.f32.xlu0 %v1523
        %v1525 = vpop.xlane.xlu0 %1524
        %v1526 = vsub.f32 0.0, %v1522
        %v1527 = vsub.f32 0.0, %v1525
        %v1528 = vmul.f32 %v1526, 1.442695
        %v1529 = vpow.pop %v1528
        %v1530 = vmul.f32 %v1527, 1.442695
        %v1531 = vpow.pop %v1530
        %v1532 = vadd.f32 %v1529, 1.0
        %v1533 = vadd.f32 %v1531, 1.0
        %v1534 = vrcp.pop %v1532
        %v1535 = vmul.f32 1.0, %v1534
        %v1536 = vrcp.pop %v1533
        %v1537 = vmul.f32 1.0, %v1536
        %v1538 = vmul.f32 %v1481, %v1535
        %v1539 = vmul.f32 %v1482, %v1535
        %v1540 = vmul.f32 %v1483, %v1535
        %v1541 = vmul.f32 %v1484, %v1535
        %v1542 = vmul.f32 %v1485, %v1537
        %v1543 = vmul.f32 %v1486, %v1537
        %v1544 = vmul.f32 %v1487, %v1537
        %v1545 = vmul.f32 %v1488, %v1537
        %v1546 = vmax.f32 %v1481, %v1485
        %v1547 = vrot.slane %v1546, 4
        %v1548 = vmax.f32 %v1546, %v1547
        %v1549 = vrot.slane %v1548, 2
        %v1550 = vmax.f32 %v1548, %v1549
        %v1551 = vrot.slane %v1550, 1
        %v1552 = vmax.f32 %v1550, %v1551
        %v1553 = vmax.f32 %v1482, %v1486
        %v1554 = vrot.slane %v1553, 4
        %v1555 = vmax.f32 %v1553, %v1554
        %v1556 = vrot.slane %v1555, 2
        %v1557 = vmax.f32 %v1555, %v1556
        %v1558 = vrot.slane %v1557, 1
        %v1559 = vmax.f32 %v1557, %v1558
        %v1560 = vmax.f32 %v1483, %v1487
        %v1561 = vrot.slane %v1560, 4
        %v1562 = vmax.f32 %v1560, %v1561
        %v1563 = vrot.slane %v1562, 2
        %v1564 = vmax.f32 %v1562, %v1563
        %v1565 = vrot.slane %v1564, 1
        %v1566 = vmax.f32 %v1564, %v1565
        %v1567 = vmax.f32 %v1484, %v1488
        %v1568 = vrot.slane %v1567, 4
        %v1569 = vmax.f32 %v1567, %v1568
        %v1570 = vrot.slane %v1569, 2
        %v1571 = vmax.f32 %v1569, %v1570
        %v1572 = vrot.slane %v1571, 1
        %v1573 = vmax.f32 %v1571, %v1572
        %v1574 = vadd.f32 %v1481, %v1485
        %v1575 = vrot.slane %v1574, 4
        %v1576 = vadd.f32 %v1574, %v1575
        %v1577 = vrot.slane %v1576, 2
        %v1578 = vadd.f32 %v1576, %v1577
        %v1579 = vrot.slane %v1578, 1
        %v1580 = vadd.f32 %v1578, %v1579
        %v1581 = vadd.f32 %v1482, %v1486
        %v1582 = vrot.slane %v1581, 4
        %v1583 = vadd.f32 %v1581, %v1582
        %v1584 = vrot.slane %v1583, 2
        %v1585 = vadd.f32 %v1583, %v1584
        %v1586 = vrot.slane %v1585, 1
        %v1587 = vadd.f32 %v1585, %v1586
        %v1588 = vadd.f32 %v1483, %v1487
        %v1589 = vrot.slane %v1588, 4
        %v1590 = vadd.f32 %v1588, %v1589
        %v1591 = vrot.slane %v1590, 2
        %v1592 = vadd.f32 %v1590, %v1591
        %v1593 = vrot.slane %v1592, 1
        %v1594 = vadd.f32 %v1592, %v1593
        %v1595 = vadd.f32 %v1484, %v1488
        %v1596 = vrot.slane %v1595, 4
        %v1597 = vadd.f32 %v1595, %v1596
        %v1598 = vrot.slane %v1597, 2
        %v1599 = vadd.f32 %v1597, %v1598
        %v1600 = vrot.slane %v1599, 1
        %v1601 = vadd.f32 %v1599, %v1600
        %v1602 = vrcp.pop 16.0
        %v1603 = vmul.f32 %v1580, %v1602
        %v1604 = vmul.f32 %v1587, %v1602
        %v1605 = vmul.f32 %v1594, %v1602
        %v1606 = vmul.f32 %v1601, %v1602
        %1607 = vrot.lane.b32.xlu0 %v1552, 50
        %v1608 = vpop.permute.xlu0 %1607
        %1609 = vrot.lane.b32.xlu0 %v1559, 50
        %v1610 = vpop.permute.xlu0 %1609
        %1611 = vrot.lane.b32.xlu0 %v1566, 50
        %v1612 = vpop.permute.xlu0 %1611
        %1613 = vrot.lane.b32.xlu0 %v1573, 50
        %v1614 = vpop.permute.xlu0 %1613
        %vm1615 = vcmp.lt.s32.totalorder %v418, 50
        %v1616 = vsel %vm1615, %v1612, %v1614
        %v1617 = vsel %vm1615, %v1610, %v1612
        %v1618 = vsel %vm1615, %v1608, %v1610
        %v1619 = vsel %vm1615, %v1614, %v1608
        %s1620 = sld [smem:[#allocation7]]
        %v1621 = vstv %s1620
        %v1622 = vmul.f32 %v1619, %v1621
        %v1623 = vmul.f32 %v1618, %v1621
        %v1624 = vmul.f32 %v1617, %v1621
        %v1625 = vmul.f32 %v1616, %v1621
        %v1626 = vadd.f32 %v1622, 0.0
        %v1627 = vadd.f32 %v1623, 0.0
        %v1628 = vadd.f32 %v1624, 0.0
        %v1629 = vadd.f32 %v1625, 0.0
        %1630 = vrot.lane.b32.xlu0 %v1603, 50
        %v1631 = vpop.permute.xlu0 %1630
        %1632 = vrot.lane.b32.xlu0 %v1604, 50
        %v1633 = vpop.permute.xlu0 %1632
        %1634 = vrot.lane.b32.xlu0 %v1605, 50
        %v1635 = vpop.permute.xlu0 %1634
        %1636 = vrot.lane.b32.xlu0 %v1606, 50
        %v1637 = vpop.permute.xlu0 %1636
        %v1638 = vsel %vm1615, %v1635, %v1637
        %v1639 = vsel %vm1615, %v1633, %v1635
        %v1640 = vsel %vm1615, %v1631, %v1633
        %v1641 = vsel %vm1615, %v1637, %v1631
        %s1642 = sld [smem:[#allocation7 + $0x80]]
        %v1643 = vstv %s1642
        %v1644 = vmul.f32 %v1641, %v1643
        %v1645 = vmul.f32 %v1640, %v1643
        %v1646 = vmul.f32 %v1639, %v1643
        %v1647 = vmul.f32 %v1638, %v1643
        %v1648 = vadd.f32 %v1626, %v1644
        %v1649 = vadd.f32 %v1627, %v1645
        %v1650 = vadd.f32 %v1628, %v1646
        %v1651 = vadd.f32 %v1629, %v1647
        %1652 = vrot.lane.b32.xlu0 %v1552, 49
        %v1653 = vpop.permute.xlu0 %1652
        %1654 = vrot.lane.b32.xlu0 %v1559, 49
        %v1655 = vpop.permute.xlu0 %1654
        %1656 = vrot.lane.b32.xlu0 %v1566, 49
        %v1657 = vpop.permute.xlu0 %1656
        %1658 = vrot.lane.b32.xlu0 %v1573, 49
        %v1659 = vpop.permute.xlu0 %1658
        %vm1660 = vcmp.lt.s32.totalorder %v418, 49
        %v1661 = vsel %vm1660, %v1657, %v1659
        %v1662 = vsel %vm1660, %v1655, %v1657
        %v1663 = vsel %vm1660, %v1653, %v1655
        %v1664 = vsel %vm1660, %v1659, %v1653
        %s1665 = sld [smem:[#allocation7 + $0x1]]
        %v1666 = vstv %s1665
        %v1667 = vmul.f32 %v1664, %v1666
        %v1668 = vmul.f32 %v1663, %v1666
        %v1669 = vmul.f32 %v1662, %v1666
        %v1670 = vmul.f32 %v1661, %v1666
        %v1671 = vadd.f32 %v1648, %v1667
        %v1672 = vadd.f32 %v1649, %v1668
        %v1673 = vadd.f32 %v1650, %v1669
        %v1674 = vadd.f32 %v1651, %v1670
        %1675 = vrot.lane.b32.xlu0 %v1603, 49
        %v1676 = vpop.permute.xlu0 %1675
        %1677 = vrot.lane.b32.xlu0 %v1604, 49
        %v1678 = vpop.permute.xlu0 %1677
        %1679 = vrot.lane.b32.xlu0 %v1605, 49
        %v1680 = vpop.permute.xlu0 %1679
        %1681 = vrot.lane.b32.xlu0 %v1606, 49
        %v1682 = vpop.permute.xlu0 %1681
        %v1683 = vsel %vm1660, %v1680, %v1682
        %v1684 = vsel %vm1660, %v1678, %v1680
        %v1685 = vsel %vm1660, %v1676, %v1678
        %v1686 = vsel %vm1660, %v1682, %v1676
        %s1687 = sld [smem:[#allocation7 + $0x81]]
        %v1688 = vstv %s1687
        %v1689 = vmul.f32 %v1686, %v1688
        %v1690 = vmul.f32 %v1685, %v1688
        %v1691 = vmul.f32 %v1684, %v1688
        %v1692 = vmul.f32 %v1683, %v1688
        %v1693 = vadd.f32 %v1671, %v1689
        %v1694 = vadd.f32 %v1672, %v1690
        %v1695 = vadd.f32 %v1673, %v1691
        %v1696 = vadd.f32 %v1674, %v1692
        %1697 = vrot.lane.b32.xlu0 %v1552, 48
        %v1698 = vpop.permute.xlu0 %1697
        %1699 = vrot.lane.b32.xlu0 %v1559, 48
        %v1700 = vpop.permute.xlu0 %1699
        %1701 = vrot.lane.b32.xlu0 %v1566, 48
        %v1702 = vpop.permute.xlu0 %1701
        %1703 = vrot.lane.b32.xlu0 %v1573, 48
        %v1704 = vpop.permute.xlu0 %1703
        %vm1705 = vcmp.lt.s32.totalorder %v418, 48
        %v1706 = vsel %vm1705, %v1702, %v1704
        %v1707 = vsel %vm1705, %v1700, %v1702
        %v1708 = vsel %vm1705, %v1698, %v1700
        %v1709 = vsel %vm1705, %v1704, %v1698
        %s1710 = sld [smem:[#allocation7 + $0x2]]
        %v1711 = vstv %s1710
        %v1712 = vmul.f32 %v1709, %v1711
        %v1713 = vmul.f32 %v1708, %v1711
        %v1714 = vmul.f32 %v1707, %v1711
        %v1715 = vmul.f32 %v1706, %v1711
        %v1716 = vadd.f32 %v1693, %v1712
        %v1717 = vadd.f32 %v1694, %v1713
        %v1718 = vadd.f32 %v1695, %v1714
        %v1719 = vadd.f32 %v1696, %v1715
        %1720 = vrot.lane.b32.xlu0 %v1603, 48
        %v1721 = vpop.permute.xlu0 %1720
        %1722 = vrot.lane.b32.xlu0 %v1604, 48
        %v1723 = vpop.permute.xlu0 %1722
        %1724 = vrot.lane.b32.xlu0 %v1605, 48
        %v1725 = vpop.permute.xlu0 %1724
        %1726 = vrot.lane.b32.xlu0 %v1606, 48
        %v1727 = vpop.permute.xlu0 %1726
        %v1728 = vsel %vm1705, %v1725, %v1727
        %v1729 = vsel %vm1705, %v1723, %v1725
        %v1730 = vsel %vm1705, %v1721, %v1723
        %v1731 = vsel %vm1705, %v1727, %v1721
        %s1732 = sld [smem:[#allocation7 + $0x82]]
        %v1733 = vstv %s1732
        %v1734 = vmul.f32 %v1731, %v1733
        %v1735 = vmul.f32 %v1730, %v1733
        %v1736 = vmul.f32 %v1729, %v1733
        %v1737 = vmul.f32 %v1728, %v1733
        %v1738 = vadd.f32 %v1716, %v1734
        %v1739 = vadd.f32 %v1717, %v1735
        %v1740 = vadd.f32 %v1718, %v1736
        %v1741 = vadd.f32 %v1719, %v1737
        %1742 = vrot.lane.b32.xlu0 %v1552, 47
        %v1743 = vpop.permute.xlu0 %1742
        %1744 = vrot.lane.b32.xlu0 %v1559, 47
        %v1745 = vpop.permute.xlu0 %1744
        %1746 = vrot.lane.b32.xlu0 %v1566, 47
        %v1747 = vpop.permute.xlu0 %1746
        %1748 = vrot.lane.b32.xlu0 %v1573, 47
        %v1749 = vpop.permute.xlu0 %1748
        %vm1750 = vcmp.lt.s32.totalorder %v418, 47
        %v1751 = vsel %vm1750, %v1747, %v1749
        %v1752 = vsel %vm1750, %v1745, %v1747
        %v1753 = vsel %vm1750, %v1743, %v1745
        %v1754 = vsel %vm1750, %v1749, %v1743
        %s1755 = sld [smem:[#allocation7 + $0x3]]
        %v1756 = vstv %s1755
        %v1757 = vmul.f32 %v1754, %v1756
        %v1758 = vmul.f32 %v1753, %v1756
        %v1759 = vmul.f32 %v1752, %v1756
        %v1760 = vmul.f32 %v1751, %v1756
        %v1761 = vadd.f32 %v1738, %v1757
        %v1762 = vadd.f32 %v1739, %v1758
        %v1763 = vadd.f32 %v1740, %v1759
        %v1764 = vadd.f32 %v1741, %v1760
        %1765 = vrot.lane.b32.xlu0 %v1603, 47
        %v1766 = vpop.permute.xlu0 %1765
        %1767 = vrot.lane.b32.xlu0 %v1604, 47
        %v1768 = vpop.permute.xlu0 %1767
        %1769 = vrot.lane.b32.xlu0 %v1605, 47
        %v1770 = vpop.permute.xlu0 %1769
        %1771 = vrot.lane.b32.xlu0 %v1606, 47
        %v1772 = vpop.permute.xlu0 %1771
        %v1773 = vsel %vm1750, %v1770, %v1772
        %v1774 = vsel %vm1750, %v1768, %v1770
        %v1775 = vsel %vm1750, %v1766, %v1768
        %v1776 = vsel %vm1750, %v1772, %v1766
        %s1777 = sld [smem:[#allocation7 + $0x83]]
        %v1778 = vstv %s1777
        %v1779 = vmul.f32 %v1776, %v1778
        %v1780 = vmul.f32 %v1775, %v1778
        %v1781 = vmul.f32 %v1774, %v1778
        %v1782 = vmul.f32 %v1773, %v1778
        %v1783 = vadd.f32 %v1761, %v1779
        %v1784 = vadd.f32 %v1762, %v1780
        %v1785 = vadd.f32 %v1763, %v1781
        %v1786 = vadd.f32 %v1764, %v1782
        %1787 = vrot.lane.b32.xlu0 %v1552, 46
        %v1788 = vpop.permute.xlu0 %1787
        %1789 = vrot.lane.b32.xlu0 %v1559, 46
        %v1790 = vpop.permute.xlu0 %1789
        %1791 = vrot.lane.b32.xlu0 %v1566, 46
        %v1792 = vpop.permute.xlu0 %1791
        %1793 = vrot.lane.b32.xlu0 %v1573, 46
        %v1794 = vpop.permute.xlu0 %1793
        %vm1795 = vcmp.lt.s32.totalorder %v418, 46
        %v1796 = vsel %vm1795, %v1792, %v1794
        %v1797 = vsel %vm1795, %v1790, %v1792
        %v1798 = vsel %vm1795, %v1788, %v1790
        %v1799 = vsel %vm1795, %v1794, %v1788
        %s1800 = sld [smem:[#allocation7 + $0x4]]
        %v1801 = vstv %s1800
        %v1802 = vmul.f32 %v1799, %v1801
        %v1803 = vmul.f32 %v1798, %v1801
        %v1804 = vmul.f32 %v1797, %v1801
        %v1805 = vmul.f32 %v1796, %v1801
        %v1806 = vadd.f32 %v1783, %v1802
        %v1807 = vadd.f32 %v1784, %v1803
        %v1808 = vadd.f32 %v1785, %v1804
        %v1809 = vadd.f32 %v1786, %v1805
        %1810 = vrot.lane.b32.xlu0 %v1603, 46
        %v1811 = vpop.permute.xlu0 %1810
        %1812 = vrot.lane.b32.xlu0 %v1604, 46
        %v1813 = vpop.permute.xlu0 %1812
        %1814 = vrot.lane.b32.xlu0 %v1605, 46
        %v1815 = vpop.permute.xlu0 %1814
        %1816 = vrot.lane.b32.xlu0 %v1606, 46
        %v1817 = vpop.permute.xlu0 %1816
        %v1818 = vsel %vm1795, %v1815, %v1817
        %v1819 = vsel %vm1795, %v1813, %v1815
        %v1820 = vsel %vm1795, %v1811, %v1813
        %v1821 = vsel %vm1795, %v1817, %v1811
        %s1822 = sld [smem:[#allocation7 + $0x84]]
        %v1823 = vstv %s1822
        %v1824 = vmul.f32 %v1821, %v1823
        %v1825 = vmul.f32 %v1820, %v1823
        %v1826 = vmul.f32 %v1819, %v1823
        %v1827 = vmul.f32 %v1818, %v1823
        %v1828 = vadd.f32 %v1806, %v1824
        %v1829 = vadd.f32 %v1807, %v1825
        %v1830 = vadd.f32 %v1808, %v1826
        %v1831 = vadd.f32 %v1809, %v1827
        %1832 = vrot.lane.b32.xlu0 %v1552, 26
        %v1833 = vpop.permute.xlu0 %1832
        %1834 = vrot.lane.b32.xlu0 %v1559, 26
        %v1835 = vpop.permute.xlu0 %1834
        %1836 = vrot.lane.b32.xlu0 %v1566, 26
        %v1837 = vpop.permute.xlu0 %1836
        %1838 = vrot.lane.b32.xlu0 %v1573, 26
        %v1839 = vpop.permute.xlu0 %1838
        %vm1840 = vcmp.lt.s32.totalorder %v418, 26
        %v1841 = vsel %vm1840, %v1837, %v1839
        %v1842 = vsel %vm1840, %v1835, %v1837
        %v1843 = vsel %vm1840, %v1833, %v1835
        %v1844 = vsel %vm1840, %v1839, %v1833
        %s1845 = sld [smem:[#allocation7 + $0x5]]
        %v1846 = vstv %s1845
        %v1847 = vmul.f32 %v1844, %v1846
        %v1848 = vmul.f32 %v1843, %v1846
        %v1849 = vmul.f32 %v1842, %v1846
        %v1850 = vmul.f32 %v1841, %v1846
        %v1851 = vadd.f32 %v1828, %v1847
        %v1852 = vadd.f32 %v1829, %v1848
        %v1853 = vadd.f32 %v1830, %v1849
        %v1854 = vadd.f32 %v1831, %v1850
        %1855 = vrot.lane.b32.xlu0 %v1603, 26
        %v1856 = vpop.permute.xlu0 %1855
        %1857 = vrot.lane.b32.xlu0 %v1604, 26
        %v1858 = vpop.permute.xlu0 %1857
        %1859 = vrot.lane.b32.xlu0 %v1605, 26
        %v1860 = vpop.permute.xlu0 %1859
        %1861 = vrot.lane.b32.xlu0 %v1606, 26
        %v1862 = vpop.permute.xlu0 %1861
        %v1863 = vsel %vm1840, %v1860, %v1862
        %v1864 = vsel %vm1840, %v1858, %v1860
        %v1865 = vsel %vm1840, %v1856, %v1858
        %v1866 = vsel %vm1840, %v1862, %v1856
        %s1867 = sld [smem:[#allocation7 + $0x85]]
        %v1868 = vstv %s1867
        %v1869 = vmul.f32 %v1866, %v1868
        %v1870 = vmul.f32 %v1865, %v1868
        %v1871 = vmul.f32 %v1864, %v1868
        %v1872 = vmul.f32 %v1863, %v1868
        %v1873 = vadd.f32 %v1851, %v1869
        %v1874 = vadd.f32 %v1852, %v1870
        %v1875 = vadd.f32 %v1853, %v1871
        %v1876 = vadd.f32 %v1854, %v1872
        %1877 = vrot.lane.b32.xlu0 %v1552, 25
        %v1878 = vpop.permute.xlu0 %1877
        %1879 = vrot.lane.b32.xlu0 %v1559, 25
        %v1880 = vpop.permute.xlu0 %1879
        %1881 = vrot.lane.b32.xlu0 %v1566, 25
        %v1882 = vpop.permute.xlu0 %1881
        %1883 = vrot.lane.b32.xlu0 %v1573, 25
        %v1884 = vpop.permute.xlu0 %1883
        %v1885 = vsel %vm419, %v1882, %v1884
        %v1886 = vsel %vm419, %v1880, %v1882
        %v1887 = vsel %vm419, %v1878, %v1880
        %v1888 = vsel %vm419, %v1884, %v1878
        %s1889 = sld [smem:[#allocation7 + $0x6]]
        %v1890 = vstv %s1889
        %v1891 = vmul.f32 %v1888, %v1890
        %v1892 = vmul.f32 %v1887, %v1890
        %v1893 = vmul.f32 %v1886, %v1890
        %v1894 = vmul.f32 %v1885, %v1890
        %v1895 = vadd.f32 %v1873, %v1891
        %v1896 = vadd.f32 %v1874, %v1892
        %v1897 = vadd.f32 %v1875, %v1893
        %v1898 = vadd.f32 %v1876, %v1894
        %1899 = vrot.lane.b32.xlu0 %v1603, 25
        %v1900 = vpop.permute.xlu0 %1899
        %1901 = vrot.lane.b32.xlu0 %v1604, 25
        %v1902 = vpop.permute.xlu0 %1901
        %1903 = vrot.lane.b32.xlu0 %v1605, 25
        %v1904 = vpop.permute.xlu0 %1903
        %1905 = vrot.lane.b32.xlu0 %v1606, 25
        %v1906 = vpop.permute.xlu0 %1905
        %v1907 = vsel %vm419, %v1904, %v1906
        %v1908 = vsel %vm419, %v1902, %v1904
        %v1909 = vsel %vm419, %v1900, %v1902
        %v1910 = vsel %vm419, %v1906, %v1900
        %s1911 = sld [smem:[#allocation7 + $0x86]]
        %v1912 = vstv %s1911
        %v1913 = vmul.f32 %v1910, %v1912
        %v1914 = vmul.f32 %v1909, %v1912
        %v1915 = vmul.f32 %v1908, %v1912
        %v1916 = vmul.f32 %v1907, %v1912
        %v1917 = vadd.f32 %v1895, %v1913
        %v1918 = vadd.f32 %v1896, %v1914
        %v1919 = vadd.f32 %v1897, %v1915
        %v1920 = vadd.f32 %v1898, %v1916
        %1921 = vrot.lane.b32.xlu0 %v1552, 24
        %v1922 = vpop.permute.xlu0 %1921
        %1923 = vrot.lane.b32.xlu0 %v1559, 24
        %v1924 = vpop.permute.xlu0 %1923
        %1925 = vrot.lane.b32.xlu0 %v1566, 24
        %v1926 = vpop.permute.xlu0 %1925
        %1927 = vrot.lane.b32.xlu0 %v1573, 24
        %v1928 = vpop.permute.xlu0 %1927
        %v1929 = vsel %vm452, %v1926, %v1928
        %v1930 = vsel %vm452, %v1924, %v1926
        %v1931 = vsel %vm452, %v1922, %v1924
        %v1932 = vsel %vm452, %v1928, %v1922
        %s1933 = sld [smem:[#allocation7 + $0x7]]
        %v1934 = vstv %s1933
        %v1935 = vmul.f32 %v1932, %v1934
        %v1936 = vmul.f32 %v1931, %v1934
        %v1937 = vmul.f32 %v1930, %v1934
        %v1938 = vmul.f32 %v1929, %v1934
        %v1939 = vadd.f32 %v1917, %v1935
        %v1940 = vadd.f32 %v1918, %v1936
        %v1941 = vadd.f32 %v1919, %v1937
        %v1942 = vadd.f32 %v1920, %v1938
        %1943 = vrot.lane.b32.xlu0 %v1603, 24
        %v1944 = vpop.permute.xlu0 %1943
        %1945 = vrot.lane.b32.xlu0 %v1604, 24
        %v1946 = vpop.permute.xlu0 %1945
        %1947 = vrot.lane.b32.xlu0 %v1605, 24
        %v1948 = vpop.permute.xlu0 %1947
        %1949 = vrot.lane.b32.xlu0 %v1606, 24
        %v1950 = vpop.permute.xlu0 %1949
        %v1951 = vsel %vm452, %v1948, %v1950
        %v1952 = vsel %vm452, %v1946, %v1948
        %v1953 = vsel %vm452, %v1944, %v1946
        %v1954 = vsel %vm452, %v1950, %v1944
        %s1955 = sld [smem:[#allocation7 + $0x87]]
        %v1956 = vstv %s1955
        %v1957 = vmul.f32 %v1954, %v1956
        %v1958 = vmul.f32 %v1953, %v1956
        %v1959 = vmul.f32 %v1952, %v1956
        %v1960 = vmul.f32 %v1951, %v1956
        %v1961 = vadd.f32 %v1939, %v1957
        %v1962 = vadd.f32 %v1940, %v1958
        %v1963 = vadd.f32 %v1941, %v1959
        %v1964 = vadd.f32 %v1942, %v1960
        %1965 = vrot.lane.b32.xlu0 %v1552, 23
        %v1966 = vpop.permute.xlu0 %1965
        %1967 = vrot.lane.b32.xlu0 %v1559, 23
        %v1968 = vpop.permute.xlu0 %1967
        %1969 = vrot.lane.b32.xlu0 %v1566, 23
        %v1970 = vpop.permute.xlu0 %1969
        %1971 = vrot.lane.b32.xlu0 %v1573, 23
        %v1972 = vpop.permute.xlu0 %1971
        %v1973 = vsel %vm485, %v1970, %v1972
        %v1974 = vsel %vm485, %v1968, %v1970
        %v1975 = vsel %vm485, %v1966, %v1968
        %v1976 = vsel %vm485, %v1972, %v1966
        %s1977 = sld [smem:[#allocation7 + $0x8]]
        %v1978 = vstv %s1977
        %v1979 = vmul.f32 %v1976, %v1978
        %v1980 = vmul.f32 %v1975, %v1978
        %v1981 = vmul.f32 %v1974, %v1978
        %v1982 = vmul.f32 %v1973, %v1978
        %v1983 = vadd.f32 %v1961, %v1979
        %v1984 = vadd.f32 %v1962, %v1980
        %v1985 = vadd.f32 %v1963, %v1981
        %v1986 = vadd.f32 %v1964, %v1982
        %1987 = vrot.lane.b32.xlu0 %v1603, 23
        %v1988 = vpop.permute.xlu0 %1987
        %1989 = vrot.lane.b32.xlu0 %v1604, 23
        %v1990 = vpop.permute.xlu0 %1989
        %1991 = vrot.lane.b32.xlu0 %v1605, 23
        %v1992 = vpop.permute.xlu0 %1991
        %1993 = vrot.lane.b32.xlu0 %v1606, 23
        %v1994 = vpop.permute.xlu0 %1993
        %v1995 = vsel %vm485, %v1992, %v1994
        %v1996 = vsel %vm485, %v1990, %v1992
        %v1997 = vsel %vm485, %v1988, %v1990
        %v1998 = vsel %vm485, %v1994, %v1988
        %s1999 = sld [smem:[#allocation7 + $0x88]]
        %v2000 = vstv %s1999
        %v2001 = vmul.f32 %v1998, %v2000
        %v2002 = vmul.f32 %v1997, %v2000
        %v2003 = vmul.f32 %v1996, %v2000
        %v2004 = vmul.f32 %v1995, %v2000
        %v2005 = vadd.f32 %v1983, %v2001
        %v2006 = vadd.f32 %v1984, %v2002
        %v2007 = vadd.f32 %v1985, %v2003
        %v2008 = vadd.f32 %v1986, %v2004
        %2009 = vrot.lane.b32.xlu0 %v1552, 22
        %v2010 = vpop.permute.xlu0 %2009
        %2011 = vrot.lane.b32.xlu0 %v1559, 22
        %v2012 = vpop.permute.xlu0 %2011
        %2013 = vrot.lane.b32.xlu0 %v1566, 22
        %v2014 = vpop.permute.xlu0 %2013
        %2015 = vrot.lane.b32.xlu0 %v1573, 22
        %v2016 = vpop.permute.xlu0 %2015
        %vm2017 = vcmp.lt.s32.totalorder %v418, 22
        %v2018 = vsel %vm2017, %v2014, %v2016
        %v2019 = vsel %vm2017, %v2012, %v2014
        %v2020 = vsel %vm2017, %v2010, %v2012
        %v2021 = vsel %vm2017, %v2016, %v2010
        %s2022 = sld [smem:[#allocation7 + $0x9]]
        %v2023 = vstv %s2022
        %v2024 = vmul.f32 %v2021, %v2023
        %v2025 = vmul.f32 %v2020, %v2023
        %v2026 = vmul.f32 %v2019, %v2023
        %v2027 = vmul.f32 %v2018, %v2023
        %v2028 = vadd.f32 %v2005, %v2024
        %v2029 = vadd.f32 %v2006, %v2025
        %v2030 = vadd.f32 %v2007, %v2026
        %v2031 = vadd.f32 %v2008, %v2027
        %2032 = vrot.lane.b32.xlu0 %v1603, 22
        %v2033 = vpop.permute.xlu0 %2032
        %2034 = vrot.lane.b32.xlu0 %v1604, 22
        %v2035 = vpop.permute.xlu0 %2034
        %2036 = vrot.lane.b32.xlu0 %v1605, 22
        %v2037 = vpop.permute.xlu0 %2036
        %2038 = vrot.lane.b32.xlu0 %v1606, 22
        %v2039 = vpop.permute.xlu0 %2038
        %v2040 = vsel %vm2017, %v2037, %v2039
        %v2041 = vsel %vm2017, %v2035, %v2037
        %v2042 = vsel %vm2017, %v2033, %v2035
        %v2043 = vsel %vm2017, %v2039, %v2033
        %s2044 = sld [smem:[#allocation7 + $0x89]]
        %v2045 = vstv %s2044
        %v2046 = vmul.f32 %v2043, %v2045
        %v2047 = vmul.f32 %v2042, %v2045
        %v2048 = vmul.f32 %v2041, %v2045
        %v2049 = vmul.f32 %v2040, %v2045
        %v2050 = vadd.f32 %v2028, %v2046
        %v2051 = vadd.f32 %v2029, %v2047
        %v2052 = vadd.f32 %v2030, %v2048
        %v2053 = vadd.f32 %v2031, %v2049
        %2054 = vrot.lane.b32.xlu0 %v1552, 2
        %v2055 = vpop.permute.xlu0 %2054
        %2056 = vrot.lane.b32.xlu0 %v1559, 2
        %v2057 = vpop.permute.xlu0 %2056
        %2058 = vrot.lane.b32.xlu0 %v1566, 2
        %v2059 = vpop.permute.xlu0 %2058
        %2060 = vrot.lane.b32.xlu0 %v1573, 2
        %v2061 = vpop.permute.xlu0 %2060
        %vm2062 = vcmp.lt.s32.totalorder %v418, 2
        %v2063 = vsel %vm2062, %v2059, %v2061
        %v2064 = vsel %vm2062, %v2057, %v2059
        %v2065 = vsel %vm2062, %v2055, %v2057
        %v2066 = vsel %vm2062, %v2061, %v2055
        %s2067 = sld [smem:[#allocation7 + $0xa]]
        %v2068 = vstv %s2067
        %v2069 = vmul.f32 %v2066, %v2068
        %v2070 = vmul.f32 %v2065, %v2068
        %v2071 = vmul.f32 %v2064, %v2068
        %v2072 = vmul.f32 %v2063, %v2068
        %v2073 = vadd.f32 %v2050, %v2069
        %v2074 = vadd.f32 %v2051, %v2070
        %v2075 = vadd.f32 %v2052, %v2071
        %v2076 = vadd.f32 %v2053, %v2072
        %2077 = vrot.lane.b32.xlu0 %v1603, 2
        %v2078 = vpop.permute.xlu0 %2077
        %2079 = vrot.lane.b32.xlu0 %v1604, 2
        %v2080 = vpop.permute.xlu0 %2079
        %2081 = vrot.lane.b32.xlu0 %v1605, 2
        %v2082 = vpop.permute.xlu0 %2081
        %2083 = vrot.lane.b32.xlu0 %v1606, 2
        %v2084 = vpop.permute.xlu0 %2083
        %v2085 = vsel %vm2062, %v2082, %v2084
        %v2086 = vsel %vm2062, %v2080, %v2082
        %v2087 = vsel %vm2062, %v2078, %v2080
        %v2088 = vsel %vm2062, %v2084, %v2078
        %s2089 = sld [smem:[#allocation7 + $0x8a]]
        %v2090 = vstv %s2089
        %v2091 = vmul.f32 %v2088, %v2090
        %v2092 = vmul.f32 %v2087, %v2090
        %v2093 = vmul.f32 %v2086, %v2090
        %v2094 = vmul.f32 %v2085, %v2090
        %v2095 = vadd.f32 %v2073, %v2091
        %v2096 = vadd.f32 %v2074, %v2092
        %v2097 = vadd.f32 %v2075, %v2093
        %v2098 = vadd.f32 %v2076, %v2094
        %2099 = vrot.lane.b32.xlu0 %v1552, 1
        %v2100 = vpop.permute.xlu0 %2099
        %2101 = vrot.lane.b32.xlu0 %v1559, 1
        %v2102 = vpop.permute.xlu0 %2101
        %2103 = vrot.lane.b32.xlu0 %v1566, 1
        %v2104 = vpop.permute.xlu0 %2103
        %2105 = vrot.lane.b32.xlu0 %v1573, 1
        %v2106 = vpop.permute.xlu0 %2105
        %v2107 = vsel %vm518, %v2104, %v2106
        %v2108 = vsel %vm518, %v2102, %v2104
        %v2109 = vsel %vm518, %v2100, %v2102
        %v2110 = vsel %vm518, %v2106, %v2100
        %s2111 = sld [smem:[#allocation7 + $0xb]]
        %v2112 = vstv %s2111
        %v2113 = vmul.f32 %v2110, %v2112
        %v2114 = vmul.f32 %v2109, %v2112
        %v2115 = vmul.f32 %v2108, %v2112
        %v2116 = vmul.f32 %v2107, %v2112
        %v2117 = vadd.f32 %v2095, %v2113
        %v2118 = vadd.f32 %v2096, %v2114
        %v2119 = vadd.f32 %v2097, %v2115
        %v2120 = vadd.f32 %v2098, %v2116
        %2121 = vrot.lane.b32.xlu0 %v1603, 1
        %v2122 = vpop.permute.xlu0 %2121
        %2123 = vrot.lane.b32.xlu0 %v1604, 1
        %v2124 = vpop.permute.xlu0 %2123
        %2125 = vrot.lane.b32.xlu0 %v1605, 1
        %v2126 = vpop.permute.xlu0 %2125
        %2127 = vrot.lane.b32.xlu0 %v1606, 1
        %v2128 = vpop.permute.xlu0 %2127
        %v2129 = vsel %vm518, %v2126, %v2128
        %v2130 = vsel %vm518, %v2124, %v2126
        %v2131 = vsel %vm518, %v2122, %v2124
        %v2132 = vsel %vm518, %v2128, %v2122
        %s2133 = sld [smem:[#allocation7 + $0x8b]]
        %v2134 = vstv %s2133
        %v2135 = vmul.f32 %v2132, %v2134
        %v2136 = vmul.f32 %v2131, %v2134
        %v2137 = vmul.f32 %v2130, %v2134
        %v2138 = vmul.f32 %v2129, %v2134
        %v2139 = vadd.f32 %v2117, %v2135
        %v2140 = vadd.f32 %v2118, %v2136
        %v2141 = vadd.f32 %v2119, %v2137
        %v2142 = vadd.f32 %v2120, %v2138
        %s2143 = sld [smem:[#allocation7 + $0xc]]
        %v2144 = vstv %s2143
        %v2145 = vmul.f32 %v1552, %v2144
        %v2146 = vmul.f32 %v1559, %v2144
        %v2147 = vmul.f32 %v1566, %v2144
        %v2148 = vmul.f32 %v1573, %v2144
        %v2149 = vadd.f32 %v2139, %v2145
        %v2150 = vadd.f32 %v2140, %v2146
        %v2151 = vadd.f32 %v2141, %v2147
        %v2152 = vadd.f32 %v2142, %v2148
        %s2153 = sld [smem:[#allocation7 + $0x8c]]
        %v2154 = vstv %s2153
        %v2155 = vmul.f32 %v1603, %v2154
        %v2156 = vmul.f32 %v1604, %v2154
        %v2157 = vmul.f32 %v1605, %v2154
        %v2158 = vmul.f32 %v1606, %v2154
        %v2159 = vadd.f32 %v2149, %v2155
        %v2160 = vadd.f32 %v2150, %v2156
        %v2161 = vadd.f32 %v2151, %v2157
        %v2162 = vadd.f32 %v2152, %v2158
        %2163 = vrot.lane.b32.xlu0 %v1552, 127
        %v2164 = vpop.permute.xlu0 %2163
        %2165 = vrot.lane.b32.xlu0 %v1559, 127
        %v2166 = vpop.permute.xlu0 %2165
        %2167 = vrot.lane.b32.xlu0 %v1566, 127
        %v2168 = vpop.permute.xlu0 %2167
        %2169 = vrot.lane.b32.xlu0 %v1573, 127
        %v2170 = vpop.permute.xlu0 %2169
        %v2171 = vsel %vm559, %v2168, %v2170
        %v2172 = vsel %vm559, %v2166, %v2168
        %v2173 = vsel %vm559, %v2164, %v2166
        %v2174 = vsel %vm559, %v2170, %v2164
        %s2175 = sld [smem:[#allocation7 + $0xd]]
        %v2176 = vstv %s2175
        %v2177 = vmul.f32 %v2173, %v2176
        %v2178 = vmul.f32 %v2172, %v2176
        %v2179 = vmul.f32 %v2171, %v2176
        %v2180 = vmul.f32 %v2174, %v2176
        %v2181 = vadd.f32 %v2159, %v2177
        %v2182 = vadd.f32 %v2160, %v2178
        %v2183 = vadd.f32 %v2161, %v2179
        %v2184 = vadd.f32 %v2162, %v2180
        %2185 = vrot.lane.b32.xlu0 %v1603, 127
        %v2186 = vpop.permute.xlu0 %2185
        %2187 = vrot.lane.b32.xlu0 %v1604, 127
        %v2188 = vpop.permute.xlu0 %2187
        %2189 = vrot.lane.b32.xlu0 %v1605, 127
        %v2190 = vpop.permute.xlu0 %2189
        %2191 = vrot.lane.b32.xlu0 %v1606, 127
        %v2192 = vpop.permute.xlu0 %2191
        %v2193 = vsel %vm559, %v2190, %v2192
        %v2194 = vsel %vm559, %v2188, %v2190
        %v2195 = vsel %vm559, %v2186, %v2188
        %v2196 = vsel %vm559, %v2192, %v2186
        %s2197 = sld [smem:[#allocation7 + $0x8d]]
        %v2198 = vstv %s2197
        %v2199 = vmul.f32 %v2195, %v2198
        %v2200 = vmul.f32 %v2194, %v2198
        %v2201 = vmul.f32 %v2193, %v2198
        %v2202 = vmul.f32 %v2196, %v2198
        %v2203 = vadd.f32 %v2181, %v2199
        %v2204 = vadd.f32 %v2182, %v2200
        %v2205 = vadd.f32 %v2183, %v2201
        %v2206 = vadd.f32 %v2184, %v2202
        %2207 = vrot.lane.b32.xlu0 %v1552, 126
        %v2208 = vpop.permute.xlu0 %2207
        %2209 = vrot.lane.b32.xlu0 %v1559, 126
        %v2210 = vpop.permute.xlu0 %2209
        %2211 = vrot.lane.b32.xlu0 %v1566, 126
        %v2212 = vpop.permute.xlu0 %2211
        %2213 = vrot.lane.b32.xlu0 %v1573, 126
        %v2214 = vpop.permute.xlu0 %2213
        %vm2215 = vcmp.lt.s32.totalorder %v418, 126
        %v2216 = vsel %vm2215, %v2212, %v2214
        %v2217 = vsel %vm2215, %v2210, %v2212
        %v2218 = vsel %vm2215, %v2208, %v2210
        %v2219 = vsel %vm2215, %v2214, %v2208
        %s2220 = sld [smem:[#allocation7 + $0xe]]
        %v2221 = vstv %s2220
        %v2222 = vmul.f32 %v2218, %v2221
        %v2223 = vmul.f32 %v2217, %v2221
        %v2224 = vmul.f32 %v2216, %v2221
        %v2225 = vmul.f32 %v2219, %v2221
        %v2226 = vadd.f32 %v2203, %v2222
        %v2227 = vadd.f32 %v2204, %v2223
        %v2228 = vadd.f32 %v2205, %v2224
        %v2229 = vadd.f32 %v2206, %v2225
        %2230 = vrot.lane.b32.xlu0 %v1603, 126
        %v2231 = vpop.permute.xlu0 %2230
        %2232 = vrot.lane.b32.xlu0 %v1604, 126
        %v2233 = vpop.permute.xlu0 %2232
        %2234 = vrot.lane.b32.xlu0 %v1605, 126
        %v2235 = vpop.permute.xlu0 %2234
        %2236 = vrot.lane.b32.xlu0 %v1606, 126
        %v2237 = vpop.permute.xlu0 %2236
        %v2238 = vsel %vm2215, %v2235, %v2237
        %v2239 = vsel %vm2215, %v2233, %v2235
        %v2240 = vsel %vm2215, %v2231, %v2233
        %v2241 = vsel %vm2215, %v2237, %v2231
        %s2242 = sld [smem:[#allocation7 + $0x8e]]
        %v2243 = vstv %s2242
        %v2244 = vmul.f32 %v2240, %v2243
        %v2245 = vmul.f32 %v2239, %v2243
        %v2246 = vmul.f32 %v2238, %v2243
        %v2247 = vmul.f32 %v2241, %v2243
        %v2248 = vadd.f32 %v2226, %v2244
        %v2249 = vadd.f32 %v2227, %v2245
        %v2250 = vadd.f32 %v2228, %v2246
        %v2251 = vadd.f32 %v2229, %v2247
        %2252 = vrot.lane.b32.xlu0 %v1552, 106
        %v2253 = vpop.permute.xlu0 %2252
        %2254 = vrot.lane.b32.xlu0 %v1559, 106
        %v2255 = vpop.permute.xlu0 %2254
        %2256 = vrot.lane.b32.xlu0 %v1566, 106
        %v2257 = vpop.permute.xlu0 %2256
        %2258 = vrot.lane.b32.xlu0 %v1573, 106
        %v2259 = vpop.permute.xlu0 %2258
        %vm2260 = vcmp.lt.s32.totalorder %v418, 106
        %v2261 = vsel %vm2260, %v2257, %v2259
        %v2262 = vsel %vm2260, %v2255, %v2257
        %v2263 = vsel %vm2260, %v2253, %v2255
        %v2264 = vsel %vm2260, %v2259, %v2253
        %s2265 = sld [smem:[#allocation7 + $0xf]]
        %v2266 = vstv %s2265
        %v2267 = vmul.f32 %v2263, %v2266
        %v2268 = vmul.f32 %v2262, %v2266
        %v2269 = vmul.f32 %v2261, %v2266
        %v2270 = vmul.f32 %v2264, %v2266
        %v2271 = vadd.f32 %v2248, %v2267
        %v2272 = vadd.f32 %v2249, %v2268
        %v2273 = vadd.f32 %v2250, %v2269
        %v2274 = vadd.f32 %v2251, %v2270
        %2275 = vrot.lane.b32.xlu0 %v1603, 106
        %v2276 = vpop.permute.xlu0 %2275
        %2277 = vrot.lane.b32.xlu0 %v1604, 106
        %v2278 = vpop.permute.xlu0 %2277
        %2279 = vrot.lane.b32.xlu0 %v1605, 106
        %v2280 = vpop.permute.xlu0 %2279
        %2281 = vrot.lane.b32.xlu0 %v1606, 106
        %v2282 = vpop.permute.xlu0 %2281
        %v2283 = vsel %vm2260, %v2280, %v2282
        %v2284 = vsel %vm2260, %v2278, %v2280
        %v2285 = vsel %vm2260, %v2276, %v2278
        %v2286 = vsel %vm2260, %v2282, %v2276
        %s2287 = sld [smem:[#allocation7 + $0x8f]]
        %v2288 = vstv %s2287
        %v2289 = vmul.f32 %v2285, %v2288
        %v2290 = vmul.f32 %v2284, %v2288
        %v2291 = vmul.f32 %v2283, %v2288
        %v2292 = vmul.f32 %v2286, %v2288
        %v2293 = vadd.f32 %v2271, %v2289
        %v2294 = vadd.f32 %v2272, %v2290
        %v2295 = vadd.f32 %v2273, %v2291
        %v2296 = vadd.f32 %v2274, %v2292
        %2297 = vrot.lane.b32.xlu0 %v1552, 105
        %v2298 = vpop.permute.xlu0 %2297
        %2299 = vrot.lane.b32.xlu0 %v1559, 105
        %v2300 = vpop.permute.xlu0 %2299
        %2301 = vrot.lane.b32.xlu0 %v1566, 105
        %v2302 = vpop.permute.xlu0 %2301
        %2303 = vrot.lane.b32.xlu0 %v1573, 105
        %v2304 = vpop.permute.xlu0 %2303
        %v2305 = vsel %vm592, %v2302, %v2304
        %v2306 = vsel %vm592, %v2300, %v2302
        %v2307 = vsel %vm592, %v2298, %v2300
        %v2308 = vsel %vm592, %v2304, %v2298
        %s2309 = sld [smem:[#allocation7 + $0x10]]
        %v2310 = vstv %s2309
        %v2311 = vmul.f32 %v2307, %v2310
        %v2312 = vmul.f32 %v2306, %v2310
        %v2313 = vmul.f32 %v2305, %v2310
        %v2314 = vmul.f32 %v2308, %v2310
        %v2315 = vadd.f32 %v2293, %v2311
        %v2316 = vadd.f32 %v2294, %v2312
        %v2317 = vadd.f32 %v2295, %v2313
        %v2318 = vadd.f32 %v2296, %v2314
        %2319 = vrot.lane.b32.xlu0 %v1603, 105
        %v2320 = vpop.permute.xlu0 %2319
        %2321 = vrot.lane.b32.xlu0 %v1604, 105
        %v2322 = vpop.permute.xlu0 %2321
        %2323 = vrot.lane.b32.xlu0 %v1605, 105
        %v2324 = vpop.permute.xlu0 %2323
        %2325 = vrot.lane.b32.xlu0 %v1606, 105
        %v2326 = vpop.permute.xlu0 %2325
        %v2327 = vsel %vm592, %v2324, %v2326
        %v2328 = vsel %vm592, %v2322, %v2324
        %v2329 = vsel %vm592, %v2320, %v2322
        %v2330 = vsel %vm592, %v2326, %v2320
        %s2331 = sld [smem:[#allocation7 + $0x90]]
        %v2332 = vstv %s2331
        %v2333 = vmul.f32 %v2329, %v2332
        %v2334 = vmul.f32 %v2328, %v2332
        %v2335 = vmul.f32 %v2327, %v2332
        %v2336 = vmul.f32 %v2330, %v2332
        %v2337 = vadd.f32 %v2315, %v2333
        %v2338 = vadd.f32 %v2316, %v2334
        %v2339 = vadd.f32 %v2317, %v2335
        %v2340 = vadd.f32 %v2318, %v2336
        %2341 = vrot.lane.b32.xlu0 %v1552, 104
        %v2342 = vpop.permute.xlu0 %2341
        %2343 = vrot.lane.b32.xlu0 %v1559, 104
        %v2344 = vpop.permute.xlu0 %2343
        %2345 = vrot.lane.b32.xlu0 %v1566, 104
        %v2346 = vpop.permute.xlu0 %2345
        %2347 = vrot.lane.b32.xlu0 %v1573, 104
        %v2348 = vpop.permute.xlu0 %2347
        %v2349 = vsel %vm625, %v2346, %v2348
        %v2350 = vsel %vm625, %v2344, %v2346
        %v2351 = vsel %vm625, %v2342, %v2344
        %v2352 = vsel %vm625, %v2348, %v2342
        %s2353 = sld [smem:[#allocation7 + $0x11]]
        %v2354 = vstv %s2353
        %v2355 = vmul.f32 %v2351, %v2354
        %v2356 = vmul.f32 %v2350, %v2354
        %v2357 = vmul.f32 %v2349, %v2354
        %v2358 = vmul.f32 %v2352, %v2354
        %v2359 = vadd.f32 %v2337, %v2355
        %v2360 = vadd.f32 %v2338, %v2356
        %v2361 = vadd.f32 %v2339, %v2357
        %v2362 = vadd.f32 %v2340, %v2358
        %2363 = vrot.lane.b32.xlu0 %v1603, 104
        %v2364 = vpop.permute.xlu0 %2363
        %2365 = vrot.lane.b32.xlu0 %v1604, 104
        %v2366 = vpop.permute.xlu0 %2365
        %2367 = vrot.lane.b32.xlu0 %v1605, 104
        %v2368 = vpop.permute.xlu0 %2367
        %2369 = vrot.lane.b32.xlu0 %v1606, 104
        %v2370 = vpop.permute.xlu0 %2369
        %v2371 = vsel %vm625, %v2368, %v2370
        %v2372 = vsel %vm625, %v2366, %v2368
        %v2373 = vsel %vm625, %v2364, %v2366
        %v2374 = vsel %vm625, %v2370, %v2364
        %s2375 = sld [smem:[#allocation7 + $0x91]]
        %v2376 = vstv %s2375
        %v2377 = vmul.f32 %v2373, %v2376
        %v2378 = vmul.f32 %v2372, %v2376
        %v2379 = vmul.f32 %v2371, %v2376
        %v2380 = vmul.f32 %v2374, %v2376
        %v2381 = vadd.f32 %v2359, %v2377
        %v2382 = vadd.f32 %v2360, %v2378
        %v2383 = vadd.f32 %v2361, %v2379
        %v2384 = vadd.f32 %v2362, %v2380
        %2385 = vrot.lane.b32.xlu0 %v1552, 103
        %v2386 = vpop.permute.xlu0 %2385
        %2387 = vrot.lane.b32.xlu0 %v1559, 103
        %v2388 = vpop.permute.xlu0 %2387
        %2389 = vrot.lane.b32.xlu0 %v1566, 103
        %v2390 = vpop.permute.xlu0 %2389
        %2391 = vrot.lane.b32.xlu0 %v1573, 103
        %v2392 = vpop.permute.xlu0 %2391
        %v2393 = vsel %vm658, %v2390, %v2392
        %v2394 = vsel %vm658, %v2388, %v2390
        %v2395 = vsel %vm658, %v2386, %v2388
        %v2396 = vsel %vm658, %v2392, %v2386
        %s2397 = sld [smem:[#allocation7 + $0x12]]
        %v2398 = vstv %s2397
        %v2399 = vmul.f32 %v2395, %v2398
        %v2400 = vmul.f32 %v2394, %v2398
        %v2401 = vmul.f32 %v2393, %v2398
        %v2402 = vmul.f32 %v2396, %v2398
        %v2403 = vadd.f32 %v2381, %v2399
        %v2404 = vadd.f32 %v2382, %v2400
        %v2405 = vadd.f32 %v2383, %v2401
        %v2406 = vadd.f32 %v2384, %v2402
        %2407 = vrot.lane.b32.xlu0 %v1603, 103
        %v2408 = vpop.permute.xlu0 %2407
        %2409 = vrot.lane.b32.xlu0 %v1604, 103
        %v2410 = vpop.permute.xlu0 %2409
        %2411 = vrot.lane.b32.xlu0 %v1605, 103
        %v2412 = vpop.permute.xlu0 %2411
        %2413 = vrot.lane.b32.xlu0 %v1606, 103
        %v2414 = vpop.permute.xlu0 %2413
        %v2415 = vsel %vm658, %v2412, %v2414
        %v2416 = vsel %vm658, %v2410, %v2412
        %v2417 = vsel %vm658, %v2408, %v2410
        %v2418 = vsel %vm658, %v2414, %v2408
        %s2419 = sld [smem:[#allocation7 + $0x92]]
        %v2420 = vstv %s2419
        %v2421 = vmul.f32 %v2417, %v2420
        %v2422 = vmul.f32 %v2416, %v2420
        %v2423 = vmul.f32 %v2415, %v2420
        %v2424 = vmul.f32 %v2418, %v2420
        %v2425 = vadd.f32 %v2403, %v2421
        %v2426 = vadd.f32 %v2404, %v2422
        %v2427 = vadd.f32 %v2405, %v2423
        %v2428 = vadd.f32 %v2406, %v2424
        %2429 = vrot.lane.b32.xlu0 %v1552, 102
        %v2430 = vpop.permute.xlu0 %2429
        %2431 = vrot.lane.b32.xlu0 %v1559, 102
        %v2432 = vpop.permute.xlu0 %2431
        %2433 = vrot.lane.b32.xlu0 %v1566, 102
        %v2434 = vpop.permute.xlu0 %2433
        %2435 = vrot.lane.b32.xlu0 %v1573, 102
        %v2436 = vpop.permute.xlu0 %2435
        %vm2437 = vcmp.lt.s32.totalorder %v418, 102
        %v2438 = vsel %vm2437, %v2434, %v2436
        %v2439 = vsel %vm2437, %v2432, %v2434
        %v2440 = vsel %vm2437, %v2430, %v2432
        %v2441 = vsel %vm2437, %v2436, %v2430
        %s2442 = sld [smem:[#allocation7 + $0x13]]
        %v2443 = vstv %s2442
        %v2444 = vmul.f32 %v2440, %v2443
        %v2445 = vmul.f32 %v2439, %v2443
        %v2446 = vmul.f32 %v2438, %v2443
        %v2447 = vmul.f32 %v2441, %v2443
        %v2448 = vadd.f32 %v2425, %v2444
        %v2449 = vadd.f32 %v2426, %v2445
        %v2450 = vadd.f32 %v2427, %v2446
        %v2451 = vadd.f32 %v2428, %v2447
        %2452 = vrot.lane.b32.xlu0 %v1603, 102
        %v2453 = vpop.permute.xlu0 %2452
        %2454 = vrot.lane.b32.xlu0 %v1604, 102
        %v2455 = vpop.permute.xlu0 %2454
        %2456 = vrot.lane.b32.xlu0 %v1605, 102
        %v2457 = vpop.permute.xlu0 %2456
        %2458 = vrot.lane.b32.xlu0 %v1606, 102
        %v2459 = vpop.permute.xlu0 %2458
        %v2460 = vsel %vm2437, %v2457, %v2459
        %v2461 = vsel %vm2437, %v2455, %v2457
        %v2462 = vsel %vm2437, %v2453, %v2455
        %v2463 = vsel %vm2437, %v2459, %v2453
        %s2464 = sld [smem:[#allocation7 + $0x93]]
        %v2465 = vstv %s2464
        %v2466 = vmul.f32 %v2462, %v2465
        %v2467 = vmul.f32 %v2461, %v2465
        %v2468 = vmul.f32 %v2460, %v2465
        %v2469 = vmul.f32 %v2463, %v2465
        %v2470 = vadd.f32 %v2448, %v2466
        %v2471 = vadd.f32 %v2449, %v2467
        %v2472 = vadd.f32 %v2450, %v2468
        %v2473 = vadd.f32 %v2451, %v2469
        %2474 = vrot.lane.b32.xlu0 %v1552, 82
        %v2475 = vpop.permute.xlu0 %2474
        %2476 = vrot.lane.b32.xlu0 %v1559, 82
        %v2477 = vpop.permute.xlu0 %2476
        %2478 = vrot.lane.b32.xlu0 %v1566, 82
        %v2479 = vpop.permute.xlu0 %2478
        %2480 = vrot.lane.b32.xlu0 %v1573, 82
        %v2481 = vpop.permute.xlu0 %2480
        %vm2482 = vcmp.lt.s32.totalorder %v418, 82
        %v2483 = vsel %vm2482, %v2479, %v2481
        %v2484 = vsel %vm2482, %v2477, %v2479
        %v2485 = vsel %vm2482, %v2475, %v2477
        %v2486 = vsel %vm2482, %v2481, %v2475
        %s2487 = sld [smem:[#allocation7 + $0x14]]
        %v2488 = vstv %s2487
        %v2489 = vmul.f32 %v2485, %v2488
        %v2490 = vmul.f32 %v2484, %v2488
        %v2491 = vmul.f32 %v2483, %v2488
        %v2492 = vmul.f32 %v2486, %v2488
        %v2493 = vadd.f32 %v2470, %v2489
        %v2494 = vadd.f32 %v2471, %v2490
        %v2495 = vadd.f32 %v2472, %v2491
        %v2496 = vadd.f32 %v2473, %v2492
        %2497 = vrot.lane.b32.xlu0 %v1603, 82
        %v2498 = vpop.permute.xlu0 %2497
        %2499 = vrot.lane.b32.xlu0 %v1604, 82
        %v2500 = vpop.permute.xlu0 %2499
        %2501 = vrot.lane.b32.xlu0 %v1605, 82
        %v2502 = vpop.permute.xlu0 %2501
        %2503 = vrot.lane.b32.xlu0 %v1606, 82
        %v2504 = vpop.permute.xlu0 %2503
        %v2505 = vsel %vm2482, %v2502, %v2504
        %v2506 = vsel %vm2482, %v2500, %v2502
        %v2507 = vsel %vm2482, %v2498, %v2500
        %v2508 = vsel %vm2482, %v2504, %v2498
        %s2509 = sld [smem:[#allocation7 + $0x94]]
        %v2510 = vstv %s2509
        %v2511 = vmul.f32 %v2507, %v2510
        %v2512 = vmul.f32 %v2506, %v2510
        %v2513 = vmul.f32 %v2505, %v2510
        %v2514 = vmul.f32 %v2508, %v2510
        %v2515 = vadd.f32 %v2493, %v2511
        %v2516 = vadd.f32 %v2494, %v2512
        %v2517 = vadd.f32 %v2495, %v2513
        %v2518 = vadd.f32 %v2496, %v2514
        %2519 = vrot.lane.b32.xlu0 %v1552, 81
        %v2520 = vpop.permute.xlu0 %2519
        %2521 = vrot.lane.b32.xlu0 %v1559, 81
        %v2522 = vpop.permute.xlu0 %2521
        %2523 = vrot.lane.b32.xlu0 %v1566, 81
        %v2524 = vpop.permute.xlu0 %2523
        %2525 = vrot.lane.b32.xlu0 %v1573, 81
        %v2526 = vpop.permute.xlu0 %2525
        %vm2527 = vcmp.lt.s32.totalorder %v418, 81
        %v2528 = vsel %vm2527, %v2524, %v2526
        %v2529 = vsel %vm2527, %v2522, %v2524
        %v2530 = vsel %vm2527, %v2520, %v2522
        %v2531 = vsel %vm2527, %v2526, %v2520
        %s2532 = sld [smem:[#allocation7 + $0x15]]
        %v2533 = vstv %s2532
        %v2534 = vmul.f32 %v2530, %v2533
        %v2535 = vmul.f32 %v2529, %v2533
        %v2536 = vmul.f32 %v2528, %v2533
        %v2537 = vmul.f32 %v2531, %v2533
        %v2538 = vadd.f32 %v2515, %v2534
        %v2539 = vadd.f32 %v2516, %v2535
        %v2540 = vadd.f32 %v2517, %v2536
        %v2541 = vadd.f32 %v2518, %v2537
        %2542 = vrot.lane.b32.xlu0 %v1603, 81
        %v2543 = vpop.permute.xlu0 %2542
        %2544 = vrot.lane.b32.xlu0 %v1604, 81
        %v2545 = vpop.permute.xlu0 %2544
        %2546 = vrot.lane.b32.xlu0 %v1605, 81
        %v2547 = vpop.permute.xlu0 %2546
        %2548 = vrot.lane.b32.xlu0 %v1606, 81
        %v2549 = vpop.permute.xlu0 %2548
        %v2550 = vsel %vm2527, %v2547, %v2549
        %v2551 = vsel %vm2527, %v2545, %v2547
        %v2552 = vsel %vm2527, %v2543, %v2545
        %v2553 = vsel %vm2527, %v2549, %v2543
        %s2554 = sld [smem:[#allocation7 + $0x95]]
        %v2555 = vstv %s2554
        %v2556 = vmul.f32 %v2552, %v2555
        %v2557 = vmul.f32 %v2551, %v2555
        %v2558 = vmul.f32 %v2550, %v2555
        %v2559 = vmul.f32 %v2553, %v2555
        %v2560 = vadd.f32 %v2538, %v2556
        %v2561 = vadd.f32 %v2539, %v2557
        %v2562 = vadd.f32 %v2540, %v2558
        %v2563 = vadd.f32 %v2541, %v2559
        %2564 = vrot.lane.b32.xlu0 %v1552, 80
        %v2565 = vpop.permute.xlu0 %2564
        %2566 = vrot.lane.b32.xlu0 %v1559, 80
        %v2567 = vpop.permute.xlu0 %2566
        %2568 = vrot.lane.b32.xlu0 %v1566, 80
        %v2569 = vpop.permute.xlu0 %2568
        %2570 = vrot.lane.b32.xlu0 %v1573, 80
        %v2571 = vpop.permute.xlu0 %2570
        %vm2572 = vcmp.lt.s32.totalorder %v418, 80
        %v2573 = vsel %vm2572, %v2569, %v2571
        %v2574 = vsel %vm2572, %v2567, %v2569
        %v2575 = vsel %vm2572, %v2565, %v2567
        %v2576 = vsel %vm2572, %v2571, %v2565
        %s2577 = sld [smem:[#allocation7 + $0x16]]
        %v2578 = vstv %s2577
        %v2579 = vmul.f32 %v2575, %v2578
        %v2580 = vmul.f32 %v2574, %v2578
        %v2581 = vmul.f32 %v2573, %v2578
        %v2582 = vmul.f32 %v2576, %v2578
        %v2583 = vadd.f32 %v2560, %v2579
        %v2584 = vadd.f32 %v2561, %v2580
        %v2585 = vadd.f32 %v2562, %v2581
        %v2586 = vadd.f32 %v2563, %v2582
        %2587 = vrot.lane.b32.xlu0 %v1603, 80
        %v2588 = vpop.permute.xlu0 %2587
        %2589 = vrot.lane.b32.xlu0 %v1604, 80
        %v2590 = vpop.permute.xlu0 %2589
        %2591 = vrot.lane.b32.xlu0 %v1605, 80
        %v2592 = vpop.permute.xlu0 %2591
        %2593 = vrot.lane.b32.xlu0 %v1606, 80
        %v2594 = vpop.permute.xlu0 %2593
        %v2595 = vsel %vm2572, %v2592, %v2594
        %v2596 = vsel %vm2572, %v2590, %v2592
        %v2597 = vsel %vm2572, %v2588, %v2590
        %v2598 = vsel %vm2572, %v2594, %v2588
        %s2599 = sld [smem:[#allocation7 + $0x96]]
        %v2600 = vstv %s2599
        %v2601 = vmul.f32 %v2597, %v2600
        %v2602 = vmul.f32 %v2596, %v2600
        %v2603 = vmul.f32 %v2595, %v2600
        %v2604 = vmul.f32 %v2598, %v2600
        %v2605 = vadd.f32 %v2583, %v2601
        %v2606 = vadd.f32 %v2584, %v2602
        %v2607 = vadd.f32 %v2585, %v2603
        %v2608 = vadd.f32 %v2586, %v2604
        %2609 = vrot.lane.b32.xlu0 %v1552, 79
        %v2610 = vpop.permute.xlu0 %2609
        %2611 = vrot.lane.b32.xlu0 %v1559, 79
        %v2612 = vpop.permute.xlu0 %2611
        %2613 = vrot.lane.b32.xlu0 %v1566, 79
        %v2614 = vpop.permute.xlu0 %2613
        %2615 = vrot.lane.b32.xlu0 %v1573, 79
        %v2616 = vpop.permute.xlu0 %2615
        %vm2617 = vcmp.lt.s32.totalorder %v418, 79
        %v2618 = vsel %vm2617, %v2614, %v2616
        %v2619 = vsel %vm2617, %v2612, %v2614
        %v2620 = vsel %vm2617, %v2610, %v2612
        %v2621 = vsel %vm2617, %v2616, %v2610
        %s2622 = sld [smem:[#allocation7 + $0x17]]
        %v2623 = vstv %s2622
        %v2624 = vmul.f32 %v2620, %v2623
        %v2625 = vmul.f32 %v2619, %v2623
        %v2626 = vmul.f32 %v2618, %v2623
        %v2627 = vmul.f32 %v2621, %v2623
        %v2628 = vadd.f32 %v2605, %v2624
        %v2629 = vadd.f32 %v2606, %v2625
        %v2630 = vadd.f32 %v2607, %v2626
        %v2631 = vadd.f32 %v2608, %v2627
        %2632 = vrot.lane.b32.xlu0 %v1603, 79
        %v2633 = vpop.permute.xlu0 %2632
        %2634 = vrot.lane.b32.xlu0 %v1604, 79
        %v2635 = vpop.permute.xlu0 %2634
        %2636 = vrot.lane.b32.xlu0 %v1605, 79
        %v2637 = vpop.permute.xlu0 %2636
        %2638 = vrot.lane.b32.xlu0 %v1606, 79
        %v2639 = vpop.permute.xlu0 %2638
        %v2640 = vsel %vm2617, %v2637, %v2639
        %v2641 = vsel %vm2617, %v2635, %v2637
        %v2642 = vsel %vm2617, %v2633, %v2635
        %v2643 = vsel %vm2617, %v2639, %v2633
        %s2644 = sld [smem:[#allocation7 + $0x97]]
        %v2645 = vstv %s2644
        %v2646 = vmul.f32 %v2642, %v2645
        %v2647 = vmul.f32 %v2641, %v2645
        %v2648 = vmul.f32 %v2640, %v2645
        %v2649 = vmul.f32 %v2643, %v2645
        %v2650 = vadd.f32 %v2628, %v2646
        %v2651 = vadd.f32 %v2629, %v2647
        %v2652 = vadd.f32 %v2630, %v2648
        %v2653 = vadd.f32 %v2631, %v2649
        %2654 = vrot.lane.b32.xlu0 %v1552, 78
        %v2655 = vpop.permute.xlu0 %2654
        %2656 = vrot.lane.b32.xlu0 %v1559, 78
        %v2657 = vpop.permute.xlu0 %2656
        %2658 = vrot.lane.b32.xlu0 %v1566, 78
        %v2659 = vpop.permute.xlu0 %2658
        %2660 = vrot.lane.b32.xlu0 %v1573, 78
        %v2661 = vpop.permute.xlu0 %2660
        %vm2662 = vcmp.lt.s32.totalorder %v418, 78
        %v2663 = vsel %vm2662, %v2659, %v2661
        %v2664 = vsel %vm2662, %v2657, %v2659
        %v2665 = vsel %vm2662, %v2655, %v2657
        %v2666 = vsel %vm2662, %v2661, %v2655
        %s2667 = sld [smem:[#allocation7 + $0x18]]
        %v2668 = vstv %s2667
        %v2669 = vmul.f32 %v2665, %v2668
        %v2670 = vmul.f32 %v2664, %v2668
        %v2671 = vmul.f32 %v2663, %v2668
        %v2672 = vmul.f32 %v2666, %v2668
        %v2673 = vadd.f32 %v2650, %v2669
        %v2674 = vadd.f32 %v2651, %v2670
        %v2675 = vadd.f32 %v2652, %v2671
        %v2676 = vadd.f32 %v2653, %v2672
        %2677 = vrot.lane.b32.xlu0 %v1603, 78
        %v2678 = vpop.permute.xlu0 %2677
        %2679 = vrot.lane.b32.xlu0 %v1604, 78
        %v2680 = vpop.permute.xlu0 %2679
        %2681 = vrot.lane.b32.xlu0 %v1605, 78
        %v2682 = vpop.permute.xlu0 %2681
        %2683 = vrot.lane.b32.xlu0 %v1606, 78
        %v2684 = vpop.permute.xlu0 %2683
        %v2685 = vsel %vm2662, %v2682, %v2684
        %v2686 = vsel %vm2662, %v2680, %v2682
        %v2687 = vsel %vm2662, %v2678, %v2680
        %v2688 = vsel %vm2662, %v2684, %v2678
        %s2689 = sld [smem:[#allocation7 + $0x98]]
        %v2690 = vstv %s2689
        %v2691 = vmul.f32 %v2687, %v2690
        %v2692 = vmul.f32 %v2686, %v2690
        %v2693 = vmul.f32 %v2685, %v2690
        %v2694 = vmul.f32 %v2688, %v2690
        %v2695 = vadd.f32 %v2673, %v2691
        %v2696 = vadd.f32 %v2674, %v2692
        %v2697 = vadd.f32 %v2675, %v2693
        %v2698 = vadd.f32 %v2676, %v2694
        %v2699 = vsub.f32 0.0, %v2695
        %v2700 = vsub.f32 0.0, %v2696
        %v2701 = vsub.f32 0.0, %v2697
        %v2702 = vsub.f32 0.0, %v2698
        %v2703 = vmul.f32 %v2699, 1.442695
        %v2704 = vpow.pop %v2703
        %v2705 = vmul.f32 %v2700, 1.442695
        %v2706 = vpow.pop %v2705
        %v2707 = vmul.f32 %v2701, 1.442695
        %v2708 = vpow.pop %v2707
        %v2709 = vmul.f32 %v2702, 1.442695
        %v2710 = vpow.pop %v2709
        %v2711 = vadd.f32 %v2704, 1.0
        %v2712 = vadd.f32 %v2706, 1.0
        %v2713 = vadd.f32 %v2708, 1.0
        %v2714 = vadd.f32 %v2710, 1.0
        %v2715 = vrcp.pop %v2711
        %v2716 = vmul.f32 1.0, %v2715
        %v2717 = vrcp.pop %v2712
        %v2718 = vmul.f32 1.0, %v2717
        %v2719 = vrcp.pop %v2713
        %v2720 = vmul.f32 1.0, %v2719
        %v2721 = vrcp.pop %v2714
        %v2722 = vmul.f32 1.0, %v2721
        %v2723 = vlaneseq
        %v2724 = vshrl.u32 %v2723, 7
        %v2725 = vsub.s32 0, %v2724
        %v2726 = vrot.slane %v2716, %v2725
        %v2727 = vlaneseq
        %v2728 = vshrl.u32 %v2727, 7
        %v2729 = vsub.s32 0, %v2728
        %v2730 = vrot.slane %v2718, %v2729
        %v2731 = vlaneseq
        %v2732 = vshrl.u32 %v2731, 7
        %v2733 = vsub.s32 0, %v2732
        %v2734 = vrot.slane %v2720, %v2733
        %v2735 = vlaneseq
        %v2736 = vshrl.u32 %v2735, 7
        %v2737 = vsub.s32 0, %v2736
        %v2738 = vrot.slane %v2722, %v2737
        %v2739 = vmul.f32 %v1481, %v2726
        %v2740 = vmul.f32 %v1482, %v2730
        %v2741 = vmul.f32 %v1483, %v2734
        %v2742 = vmul.f32 %v1484, %v2738
        %v2743 = vmul.f32 %v1485, %v2726
        %v2744 = vmul.f32 %v1486, %v2730
        %v2745 = vmul.f32 %v1487, %v2734
        %v2746 = vmul.f32 %v1488, %v2738
        %v2747 = vld [vmem:[%s7] sm:$0xff]
        %v2748 = vld [vmem:[%s7 + $0x8] sm:$0xff]
        %vm2749 = vcmask 261120
        %v2751 = vsel %vm2749, %v2747, 0
        %v2754 = vsel %vm2749, %v2748, 0
        %2756 = vmatprep.subr.mxu0 %v2740
        %2757 = vmatpush1.msra.mxu0 %v2739
        %2758 = vmatprep.subr.mxu0 %v2744
        %2759 = vmatpush1.msra.mxu0 %v2743
        %2760 = vmatprep.subr.mxu0 %v1539
        %2761 = vmatpush1.msra.mxu0 %v1538
        %2762 = vmatprep.subr.mxu0 %v1543
        %2763 = vmatpush1.msra.mxu0 %v1542
        %2764 = vmatprep.subr.mxu0 0.0
        %2765 = vmatpush1.msra.mxu0 0.0
        %2766 = vmatprep.subr.mxu0 0.0
        %2767 = vmatpush1.msra.mxu0 0.0
        %2768 = vmatprep.subr.mxu0 0.0
        %2769 = vmatpush1.msra.mxu0 0.0
        %2770 = vmatprep.subr.mxu0 0.0
        %2771 = vmatpush1.msra.mxu0 0.0
        %2772 = vmatprep.subr.mxu0 0.0
        %2773 = vmatpush1.msra.mxu0 0.0
        %2774 = vmatprep.subr.mxu0 0.0
        %2775 = vmatpush1.msra.mxu0 0.0
        %2776 = vmatprep.subr.mxu0 0.0
        %2777 = vmatpush1.msra.mxu0 0.0
        %2778 = vmatprep.subr.mxu0 0.0
        %2779 = vmatpush1.msra.mxu0 0.0
        %2780 = vmatprep.subr.mxu0 0.0
        %2781 = vmatpush1.msra.mxu0 0.0
        %2782 = vmatprep.subr.mxu0 0.0
        %2783 = vmatpush1.msra.mxu0 0.0
        %2784 = vmatprep.subr.mxu0 0.0
        %2785 = vmatpush1.msra.mxu0 0.0
        %2786 = vmatprep.subr.mxu0 0.0
        %2787 = vmatpush1.msra.mxu0 0.0
        %2788 = vmatprep.subr.mxu0 0.0
        %2789 = vmatpush1.msra.mxu0 0.0
        %2790 = vmatprep.subr.mxu0 0.0
        %2791 = vmatpush1.msra.mxu0 0.0
        %2792 = vmatprep.subr.mxu0 0.0
        %2793 = vmatpush1.msra.mxu0 0.0
        %2794 = vmatprep.subr.mxu0 0.0
        %2795 = vmatpush1.msra.mxu0 0.0
        %2796 = vmatprep.subr.mxu0 0.0
        %2797 = vmatpush1.msra.mxu0 0.0
        %2798 = vmatprep.subr.mxu0 0.0
        %2799 = vmatpush1.msra.mxu0 0.0
        %2800 = vmatprep.subr.mxu0 0.0
        %2801 = vmatpush1.msra.mxu0 0.0
        %2802 = vmatprep.subr.mxu0 0.0
        %2803 = vmatpush1.msra.mxu0 0.0
        %2804 = vmatprep.subr.mxu0 0.0
        %2805 = vmatpush1.msra.mxu0 0.0
        %2806 = vmatprep.subr.mxu0 0.0
        %2807 = vmatpush1.msra.mxu0 0.0
        %2808 = vmatprep.subr.mxu0 0.0
        %2809 = vmatpush1.msra.mxu0 0.0
        %2810 = vmatprep.subr.mxu0 0.0
        %2811 = vmatpush1.msra.mxu0 0.0
        %2812 = vmatprep.subr.mxu0 0.0
        %2813 = vmatpush1.msra.mxu0 0.0
        %2814 = vmatprep.subr.mxu0 0.0
        %2815 = vmatpush1.msra.mxu0 0.0
        %2816 = vmatprep.subr.mxu0 0.0
        %2817 = vmatpush1.msra.mxu0 0.0
        %2818 = vmatprep.subr.mxu0 0.0
        %2819 = vmatpush1.msra.mxu0 0.0
        %2820 = vmatprep.mubr.f32.mxu0 0.0
        %2821 = vmatmul.mubr.f32.gmra.mrb[0].mxu0 %v2751
        %v2822 = vpop.f32.mrb[0].mxu0
        %v2823 = vadd.f32 %v392, %v2822
        %v2824 = vpop.f32.mrb[0].mxu0
        %v2825 = vadd.f32 %v393, %v2824
        %2826 = vmatprep.mubr.f32.mxu0 0.0
        %2827 = vmatmul.mubr.f32.gmra.mrb[0].mxu0 %v2754
        %v2828 = vpop.f32.mrb[0].mxu0
        %v2829 = vadd.f32 %v396, %v2828
        %v2830 = vpop.f32.mrb[0].mxu0
        %v2831 = vadd.f32 %v397, %v2830
        %2832 = vdwg.mxu0
        %2833 = vmatprep.subr.mxu0 %v2742
        %2834 = vmatpush1.msra.mxu0 %v2741
        %2835 = vmatprep.subr.mxu0 %v2746
        %2836 = vmatpush1.msra.mxu0 %v2745
        %2837 = vmatprep.subr.mxu0 %v1541
        %2838 = vmatpush1.msra.mxu0 %v1540
        %2839 = vmatprep.subr.mxu0 %v1545
        %2840 = vmatpush1.msra.mxu0 %v1544
        %2841 = vmatprep.subr.mxu0 0.0
        %2842 = vmatpush1.msra.mxu0 0.0
        %2843 = vmatprep.subr.mxu0 0.0
        %2844 = vmatpush1.msra.mxu0 0.0
        %2845 = vmatprep.subr.mxu0 0.0
        %2846 = vmatpush1.msra.mxu0 0.0
        %2847 = vmatprep.subr.mxu0 0.0
        %2848 = vmatpush1.msra.mxu0 0.0
        %2849 = vmatprep.subr.mxu0 0.0
        %2850 = vmatpush1.msra.mxu0 0.0
        %2851 = vmatprep.subr.mxu0 0.0
        %2852 = vmatpush1.msra.mxu0 0.0
        %2853 = vmatprep.subr.mxu0 0.0
        %2854 = vmatpush1.msra.mxu0 0.0
        %2855 = vmatprep.subr.mxu0 0.0
        %2856 = vmatpush1.msra.mxu0 0.0
        %2857 = vmatprep.subr.mxu0 0.0
        %2858 = vmatpush1.msra.mxu0 0.0
        %2859 = vmatprep.subr.mxu0 0.0
        %2860 = vmatpush1.msra.mxu0 0.0
        %2861 = vmatprep.subr.mxu0 0.0
        %2862 = vmatpush1.msra.mxu0 0.0
        %2863 = vmatprep.subr.mxu0 0.0
        %2864 = vmatpush1.msra.mxu0 0.0
        %2865 = vmatprep.subr.mxu0 0.0
        %2866 = vmatpush1.msra.mxu0 0.0
        %2867 = vmatprep.subr.mxu0 0.0
        %2868 = vmatpush1.msra.mxu0 0.0
        %2869 = vmatprep.subr.mxu0 0.0
        %2870 = vmatpush1.msra.mxu0 0.0
        %2871 = vmatprep.subr.mxu0 0.0
        %2872 = vmatpush1.msra.mxu0 0.0
        %2873 = vmatprep.subr.mxu0 0.0
        %2874 = vmatpush1.msra.mxu0 0.0
        %2875 = vmatprep.subr.mxu0 0.0
        %2876 = vmatpush1.msra.mxu0 0.0
        %2877 = vmatprep.subr.mxu0 0.0
        %2878 = vmatpush1.msra.mxu0 0.0
        %2879 = vmatprep.subr.mxu0 0.0
        %2880 = vmatpush1.msra.mxu0 0.0
        %2881 = vmatprep.subr.mxu0 0.0
        %2882 = vmatpush1.msra.mxu0 0.0
        %2883 = vmatprep.subr.mxu0 0.0
        %2884 = vmatpush1.msra.mxu0 0.0
        %2885 = vmatprep.subr.mxu0 0.0
        %2886 = vmatpush1.msra.mxu0 0.0
        %2887 = vmatprep.subr.mxu0 0.0
        %2888 = vmatpush1.msra.mxu0 0.0
        %2889 = vmatprep.subr.mxu0 0.0
        %2890 = vmatpush1.msra.mxu0 0.0
        %2891 = vmatprep.subr.mxu0 0.0
        %2892 = vmatpush1.msra.mxu0 0.0
        %2893 = vmatprep.subr.mxu0 0.0
        %2894 = vmatpush1.msra.mxu0 0.0
        %2895 = vmatprep.subr.mxu0 0.0
        %2896 = vmatpush1.msra.mxu0 0.0
        %2897 = vmatprep.mubr.f32.mxu0 0.0
        %2898 = vmatmul.mubr.f32.gmra.mrb[0].mxu0 %v2751
        %v2899 = vpop.f32.mrb[0].mxu0
        %v2900 = vadd.f32 %v394, %v2899
        %v2901 = vpop.f32.mrb[0].mxu0
        %v2902 = vadd.f32 %v395, %v2901
        %2903 = vmatprep.mubr.f32.mxu0 0.0
        %2904 = vmatmul.mubr.f32.gmra.mrb[0].mxu0 %v2754
        %v2905 = vpop.f32.mrb[0].mxu0
        %v2906 = vadd.f32 %v398, %v2905
        %v2907 = vpop.f32.mrb[0].mxu0
        %v2908 = vadd.f32 %v399, %v2907
        %2909 = vdwg.mxu0
        %2910 = vst [vmem:[%s391] sm:$0xff] %v2823
        %2911 = vst [vmem:[%s391 + $0x8] sm:$0xff] %v2825
        %2912 = vst [vmem:[%s391 + $0x10] sm:$0xff] %v2900
        %2913 = vst [vmem:[%s391 + $0x18] sm:$0xff] %v2902
        %2914 = vst [vmem:[%s391 + $0x20] sm:$0xff] %v2829
        %2915 = vst [vmem:[%s391 + $0x28] sm:$0xff] %v2831
        %2916 = vst [vmem:[%s391 + $0x30] sm:$0xff] %v2906
        %2917 = vst [vmem:[%s391 + $0x38] sm:$0xff] %v2908
        %s2918 = sand.u32 %s251, 1
        %s2919 = scalar_lea.sflag [#allocation5], %s2918
        %s2920 = sand.u32 %s251, 1
        %s2921 = smul.addr %s2920, 64
        %s2922 = scalar_lea.vmem [#allocation8], %s2921
        // Predicated region
        $region69: #{tpu_custom_call.1} parent=59 // pred_check
          %p2923 = pneg %p261
        $region70: #{tpu_custom_call.1} parent=59 // pred_check_branch
          %2925 = sbr.rel (%p2923) target = $region72
        $region71: #{tpu_custom_call.1} parent=59 // pred_region
          %s2927 = ssub.s32 1024, 1024
          %2928 = vsyncadd %s2919, %s2927
          %s2929 = smul.addr %s28, 8
          %s2930 = smul.addr %s2929, 128
          %s2931 = scalar_lea.hbm %s10, %s2930
          %s2932 = sshll.u32 %s2922, 4
          %s2933 = int_to_ptr.vmem [resolvable:$true] %s2932
          %2938 = dma.vmem_to_hbm [thread:$0]  %s2933, 1024, %s2931, %s2919, 512, 512, 32
        $region72: #{tpu_custom_call.1} parent=59 // pred_fallthru
          _
      $region60: #{tpu_custom_call.1} parent=5 // pred_fallthru
        _
      %p2939 = scmp.le.s32.totalorder 2, %s23
      // Predicated region
      $region73: #{tpu_custom_call.1} parent=5 // pred_check
        %p2940 = pneg %p2939
      $region74: #{tpu_custom_call.1} parent=5 // pred_check_branch
        %2942 = sbr.rel (%p2940) target = $region76
      $region75: #{tpu_custom_call.1} parent=5 // pred_region
        %s2943 = ssub.s32 %s23, 2
        // Predicated region
        $region77: #{tpu_custom_call.1} parent=75 // pred_check
          %p2944 = pneg %p267
        $region78: #{tpu_custom_call.1} parent=75 // pred_check_branch
          %2946 = sbr.rel (%p2944) target = $region80
        $region79: #{tpu_custom_call.1} parent=75 // pred_region
          %s2947 = sand.u32 %s252, 1
          %s2948 = scalar_lea.sflag [#allocation5], %s2947
          %s2949 = sand.u32 %s252, 1
          %s2950 = smul.addr %s2949, 64
          %s2951 = scalar_lea.vmem [#allocation8], %s2950
          %2952 = dma.done %s2948, 1024
        $region80: #{tpu_custom_call.1} parent=75 // pred_fallthru
          _
      $region76: #{tpu_custom_call.1} parent=5 // pred_fallthru
        _
    $region6: #{tpu_custom_call.1} parent=1 // loop_footer
      %s27 = sadd.s32 1, %s23
    $region7: #{tpu_custom_call.1} parent=1 // loop_footer_branch
      %22 = sbr.rel target = $region3
    $region8: #{tpu_custom_call.1} parent=1 // loop_exit
      _
    %2953 = vsyncpa [#allocation4], 1
    %s2954 = scalar_lea.sflag [#allocation4], 1
    %2955 = vsyncpa %s2954, 1
    %2956 = vsyncpa [#allocation5], 1
    %s2957 = scalar_lea.sflag [#allocation5], 1
    %2958 = vsyncpa %s2957, 1
    %2959 = vsyncpa [#allocation6], 1
    %s2960 = scalar_lea.sflag [#allocation6], 1
    %2961 = vsyncpa %s2960, 1

</llo_original>
